<compile_context>
chip_gen: v6e
topology: v6e:2x2x1
jax: 0.10.0
libtpu: 0.0.40
codegen_flags: <defaults>
</compile_context>

<pallas_src>
import jax
import jax.numpy as jnp
from jax.experimental import pallas as pl
from jax.experimental.pallas import tpu as pltpu

EPS = 1e-5
LANE = 128     # lane width: hidden-dim and per-position embedding padding target
VCHUNK = 256   # vocab chunk for the fused one-hot gather (one MXU K-pass on v6e/v7x)


def _bn_relu(h, gamma, beta):
    """Training-mode BatchNorm1d (biased variance, eps=1e-5) + ReLU in one pass,
    folded into a single scale/shift.  Variance clamped at 0 so f32 cancellation
    can never feed a negative value to rsqrt."""
    mu = jnp.mean(h, axis=0, keepdims=True)
    ms = jnp.mean(h * h, axis=0, keepdims=True)
    var = jnp.maximum(ms - mu * mu, 0.0)
    scale = gamma * jax.lax.rsqrt(var + EPS)
    shift = beta - mu * scale
    return jnp.maximum(h * scale + shift, 0.0)


def dnn_kernel(ids_ref, emb_hbm, w1_hbm, w2_hbm, p_hbm, o_ref,
               emb_v, w1_v, w2_v, p_v, xflat_v, sem):
    # ids_ref : (L*B, 1) int32 VMEM, position-major (row l*B+b holds ids[b, l])
    # emb_hbm : (VP, EP)  bf16 HBM  zero-padded embedding table
    # w1_hbm  : (L*EP, HP) bf16 HBM (rows laid out per padded position block)
    # w2_hbm  : (HP, HP)  bf16 HBM
    # p_hbm   : (8, HP)   f32  HBM packed [g1, be1, g2, be2, w3_row, b3_row, 0, 0]
    # o_ref   : (B, 1)    f32  VMEM output
    # emb_v/w1_v/w2_v/p_v : matching VMEM scratch; xflat_v: (B, L*EP) f32 scratch
    f32 = jnp.float32
    bf16 = jnp.bfloat16

    B = o_ref.shape[0]
    LB = ids_ref.shape[0]
    L = LB // B
    VP, EP = emb_v.shape
    HP = w2_v.shape[1]
    n_chunks = VP // VCHUNK

    # ---- kick off all operand DMAs up front; they overlap with the one-hot /
    #      gather phase below and are waited just before first use.
    cp_emb = pltpu.make_async_copy(emb_hbm, emb_v, sem.at[0]); cp_emb.start()
    cp_w1 = pltpu.make_async_copy(w1_hbm, w1_v, sem.at[1]); cp_w1.start()
    cp_w2 = pltpu.make_async_copy(w2_hbm, w2_v, sem.at[2]); cp_w2.start()
    cp_p = pltpu.make_async_copy(p_hbm, p_v, sem.at[3]); cp_p.start()

    ids = ids_ref[...]                                   # (L*B, 1) int32

    def onehot_chunk(c):
        # bf16 one-hot slice over vocab lanes [c*VCHUNK, (c+1)*VCHUNK).
        # bool -> f32 -> bf16 (exact; plain converts, no bf16 VPU math needed).
        iota = jax.lax.broadcasted_iota(jnp.int32, (LB, VCHUNK), 1) + c * VCHUNK
        return (iota == ids).astype(f32).astype(bf16)

    # ---- fused embedding gather, chunked over the vocab (pure MXU, no dynamic
    #      indexing).  Chunk 0's one-hot only needs ids, so it is built while
    #      the embedding-table DMA is still in flight.
    oh = onehot_chunk(0)
    cp_emb.wait()
    g = jnp.dot(oh, emb_v[pl.ds(0, VCHUNK), :], preferred_element_type=f32)
    for c in range(1, n_chunks):                         # static unroll, small
        oh = onehot_chunk(c)
        g = g + jnp.dot(oh, emb_v[pl.ds(c * VCHUNK, VCHUNK), :],
                        preferred_element_type=f32)
    # row l*B + b of g == embedding[ids[b, l]], zero-padded to EP lanes.

    # ---- flatten: 128-lane-aligned block writes into the (B, L*EP) scratch.
    for l in range(L):                                   # static unroll
        xflat_v[:, pl.ds(l * EP, EP)] = g[l * B:(l + 1) * B, :]

    # ---- Linear 1 as ONE K=L*EP matmul (bias dropped: exactly cancelled by
    #      the BatchNorm mean subtraction).  bf16 inputs, f32 accumulation.
    #      The bf16 cast of xflat is lossless: its values are bf16 table rows.
    cp_w1.wait()
    h = jnp.dot(xflat_v[...].astype(bf16), w1_v[...], preferred_element_type=f32)
    cp_p.wait()
    h = _bn_relu(h, p_v[0:1, :], p_v[1:2, :])

    # ---- Linear 2 + BN + ReLU (bf16 MXU, f32 accumulation / statistics)
    cp_w2.wait()
    h = jnp.dot(h.astype(bf16), w2_v[...], preferred_element_type=f32)
    h = _bn_relu(h, p_v[2:3, :], p_v[3:4, :])

    # ---- Linear 3 (single output unit): VPU multiply + lane reduction, then
    #      sigmoid on the EUP.  (Deliberately NOT an MXU matmul / lane-widened
    #      store: 1 output lane and 8 output elements.)
    logits = jnp.sum(h * p_v[4:5, :], axis=1, keepdims=True) + p_v[5:6, 0:1]
    o_ref[...] = jax.nn.sigmoid(logits)


def pack_params(params, lane=LANE, vchunk=VCHUNK):
    """One-time parameter packing / padding (outside the hot path).
    Padding is all exact zeros (in f32 and after the bf16 cast), so padded
    channels/rows stay exactly 0 through BN/ReLU and the final reduction."""
    f32, bf16 = jnp.float32, jnp.bfloat16
    emb = params["embedding"].astype(f32)
    V, E = emb.shape
    din, H = params["w1"].shape
    L = din // E
    EP = max(((E + lane - 1) // lane) * lane, lane)
    HP = max(((H + lane - 1) // lane) * lane, lane)
    VP = ((V + vchunk - 1) // vchunk) * vchunk

    # Embedding table: zero-padded to (VP, EP), bf16.  One-hot selection is
    # exact, so the only rounding introduced is the bf16 cast of the table.
    embp = jnp.zeros((VP, EP), f32).at[:V, :E].set(emb).astype(bf16)

    # w1 rows reorganised to the padded per-position flatten layout, bf16.
    w1 = params["w1"].astype(f32).reshape(L, E, H)
    w1p = jnp.zeros((L, EP, HP), f32).at[:, :E, :H].set(w1)
    w1p = w1p.reshape(L * EP, HP).astype(bf16)

    w2p = jnp.zeros((HP, HP), f32).at[:H, :H].set(params["w2"].astype(f32))
    w2p = w2p.astype(bf16)

    # Tiny per-channel vectors packed into ONE (8, HP) f32 operand.
    p = jnp.zeros((8, HP), f32)
    p = p.at[0, :H].set(params["g1"].reshape(-1).astype(f32))
    p = p.at[1, :H].set(params["be1"].reshape(-1).astype(f32))
    p = p.at[2, :H].set(params["g2"].reshape(-1).astype(f32))
    p = p.at[3, :H].set(params["be2"].reshape(-1).astype(f32))
    p = p.at[4, :H].set(params["w3"].reshape(-1).astype(f32))
    p = p.at[5, :].set(params["b3"].reshape(()).astype(f32))   # b3 broadcast
    # NOTE: b1/b2 intentionally not packed (cancelled exactly by BatchNorm).
    return {"emb": embp, "w1p": w1p, "w2p": w2p, "p": p}


@jax.jit
def dnn_forward(ids, packed):
    B, L = ids.shape
    # position-major flat ids so gathered rows for one position are contiguous
    ids_lb = ids.T.reshape(L * B, 1).astype(jnp.int32)

    emb, w1p, w2p, p = packed["emb"], packed["w1p"], packed["w2p"], packed["p"]
    VP, EP = emb.shape
    HP = w2p.shape[1]

    vmem = pl.BlockSpec(memory_space=pltpu.MemorySpace.VMEM)
    hbm = pl.BlockSpec(memory_space=pl.ANY)   # raw ref; copied manually in-kernel

    # TODO(synk): for multi-request batched serving on v7x, add a leading
    # "parallel" grid axis over independent requests so both TensorCores are
    # used; a single BatchNorm'd batch cannot be split across cores.
    return pl.pallas_call(
        dnn_kernel,
        out_shape=jax.ShapeDtypeStruct((B, 1), jnp.float32),
        in_specs=[vmem, hbm, hbm, hbm, hbm],
        out_specs=vmem,
        scratch_shapes=[
            pltpu.VMEM((VP, EP), jnp.bfloat16),        # emb
            pltpu.VMEM((w1p.shape[0], HP), jnp.bfloat16),  # w1
            pltpu.VMEM((HP, HP), jnp.bfloat16),        # w2
            pltpu.VMEM((8, HP), jnp.float32),          # packed per-channel vecs
            pltpu.VMEM((B, L * EP), jnp.float32),      # flattened embeddings
            pltpu.SemaphoreType.DMA((4,)),
        ],
    )(ids_lb, emb, w1p, w2p, p)


def make_params(key, vocab_size, embedding_dim, vector_len, hidden_size):
    din = vector_len * embedding_dim
    ks = jax.random.split(key, 7)
    f32 = jnp.float32
    return {
        "embedding": 0.1 * jax.random.normal(ks[0], (vocab_size, embedding_dim), f32),
        # Linear weights stored already transposed: (in, out), y = x @ W + b
        "w1": jax.random.normal(ks[1], (din, hidden_size), f32) / jnp.sqrt(din).astype(f32),
        "b1": 0.01 * jax.random.normal(ks[2], (1, hidden_size), f32),
        "g1": jnp.ones((1, hidden_size), f32),
        "be1": jnp.zeros((1, hidden_size), f32),
        "w2": jax.random.normal(ks[3], (hidden_size, hidden_size), f32) / jnp.sqrt(hidden_size).astype(f32),
        "b2": 0.01 * jax.random.normal(ks[4], (1, hidden_size), f32),
        "g2": jnp.ones((1, hidden_size), f32),
        "be2": jnp.zeros((1, hidden_size), f32),
        "w3": jax.random.normal(ks[5], (hidden_size, 1), f32) / jnp.sqrt(hidden_size).astype(f32),
        "b3": 0.01 * jax.random.normal(ks[6], (1, 1), f32),
    }


def dnn_reference(ids, params):
    """Pure-JAX f32 reference of the PyTorch forward (training-mode BatchNorm),
    including the b1/b2 biases the kernel drops (they cancel exactly)."""
    x = params["embedding"][ids].reshape(ids.shape[0], -1)

    def bn(h, g, b):
        mu = jnp.mean(h, axis=0, keepdims=True)
        var = jnp.mean((h - mu) ** 2, axis=0, keepdims=True)
        return (h - mu) / jnp.sqrt(var + EPS) * g + b

    h = jnp.maximum(bn(x @ params["w1"] + params["b1"], params["g1"], params["be1"]), 0.0)
    h = jnp.maximum(bn(h @ params["w2"] + params["b2"], params["g2"], params["be2"]), 0.0)
    return jax.nn.sigmoid(h @ params["w3"] + params["b3"])


if __name__ == "__main__":
    # small shapes consistent with the module's constructor arguments
    vocab_size, embedding_dim, vector_len, hidden_size = 1000, 32, 16, 64
    batch = 8

    key = jax.random.PRNGKey(0)
    k_ids, k_params = jax.random.split(key)
    ids = jax.random.randint(k_ids, (batch, vector_len), 0, vocab_size, dtype=jnp.int32)
    params = make_params(k_params, vocab_size, embedding_dim, vector_len, hidden_size)
    packed = pack_params(params)

    out = jax.block_until_ready(dnn_forward(ids, packed))
    ref = jax.block_until_ready(dnn_reference(ids, params))

    assert out.shape == (batch, 1), out.shape
    assert jnp.all(jnp.isfinite(out))
    assert jnp.max(jnp.abs(out - ref)) < 5e-3, "mismatch vs JAX reference"

    print("KERNEL_OK")
</pallas_src>

<mosaic_0001>
module attributes {stable_mosaic.version = 11 : i64} {
  func.func @dnn_kernel(%arg0: memref<128x1xi32, #tpu.memory_space<vmem>>, %arg1: memref<1024x128xbf16, #tpu.memory_space<any>>, %arg2: memref<2048x128xbf16, #tpu.memory_space<any>>, %arg3: memref<128x128xbf16, #tpu.memory_space<any>>, %arg4: memref<8x128xf32, #tpu.memory_space<any>>, %arg5: memref<8x1xf32, #tpu.memory_space<vmem>>, %arg6: memref<1024x128xbf16, #tpu.memory_space<vmem>>, %arg7: memref<2048x128xbf16, #tpu.memory_space<vmem>>, %arg8: memref<128x128xbf16, #tpu.memory_space<vmem>>, %arg9: memref<8x128xf32, #tpu.memory_space<vmem>>, %arg10: memref<8x2048xf32, #tpu.memory_space<vmem>>, %arg11: memref<4x!tpu.dma_semaphore, #tpu.memory_space<semaphore_mem>>) attributes {dimension_semantics = [], scalar_prefetch = 0 : i64, scratch_operands = 6 : i64, tpu.core_type = #tpu.core_type<tc>} {
    %c0_i32 = arith.constant 0 : i32
    %0 = tpu.memref_slice %arg11[%c0_i32] : memref<4x!tpu.dma_semaphore, #tpu.memory_space<semaphore_mem>> -> memref<1x!tpu.dma_semaphore, #tpu.memory_space<semaphore_mem>>
    %1 = tpu.memref_squeeze %0 : memref<1x!tpu.dma_semaphore, #tpu.memory_space<semaphore_mem>> -> memref<!tpu.dma_semaphore, #tpu.memory_space<semaphore_mem>>
    tpu.enqueue_dma source(%arg1 : memref<1024x128xbf16, #tpu.memory_space<any>>) target(%arg6 : memref<1024x128xbf16, #tpu.memory_space<vmem>>) target_semaphore(%1 : memref<!tpu.dma_semaphore, #tpu.memory_space<semaphore_mem>>)
    %c1_i32 = arith.constant 1 : i32
    %2 = tpu.memref_slice %arg11[%c1_i32] : memref<4x!tpu.dma_semaphore, #tpu.memory_space<semaphore_mem>> -> memref<1x!tpu.dma_semaphore, #tpu.memory_space<semaphore_mem>>
    %3 = tpu.memref_squeeze %2 : memref<1x!tpu.dma_semaphore, #tpu.memory_space<semaphore_mem>> -> memref<!tpu.dma_semaphore, #tpu.memory_space<semaphore_mem>>
    tpu.enqueue_dma source(%arg2 : memref<2048x128xbf16, #tpu.memory_space<any>>) target(%arg7 : memref<2048x128xbf16, #tpu.memory_space<vmem>>) target_semaphore(%3 : memref<!tpu.dma_semaphore, #tpu.memory_space<semaphore_mem>>)
    %c2_i32 = arith.constant 2 : i32
    %4 = tpu.memref_slice %arg11[%c2_i32] : memref<4x!tpu.dma_semaphore, #tpu.memory_space<semaphore_mem>> -> memref<1x!tpu.dma_semaphore, #tpu.memory_space<semaphore_mem>>
    %5 = tpu.memref_squeeze %4 : memref<1x!tpu.dma_semaphore, #tpu.memory_space<semaphore_mem>> -> memref<!tpu.dma_semaphore, #tpu.memory_space<semaphore_mem>>
    tpu.enqueue_dma source(%arg3 : memref<128x128xbf16, #tpu.memory_space<any>>) target(%arg8 : memref<128x128xbf16, #tpu.memory_space<vmem>>) target_semaphore(%5 : memref<!tpu.dma_semaphore, #tpu.memory_space<semaphore_mem>>)
    %c3_i32 = arith.constant 3 : i32
    %6 = tpu.memref_slice %arg11[%c3_i32] : memref<4x!tpu.dma_semaphore, #tpu.memory_space<semaphore_mem>> -> memref<1x!tpu.dma_semaphore, #tpu.memory_space<semaphore_mem>>
    %7 = tpu.memref_squeeze %6 : memref<1x!tpu.dma_semaphore, #tpu.memory_space<semaphore_mem>> -> memref<!tpu.dma_semaphore, #tpu.memory_space<semaphore_mem>>
    tpu.enqueue_dma source(%arg4 : memref<8x128xf32, #tpu.memory_space<any>>) target(%arg9 : memref<8x128xf32, #tpu.memory_space<vmem>>) target_semaphore(%7 : memref<!tpu.dma_semaphore, #tpu.memory_space<semaphore_mem>>)
    %c0 = arith.constant 0 : index
    %c0_0 = arith.constant 0 : index
    %8 = vector.load %arg0[%c0, %c0_0] : memref<128x1xi32, #tpu.memory_space<vmem>>, vector<128x1xi32>
    %9 = tpu.iota {dimensions = array<i32: 1>} : vector<128x256xi32>
    %c0_i32_1 = arith.constant 0 : i32
    %10 = vector.broadcast %c0_i32_1 : i32 to vector<128x256xi32>
    %11 = arith.addi %9, %10 : vector<128x256xi32>
    %12 = vector.broadcast %8 : vector<128x1xi32> to vector<128x256xi32>
    %13 = arith.cmpi eq, %11, %12 : vector<128x256xi32>
    %14 = arith.extui %13 : vector<128x256xi1> to vector<128x256xi32>
    %15 = arith.sitofp %14 : vector<128x256xi32> to vector<128x256xf32>
    %16 = arith.truncf %15 : vector<128x256xf32> to vector<128x256xbf16>
    %c0_i32_2 = arith.constant 0 : i32
    %17 = tpu.memref_slice %arg11[%c0_i32_2] : memref<4x!tpu.dma_semaphore, #tpu.memory_space<semaphore_mem>> -> memref<1x!tpu.dma_semaphore, #tpu.memory_space<semaphore_mem>>
    %18 = tpu.memref_squeeze %17 : memref<1x!tpu.dma_semaphore, #tpu.memory_space<semaphore_mem>> -> memref<!tpu.dma_semaphore, #tpu.memory_space<semaphore_mem>>
    tpu.wait_dma2 semaphore(%18 : memref<!tpu.dma_semaphore, #tpu.memory_space<semaphore_mem>>) src(%arg1 : memref<1024x128xbf16, #tpu.memory_space<any>>) dst(%arg6 : memref<1024x128xbf16, #tpu.memory_space<vmem>>)
    %c0_3 = arith.constant 0 : index
    %c0_4 = arith.constant 0 : index
    %19 = vector.load %arg6[%c0_3, %c0_4] : memref<1024x128xbf16, #tpu.memory_space<vmem>>, vector<256x128xbf16>
    %cst = arith.constant dense<0.000000e+00> : vector<128x128xf32>
    %20 = tpu.matmul %16, %19, %cst {dimension_numbers = #tpu.dot_dimension_numbers<[1], [0], [0], [1], [0, 0, 1, 1], [], []>} : vector<128x256xbf16>, vector<256x128xbf16>, vector<128x128xf32> -> vector<128x128xf32>
    %21 = tpu.iota {dimensions = array<i32: 1>} : vector<128x256xi32>
    %c256_i32 = arith.constant 256 : i32
    %22 = vector.broadcast %c256_i32 : i32 to vector<128x256xi32>
    %23 = arith.addi %21, %22 : vector<128x256xi32>
    %24 = vector.broadcast %8 : vector<128x1xi32> to vector<128x256xi32>
    %25 = arith.cmpi eq, %23, %24 : vector<128x256xi32>
    %26 = arith.extui %25 : vector<128x256xi1> to vector<128x256xi32>
    %27 = arith.sitofp %26 : vector<128x256xi32> to vector<128x256xf32>
    %28 = arith.truncf %27 : vector<128x256xf32> to vector<128x256xbf16>
    %c256 = arith.constant 256 : index
    %c0_5 = arith.constant 0 : index
    %29 = vector.load %arg6[%c256, %c0_5] : memref<1024x128xbf16, #tpu.memory_space<vmem>>, vector<256x128xbf16>
    %cst_6 = arith.constant dense<0.000000e+00> : vector<128x128xf32>
    %30 = tpu.matmul %28, %29, %cst_6 {dimension_numbers = #tpu.dot_dimension_numbers<[1], [0], [0], [1], [0, 0, 1, 1], [], []>} : vector<128x256xbf16>, vector<256x128xbf16>, vector<128x128xf32> -> vector<128x128xf32>
    %31 = arith.addf %20, %30 : vector<128x128xf32>
    %32 = tpu.iota {dimensions = array<i32: 1>} : vector<128x256xi32>
    %c512_i32 = arith.constant 512 : i32
    %33 = vector.broadcast %c512_i32 : i32 to vector<128x256xi32>
    %34 = arith.addi %32, %33 : vector<128x256xi32>
    %35 = vector.broadcast %8 : vector<128x1xi32> to vector<128x256xi32>
    %36 = arith.cmpi eq, %34, %35 : vector<128x256xi32>
    %37 = arith.extui %36 : vector<128x256xi1> to vector<128x256xi32>
    %38 = arith.sitofp %37 : vector<128x256xi32> to vector<128x256xf32>
    %39 = arith.truncf %38 : vector<128x256xf32> to vector<128x256xbf16>
    %c512 = arith.constant 512 : index
    %c0_7 = arith.constant 0 : index
    %40 = vector.load %arg6[%c512, %c0_7] : memref<1024x128xbf16, #tpu.memory_space<vmem>>, vector<256x128xbf16>
    %cst_8 = arith.constant dense<0.000000e+00> : vector<128x128xf32>
    %41 = tpu.matmul %39, %40, %cst_8 {dimension_numbers = #tpu.dot_dimension_numbers<[1], [0], [0], [1], [0, 0, 1, 1], [], []>} : vector<128x256xbf16>, vector<256x128xbf16>, vector<128x128xf32> -> vector<128x128xf32>
    %42 = arith.addf %31, %41 : vector<128x128xf32>
    %43 = tpu.iota {dimensions = array<i32: 1>} : vector<128x256xi32>
    %c768_i32 = arith.constant 768 : i32
    %44 = vector.broadcast %c768_i32 : i32 to vector<128x256xi32>
    %45 = arith.addi %43, %44 : vector<128x256xi32>
    %46 = vector.broadcast %8 : vector<128x1xi32> to vector<128x256xi32>
    %47 = arith.cmpi eq, %45, %46 : vector<128x256xi32>
    %48 = arith.extui %47 : vector<128x256xi1> to vector<128x256xi32>
    %49 = arith.sitofp %48 : vector<128x256xi32> to vector<128x256xf32>
    %50 = arith.truncf %49 : vector<128x256xf32> to vector<128x256xbf16>
    %c768 = arith.constant 768 : index
    %c0_9 = arith.constant 0 : index
    %51 = vector.load %arg6[%c768, %c0_9] : memref<1024x128xbf16, #tpu.memory_space<vmem>>, vector<256x128xbf16>
    %cst_10 = arith.constant dense<0.000000e+00> : vector<128x128xf32>
    %52 = tpu.matmul %50, %51, %cst_10 {dimension_numbers = #tpu.dot_dimension_numbers<[1], [0], [0], [1], [0, 0, 1, 1], [], []>} : vector<128x256xbf16>, vector<256x128xbf16>, vector<128x128xf32> -> vector<128x128xf32>
    %53 = arith.addf %42, %52 : vector<128x128xf32>
    %54 = vector.extract_strided_slice %53 {offsets = [0, 0], sizes = [8, 128], strides = [1, 1]} : vector<128x128xf32> to vector<8x128xf32>
    %c0_11 = arith.constant 0 : index
    %c0_12 = arith.constant 0 : index
    %55 = vector.load %arg10[%c0_11, %c0_12] : memref<8x2048xf32, #tpu.memory_space<vmem>>, vector<8x128xf32>
    tpu.vector_store %arg10[%c0_11, %c0_12], %54 {strides = array<i32>} : memref<8x2048xf32, #tpu.memory_space<vmem>>, vector<8x128xf32>,
    %56 = vector.extract_strided_slice %53 {offsets = [8, 0], sizes = [8, 128], strides = [1, 1]} : vector<128x128xf32> to vector<8x128xf32>
    %c0_13 = arith.constant 0 : index
    %c128 = arith.constant 128 : index
    %57 = vector.load %arg10[%c0_13, %c128] : memref<8x2048xf32, #tpu.memory_space<vmem>>, vector<8x128xf32>
    tpu.vector_store %arg10[%c0_13, %c128], %56 {strides = array<i32>} : memref<8x2048xf32, #tpu.memory_space<vmem>>, vector<8x128xf32>,
    %58 = vector.extract_strided_slice %53 {offsets = [16, 0], sizes = [8, 128], strides = [1, 1]} : vector<128x128xf32> to vector<8x128xf32>
    %c0_14 = arith.constant 0 : index
    %c256_15 = arith.constant 256 : index
    %59 = vector.load %arg10[%c0_14, %c256_15] : memref<8x2048xf32, #tpu.memory_space<vmem>>, vector<8x128xf32>
    tpu.vector_store %arg10[%c0_14, %c256_15], %58 {strides = array<i32>} : memref<8x2048xf32, #tpu.memory_space<vmem>>, vector<8x128xf32>,
    %60 = vector.extract_strided_slice %53 {offsets = [24, 0], sizes = [8, 128], strides = [1, 1]} : vector<128x128xf32> to vector<8x128xf32>
    %c0_16 = arith.constant 0 : index
    %c384 = arith.constant 384 : index
    %61 = vector.load %arg10[%c0_16, %c384] : memref<8x2048xf32, #tpu.memory_space<vmem>>, vector<8x128xf32>
    tpu.vector_store %arg10[%c0_16, %c384], %60 {strides = array<i32>} : memref<8x2048xf32, #tpu.memory_space<vmem>>, vector<8x128xf32>,
    %62 = vector.extract_strided_slice %53 {offsets = [32, 0], sizes = [8, 128], strides = [1, 1]} : vector<128x128xf32> to vector<8x128xf32>
    %c0_17 = arith.constant 0 : index
    %c512_18 = arith.constant 512 : index
    %63 = vector.load %arg10[%c0_17, %c512_18] : memref<8x2048xf32, #tpu.memory_space<vmem>>, vector<8x128xf32>
    tpu.vector_store %arg10[%c0_17, %c512_18], %62 {strides = array<i32>} : memref<8x2048xf32, #tpu.memory_space<vmem>>, vector<8x128xf32>,
    %64 = vector.extract_strided_slice %53 {offsets = [40, 0], sizes = [8, 128], strides = [1, 1]} : vector<128x128xf32> to vector<8x128xf32>
    %c0_19 = arith.constant 0 : index
    %c640 = arith.constant 640 : index
    %65 = vector.load %arg10[%c0_19, %c640] : memref<8x2048xf32, #tpu.memory_space<vmem>>, vector<8x128xf32>
    tpu.vector_store %arg10[%c0_19, %c640], %64 {strides = array<i32>} : memref<8x2048xf32, #tpu.memory_space<vmem>>, vector<8x128xf32>,
    %66 = vector.extract_strided_slice %53 {offsets = [48, 0], sizes = [8, 128], strides = [1, 1]} : vector<128x128xf32> to vector<8x128xf32>
    %c0_20 = arith.constant 0 : index
    %c768_21 = arith.constant 768 : index
    %67 = vector.load %arg10[%c0_20, %c768_21] : memref<8x2048xf32, #tpu.memory_space<vmem>>, vector<8x128xf32>
    tpu.vector_store %arg10[%c0_20, %c768_21], %66 {strides = array<i32>} : memref<8x2048xf32, #tpu.memory_space<vmem>>, vector<8x128xf32>,
    %68 = vector.extract_strided_slice %53 {offsets = [56, 0], sizes = [8, 128], strides = [1, 1]} : vector<128x128xf32> to vector<8x128xf32>
    %c0_22 = arith.constant 0 : index
    %c896 = arith.constant 896 : index
    %69 = vector.load %arg10[%c0_22, %c896] : memref<8x2048xf32, #tpu.memory_space<vmem>>, vector<8x128xf32>
    tpu.vector_store %arg10[%c0_22, %c896], %68 {strides = array<i32>} : memref<8x2048xf32, #tpu.memory_space<vmem>>, vector<8x128xf32>,
    %70 = vector.extract_strided_slice %53 {offsets = [64, 0], sizes = [8, 128], strides = [1, 1]} : vector<128x128xf32> to vector<8x128xf32>
    %c0_23 = arith.constant 0 : index
    %c1024 = arith.constant 1024 : index
    %71 = vector.load %arg10[%c0_23, %c1024] : memref<8x2048xf32, #tpu.memory_space<vmem>>, vector<8x128xf32>
    tpu.vector_store %arg10[%c0_23, %c1024], %70 {strides = array<i32>} : memref<8x2048xf32, #tpu.memory_space<vmem>>, vector<8x128xf32>,
    %72 = vector.extract_strided_slice %53 {offsets = [72, 0], sizes = [8, 128], strides = [1, 1]} : vector<128x128xf32> to vector<8x128xf32>
    %c0_24 = arith.constant 0 : index
    %c1152 = arith.constant 1152 : index
    %73 = vector.load %arg10[%c0_24, %c1152] : memref<8x2048xf32, #tpu.memory_space<vmem>>, vector<8x128xf32>
    tpu.vector_store %arg10[%c0_24, %c1152], %72 {strides = array<i32>} : memref<8x2048xf32, #tpu.memory_space<vmem>>, vector<8x128xf32>,
    %74 = vector.extract_strided_slice %53 {offsets = [80, 0], sizes = [8, 128], strides = [1, 1]} : vector<128x128xf32> to vector<8x128xf32>
    %c0_25 = arith.constant 0 : index
    %c1280 = arith.constant 1280 : index
    %75 = vector.load %arg10[%c0_25, %c1280] : memref<8x2048xf32, #tpu.memory_space<vmem>>, vector<8x128xf32>
    tpu.vector_store %arg10[%c0_25, %c1280], %74 {strides = array<i32>} : memref<8x2048xf32, #tpu.memory_space<vmem>>, vector<8x128xf32>,
    %76 = vector.extract_strided_slice %53 {offsets = [88, 0], sizes = [8, 128], strides = [1, 1]} : vector<128x128xf32> to vector<8x128xf32>
    %c0_26 = arith.constant 0 : index
    %c1408 = arith.constant 1408 : index
    %77 = vector.load %arg10[%c0_26, %c1408] : memref<8x2048xf32, #tpu.memory_space<vmem>>, vector<8x128xf32>
    tpu.vector_store %arg10[%c0_26, %c1408], %76 {strides = array<i32>} : memref<8x2048xf32, #tpu.memory_space<vmem>>, vector<8x128xf32>,
    %78 = vector.extract_strided_slice %53 {offsets = [96, 0], sizes = [8, 128], strides = [1, 1]} : vector<128x128xf32> to vector<8x128xf32>
    %c0_27 = arith.constant 0 : index
    %c1536 = arith.constant 1536 : index
    %79 = vector.load %arg10[%c0_27, %c1536] : memref<8x2048xf32, #tpu.memory_space<vmem>>, vector<8x128xf32>
    tpu.vector_store %arg10[%c0_27, %c1536], %78 {strides = array<i32>} : memref<8x2048xf32, #tpu.memory_space<vmem>>, vector<8x128xf32>,
    %80 = vector.extract_strided_slice %53 {offsets = [104, 0], sizes = [8, 128], strides = [1, 1]} : vector<128x128xf32> to vector<8x128xf32>
    %c0_28 = arith.constant 0 : index
    %c1664 = arith.constant 1664 : index
    %81 = vector.load %arg10[%c0_28, %c1664] : memref<8x2048xf32, #tpu.memory_space<vmem>>, vector<8x128xf32>
    tpu.vector_store %arg10[%c0_28, %c1664], %80 {strides = array<i32>} : memref<8x2048xf32, #tpu.memory_space<vmem>>, vector<8x128xf32>,
    %82 = vector.extract_strided_slice %53 {offsets = [112, 0], sizes = [8, 128], strides = [1, 1]} : vector<128x128xf32> to vector<8x128xf32>
    %c0_29 = arith.constant 0 : index
    %c1792 = arith.constant 1792 : index
    %83 = vector.load %arg10[%c0_29, %c1792] : memref<8x2048xf32, #tpu.memory_space<vmem>>, vector<8x128xf32>
    tpu.vector_store %arg10[%c0_29, %c1792], %82 {strides = array<i32>} : memref<8x2048xf32, #tpu.memory_space<vmem>>, vector<8x128xf32>,
    %84 = vector.extract_strided_slice %53 {offsets = [120, 0], sizes = [8, 128], strides = [1, 1]} : vector<128x128xf32> to vector<8x128xf32>
    %c0_30 = arith.constant 0 : index
    %c1920 = arith.constant 1920 : index
    %85 = vector.load %arg10[%c0_30, %c1920] : memref<8x2048xf32, #tpu.memory_space<vmem>>, vector<8x128xf32>
    tpu.vector_store %arg10[%c0_30, %c1920], %84 {strides = array<i32>} : memref<8x2048xf32, #tpu.memory_space<vmem>>, vector<8x128xf32>,
    %c1_i32_31 = arith.constant 1 : i32
    %86 = tpu.memref_slice %arg11[%c1_i32_31] : memref<4x!tpu.dma_semaphore, #tpu.memory_space<semaphore_mem>> -> memref<1x!tpu.dma_semaphore, #tpu.memory_space<semaphore_mem>>
    %87 = tpu.memref_squeeze %86 : memref<1x!tpu.dma_semaphore, #tpu.memory_space<semaphore_mem>> -> memref<!tpu.dma_semaphore, #tpu.memory_space<semaphore_mem>>
    tpu.wait_dma2 semaphore(%87 : memref<!tpu.dma_semaphore, #tpu.memory_space<semaphore_mem>>) src(%arg2 : memref<2048x128xbf16, #tpu.memory_space<any>>) dst(%arg7 : memref<2048x128xbf16, #tpu.memory_space<vmem>>)
    %c0_32 = arith.constant 0 : index
    %c0_33 = arith.constant 0 : index
    %88 = vector.load %arg10[%c0_32, %c0_33] : memref<8x2048xf32, #tpu.memory_space<vmem>>, vector<8x2048xf32>
    %89 = arith.truncf %88 : vector<8x2048xf32> to vector<8x2048xbf16>
    %c0_34 = arith.constant 0 : index
    %c0_35 = arith.constant 0 : index
    %90 = vector.load %arg7[%c0_34, %c0_35] : memref<2048x128xbf16, #tpu.memory_space<vmem>>, vector<2048x128xbf16>
    %cst_36 = arith.constant dense<0.000000e+00> : vector<8x128xf32>
    %91 = tpu.matmul %89, %90, %cst_36 {dimension_numbers = #tpu.dot_dimension_numbers<[1], [0], [0], [1], [0, 0, 1, 1], [], []>} : vector<8x2048xbf16>, vector<2048x128xbf16>, vector<8x128xf32> -> vector<8x128xf32>
    %c3_i32_37 = arith.constant 3 : i32
    %92 = tpu.memref_slice %arg11[%c3_i32_37] : memref<4x!tpu.dma_semaphore, #tpu.memory_space<semaphore_mem>> -> memref<1x!tpu.dma_semaphore, #tpu.memory_space<semaphore_mem>>
    %93 = tpu.memref_squeeze %92 : memref<1x!tpu.dma_semaphore, #tpu.memory_space<semaphore_mem>> -> memref<!tpu.dma_semaphore, #tpu.memory_space<semaphore_mem>>
    tpu.wait_dma2 semaphore(%93 : memref<!tpu.dma_semaphore, #tpu.memory_space<semaphore_mem>>) src(%arg4 : memref<8x128xf32, #tpu.memory_space<any>>) dst(%arg9 : memref<8x128xf32, #tpu.memory_space<vmem>>)
    %c0_38 = arith.constant 0 : index
    %c0_39 = arith.constant 0 : index
    %94 = vector.load %arg9[%c0_38, %c0_39] : memref<8x128xf32, #tpu.memory_space<vmem>>, vector<1x128xf32>
    %c1 = arith.constant 1 : index
    %c0_40 = arith.constant 0 : index
    %95 = vector.load %arg9[%c1, %c0_40] : memref<8x128xf32, #tpu.memory_space<vmem>>, vector<1x128xf32>
    %cst_41 = arith.constant dense<0.000000e+00> : vector<128xf32>
    %96 = vector.multi_reduction <add>, %91, %cst_41 [0] : vector<8x128xf32> to vector<128xf32>
    %97 = vector.shape_cast %96 : vector<128xf32> to vector<1x128xf32>
    %cst_42 = arith.constant 8.000000e+00 : f32
    %98 = vector.broadcast %cst_42 : f32 to vector<1x128xf32>
    %99 = arith.divf %97, %98 : vector<1x128xf32>
    %100 = arith.mulf %91, %91 : vector<8x128xf32>
    %cst_43 = arith.constant dense<0.000000e+00> : vector<128xf32>
    %101 = vector.multi_reduction <add>, %100, %cst_43 [0] : vector<8x128xf32> to vector<128xf32>
    %102 = vector.shape_cast %101 : vector<128xf32> to vector<1x128xf32>
    %cst_44 = arith.constant 8.000000e+00 : f32
    %103 = vector.broadcast %cst_44 : f32 to vector<1x128xf32>
    %104 = arith.divf %102, %103 : vector<1x128xf32>
    %105 = arith.mulf %99, %99 : vector<1x128xf32>
    %106 = arith.subf %104, %105 : vector<1x128xf32>
    %cst_45 = arith.constant 0.000000e+00 : f32
    %107 = vector.broadcast %cst_45 : f32 to vector<1x128xf32>
    %108 = arith.maximumf %106, %107 : vector<1x128xf32>
    %cst_46 = arith.constant 9.99999974E-6 : f32
    %109 = vector.broadcast %cst_46 : f32 to vector<1x128xf32>
    %110 = arith.addf %108, %109 : vector<1x128xf32>
    %111 = math.rsqrt %110 : vector<1x128xf32>
    %112 = arith.mulf %94, %111 : vector<1x128xf32>
    %113 = arith.mulf %99, %112 : vector<1x128xf32>
    %114 = arith.subf %95, %113 : vector<1x128xf32>
    %115 = vector.broadcast %112 : vector<1x128xf32> to vector<8x128xf32>
    %116 = arith.mulf %91, %115 : vector<8x128xf32>
    %117 = vector.broadcast %114 : vector<1x128xf32> to vector<8x128xf32>
    %118 = arith.addf %116, %117 : vector<8x128xf32>
    %cst_47 = arith.constant 0.000000e+00 : f32
    %119 = vector.broadcast %cst_47 : f32 to vector<8x128xf32>
    %120 = arith.maximumf %118, %119 : vector<8x128xf32>
    %c2_i32_48 = arith.constant 2 : i32
    %121 = tpu.memref_slice %arg11[%c2_i32_48] : memref<4x!tpu.dma_semaphore, #tpu.memory_space<semaphore_mem>> -> memref<1x!tpu.dma_semaphore, #tpu.memory_space<semaphore_mem>>
    %122 = tpu.memref_squeeze %121 : memref<1x!tpu.dma_semaphore, #tpu.memory_space<semaphore_mem>> -> memref<!tpu.dma_semaphore, #tpu.memory_space<semaphore_mem>>
    tpu.wait_dma2 semaphore(%122 : memref<!tpu.dma_semaphore, #tpu.memory_space<semaphore_mem>>) src(%arg3 : memref<128x128xbf16, #tpu.memory_space<any>>) dst(%arg8 : memref<128x128xbf16, #tpu.memory_space<vmem>>)
    %123 = arith.truncf %120 : vector<8x128xf32> to vector<8x128xbf16>
    %c0_49 = arith.constant 0 : index
    %c0_50 = arith.constant 0 : index
    %124 = vector.load %arg8[%c0_49, %c0_50] : memref<128x128xbf16, #tpu.memory_space<vmem>>, vector<128x128xbf16>
    %cst_51 = arith.constant dense<0.000000e+00> : vector<8x128xf32>
    %125 = tpu.matmul %123, %124, %cst_51 {dimension_numbers = #tpu.dot_dimension_numbers<[1], [0], [0], [1], [0, 0, 1, 1], [], []>} : vector<8x128xbf16>, vector<128x128xbf16>, vector<8x128xf32> -> vector<8x128xf32>
    %c2 = arith.constant 2 : index
    %c0_52 = arith.constant 0 : index
    %126 = vector.load %arg9[%c2, %c0_52] : memref<8x128xf32, #tpu.memory_space<vmem>>, vector<1x128xf32>
    %c3 = arith.constant 3 : index
    %c0_53 = arith.constant 0 : index
    %127 = vector.load %arg9[%c3, %c0_53] : memref<8x128xf32, #tpu.memory_space<vmem>>, vector<1x128xf32>
    %cst_54 = arith.constant dense<0.000000e+00> : vector<128xf32>
    %128 = vector.multi_reduction <add>, %125, %cst_54 [0] : vector<8x128xf32> to vector<128xf32>
    %129 = vector.shape_cast %128 : vector<128xf32> to vector<1x128xf32>
    %cst_55 = arith.constant 8.000000e+00 : f32
    %130 = vector.broadcast %cst_55 : f32 to vector<1x128xf32>
    %131 = arith.divf %129, %130 : vector<1x128xf32>
    %132 = arith.mulf %125, %125 : vector<8x128xf32>
    %cst_56 = arith.constant dense<0.000000e+00> : vector<128xf32>
    %133 = vector.multi_reduction <add>, %132, %cst_56 [0] : vector<8x128xf32> to vector<128xf32>
    %134 = vector.shape_cast %133 : vector<128xf32> to vector<1x128xf32>
    %cst_57 = arith.constant 8.000000e+00 : f32
    %135 = vector.broadcast %cst_57 : f32 to vector<1x128xf32>
    %136 = arith.divf %134, %135 : vector<1x128xf32>
    %137 = arith.mulf %131, %131 : vector<1x128xf32>
    %138 = arith.subf %136, %137 : vector<1x128xf32>
    %cst_58 = arith.constant 0.000000e+00 : f32
    %139 = vector.broadcast %cst_58 : f32 to vector<1x128xf32>
    %140 = arith.maximumf %138, %139 : vector<1x128xf32>
    %cst_59 = arith.constant 9.99999974E-6 : f32
    %141 = vector.broadcast %cst_59 : f32 to vector<1x128xf32>
    %142 = arith.addf %140, %141 : vector<1x128xf32>
    %143 = math.rsqrt %142 : vector<1x128xf32>
    %144 = arith.mulf %126, %143 : vector<1x128xf32>
    %145 = arith.mulf %131, %144 : vector<1x128xf32>
    %146 = arith.subf %127, %145 : vector<1x128xf32>
    %147 = vector.broadcast %144 : vector<1x128xf32> to vector<8x128xf32>
    %148 = arith.mulf %125, %147 : vector<8x128xf32>
    %149 = vector.broadcast %146 : vector<1x128xf32> to vector<8x128xf32>
    %150 = arith.addf %148, %149 : vector<8x128xf32>
    %cst_60 = arith.constant 0.000000e+00 : f32
    %151 = vector.broadcast %cst_60 : f32 to vector<8x128xf32>
    %152 = arith.maximumf %150, %151 : vector<8x128xf32>
    %c4 = arith.constant 4 : index
    %c0_61 = arith.constant 0 : index
    %153 = vector.load %arg9[%c4, %c0_61] : memref<8x128xf32, #tpu.memory_space<vmem>>, vector<1x128xf32>
    %154 = vector.broadcast %153 : vector<1x128xf32> to vector<8x128xf32>
    %155 = arith.mulf %152, %154 : vector<8x128xf32>
    %cst_62 = arith.constant dense<0.000000e+00> : vector<8xf32>
    %156 = vector.multi_reduction <add>, %155, %cst_62 [1] : vector<8x128xf32> to vector<8xf32>
    %157 = vector.shape_cast %156 : vector<8xf32> to vector<8x1xf32>
    %c5 = arith.constant 5 : index
    %c0_63 = arith.constant 0 : index
    %158 = vector.load %arg9[%c5, %c0_63] : memref<8x128xf32, #tpu.memory_space<vmem>>, vector<1x1xf32>
    %159 = vector.broadcast %158 : vector<1x1xf32> to vector<8x1xf32>
    %160 = arith.addf %157, %159 : vector<8x1xf32>
    %161 = arith.negf %160 : vector<8x1xf32>
    %162 = math.exp %161 : vector<8x1xf32>
    %cst_64 = arith.constant 1.000000e+00 : f32
    %163 = vector.broadcast %cst_64 : f32 to vector<8x1xf32>
    %164 = arith.addf %163, %162 : vector<8x1xf32>
    %165 = arith.divf %163, %164 : vector<8x1xf32>
    %c0_65 = arith.constant 0 : index
    %c0_66 = arith.constant 0 : index
    %166 = vector.load %arg5[%c0_65, %c0_66] : memref<8x1xf32, #tpu.memory_space<vmem>>, vector<8x1xf32>
    tpu.vector_store %arg5[%c0_65, %c0_66], %165 {strides = array<i32>} : memref<8x1xf32, #tpu.memory_space<vmem>>, vector<8x1xf32>,
    return
  }
}

</mosaic_0001>

<llo_original>
// kernel: dnn_forward.1
$region0: #{dnn_forward.1}
  #allocation0 [shape = 'u32[]', space=smem, size = 0x4, offset = 0x4, fixed_abs, tag = 'smem constant byte address 0x4 - core index']
  #allocation1 [shape = 'u32[144,128]{1,0:T(1,128)}', space=vmem, size = 0x12000, scoped, tag = 'internal scratch']
  #allocation2 [shape = 'bf16[1024,128]{1,0:T(8,128)(2,1)}', space=vmem, size = 0x40000, scoped, tag = 'scratch operand']
  #allocation3 [shape = 'bf16[2048,128]{1,0:T(8,128)(2,1)}', space=vmem, size = 0x80000, scoped, tag = 'scratch operand']
  #allocation4 [shape = 'bf16[128,128]{1,0:T(8,128)(2,1)}', space=vmem, size = 0x8000, scoped, tag = 'scratch operand']
  #allocation5 [shape = 'f32[8,128]{1,0:T(8,128)}', space=vmem, size = 0x1000, scoped, tag = 'scratch operand']
  #allocation6 [shape = 'f32[8,2048]{1,0:T(8,128)}', space=vmem, size = 0x10000, scoped, tag = 'scratch operand']
  #allocation7 [shape = 's32[4]{0}', space=sflag, size = 0x10, scoped, tag = 'scratch operand']
  #allocation8 [shape = 's32[]', space=sflag, size = 0x4, offset = 0, fixed_abs, tag = 'sflag constant byte address 0x0 - dummy sync flag']
  #allocation9 [shape = 's32[]', space=sflag, size = 0x4, offset = 0, fixed_abs, tag = 'sflag constant byte address 0x0 - dummy sync flag']
  #allocation10 [shape = 'u32[]', space=smem, size = 0x4, offset = 0x44, fixed_abs, tag = 'smem constant byte address 0x44 - assertion arg 0']
  #allocation11 [shape = 'u32[]', space=smem, size = 0x4, offset = 0x48, fixed_abs, tag = 'smem constant byte address 0x48 - assertion arg 1']
  #allocation12 [shape = 's32[]', space=sflag, size = 0x4, offset = 0, fixed_abs, tag = 'sflag constant byte address 0x0 - dummy sync flag']
  #allocation13 [shape = 's32[]', space=sflag, size = 0x4, offset = 0, fixed_abs, tag = 'sflag constant byte address 0x0 - dummy sync flag']
  #allocation14 [shape = 's32[]', space=sflag, size = 0x4, offset = 0, fixed_abs, tag = 'sflag constant byte address 0x0 - dummy sync flag']
  #allocation15 [shape = 's32[]', space=sflag, size = 0x4, offset = 0, fixed_abs, tag = 'sflag constant byte address 0x0 - dummy sync flag']
  %s0 = inlined_call_operand.vmem [shape: s32[128,1], index: 0, kind: input, shape index: {}]
  %s1 = inlined_call_operand.hbm [shape: bf16[1024,128], index: 1, kind: input, shape index: {}]
  %s2 = inlined_call_operand.hbm [shape: bf16[2048,128], index: 2, kind: input, shape index: {}]
  %s3 = inlined_call_operand.vmem [shape: bf16[128,128], index: 3, kind: input, shape index: {}]
  %s4 = inlined_call_operand.vmem [shape: f32[8,128], index: 4, kind: input, shape index: {}]
  %s5 = inlined_call_operand.vmem [shape: f32[8,1], index: 5, kind: output, shape index: {}]
  %s6 = sld [smem:[#allocation0]]
  $region90: #{dnn_forward.1} parent=0
    _
  %s8 = ssub.s32 1, %s6
  %s9 = scalar_select 0, %s8, %s6
  // Predicated region
  $region2: #{dnn_forward.1} parent=0 // pred_check
    _
  $region3: #{dnn_forward.1} parent=0 // pred_check_branch
    %11 = sbr.rel (0) target = $region5
  $region4: #{dnn_forward.1} parent=0 // pred_region
    _
  $region5: #{dnn_forward.1} parent=0 // pred_fallthru
    _
  // Predicated region
  $region6: #{dnn_forward.1} parent=0 // pred_check
    _
  $region7: #{dnn_forward.1} parent=0 // pred_check_branch
    %14 = sbr.rel target = $region9
  $region8: #{dnn_forward.1} parent=0 // pred_region
    %15 = sst [smem:[#allocation10]] [#allocation9]
    %16 = sst [smem:[#allocation11]] [#allocation8]
  $region9: #{dnn_forward.1} parent=0 // pred_fallthru
    _
  %18 = shalt.err (0)
  %s20 = sshll.u32 [#allocation2], 4
  %s21 = int_to_ptr.vmem [resolvable:$true] %s20
  %23 = dma.hbm_to_vmem [thread:$0]  %s1, 8192, %s21, [#allocation7]
  %s24 = scalar_lea.sflag [#allocation7], 1
  // Predicated region
  $region10: #{dnn_forward.1} parent=0 // pred_check
    _
  $region11: #{dnn_forward.1} parent=0 // pred_check_branch
    %26 = sbr.rel target = $region13
  $region12: #{dnn_forward.1} parent=0 // pred_region
    %27 = sst [smem:[#allocation10]] [#allocation13]
    %28 = sst [smem:[#allocation11]] [#allocation12]
  $region13: #{dnn_forward.1} parent=0 // pred_fallthru
    _
  %30 = shalt.err (0)
  %s32 = sshll.u32 [#allocation3], 4
  %s33 = int_to_ptr.vmem [resolvable:$true] %s32
  %35 = dma.hbm_to_vmem [thread:$0]  %s2, 16384, %s33, %s24
  %s36 = scalar_lea.sflag [#allocation7], 2
  %p38 = scmp.lt.u32.totalorder 64, 8
  %p39 = pneg %p38
  // Predicated region
  $region14: #{dnn_forward.1} parent=0 // pred_check
    _
  $region15: #{dnn_forward.1} parent=0 // pred_check_branch
    %41 = sbr.rel (%p38) target = $region17
  $region16: #{dnn_forward.1} parent=0 // pred_region
    %s57 = sand.u32 64, 7
    %p58 = scmp.eq.s32.totalorder %s57, 0
    // Predicated region
    $region29: #{dnn_forward.1} parent=16 // pred_check
      %p59 = pneg %p58
    $region30: #{dnn_forward.1} parent=16 // pred_check_branch
      %61 = sbr.rel (%p59) target = $region32
    $region31: #{dnn_forward.1} parent=16 // pred_region
      loop: start=0, step=1, limit=1
      $region33: #{dnn_forward.1} parent=31 // loop_pre_header
        _
      $region34: #{dnn_forward.1} parent=31 // loop_header
        %s63 = sphi 0, %s67
        %p64 = scmp.ge.s32.totalorder %s63, 1
        %s68 = sphi %s3, %s3
        %s69 = sphi [#allocation4], [#allocation4]
      $region35: #{dnn_forward.1} parent=31 // loop_header_branch
        %66 = sbr.rel (%p64) target = $region39
      $region36: #{dnn_forward.1} parent=31 // loop_body
        %v70 = vld [vmem:[%s68] sm:$0xff]
        %71 = vst [vmem:[%s69] sm:$0xff] %v70
        %v72 = vld [vmem:[%s68 + $0x8] sm:$0xff]
        %73 = vst [vmem:[%s69 + $0x8] sm:$0xff] %v72
        %v74 = vld [vmem:[%s68 + $0x10] sm:$0xff]
        %75 = vst [vmem:[%s69 + $0x10] sm:$0xff] %v74
        %v76 = vld [vmem:[%s68 + $0x18] sm:$0xff]
        %77 = vst [vmem:[%s69 + $0x18] sm:$0xff] %v76
        %v78 = vld [vmem:[%s68 + $0x20] sm:$0xff]
        %79 = vst [vmem:[%s69 + $0x20] sm:$0xff] %v78
        %v80 = vld [vmem:[%s68 + $0x28] sm:$0xff]
        %81 = vst [vmem:[%s69 + $0x28] sm:$0xff] %v80
        %v82 = vld [vmem:[%s68 + $0x30] sm:$0xff]
        %83 = vst [vmem:[%s69 + $0x30] sm:$0xff] %v82
        %v84 = vld [vmem:[%s68 + $0x38] sm:$0xff]
        %85 = vst [vmem:[%s69 + $0x38] sm:$0xff] %v84
      $region37: #{dnn_forward.1} parent=31 // loop_footer
        %s67 = sadd.s32 1, %s63
      $region38: #{dnn_forward.1} parent=31 // loop_footer_branch
        %62 = sbr.rel target = $region34
      $region39: #{dnn_forward.1} parent=31 // loop_exit
        _
    $region32: #{dnn_forward.1} parent=16 // pred_fallthru
      _
    %p86 = pneg %p58
    // Predicated region
    $region40: #{dnn_forward.1} parent=16 // pred_check
      _
    $region41: #{dnn_forward.1} parent=16 // pred_check_branch
      %88 = sbr.rel (%p58) target = $region43
    $region42: #{dnn_forward.1} parent=16 // pred_region
      %s89 = sand.u32 64, 7
    $region43: #{dnn_forward.1} parent=16 // pred_fallthru
      _
  $region17: #{dnn_forward.1} parent=0 // pred_fallthru
    _
  // Predicated region
  $region18: #{dnn_forward.1} parent=0 // pred_check
    %p42 = pneg %p38
  $region19: #{dnn_forward.1} parent=0 // pred_check_branch
    %44 = sbr.rel (%p42) target = $region21
  $region20: #{dnn_forward.1} parent=0 // pred_region
    %s45 = sshll.u32 1, 64
    %s46 = ssub.s32 %s45, 1
    loop: start=0, step=1, limit=1
    $region22: #{dnn_forward.1} parent=20 // loop_pre_header
      _
    $region23: #{dnn_forward.1} parent=20 // loop_header
      %s48 = sphi 0, %s52
      %p49 = scmp.ge.s32.totalorder %s48, 1
      %s53 = sphi %s3, %s3
      %s54 = sphi [#allocation4], [#allocation4]
    $region24: #{dnn_forward.1} parent=20 // loop_header_branch
      %51 = sbr.rel (%p49) target = $region28
    $region25: #{dnn_forward.1} parent=20 // loop_body
      %v55 = vld [vmem:[%s53] sm:%s46]
      %56 = vst [vmem:[%s54] sm:%s46] %v55
    $region26: #{dnn_forward.1} parent=20 // loop_footer
      %s52 = sadd.s32 1, %s48
    $region27: #{dnn_forward.1} parent=20 // loop_footer_branch
      %47 = sbr.rel target = $region23
    $region28: #{dnn_forward.1} parent=20 // loop_exit
      _
  $region21: #{dnn_forward.1} parent=0 // pred_fallthru
    _
  // Predicated region
  $region44: #{dnn_forward.1} parent=0 // pred_check
    _
  $region45: #{dnn_forward.1} parent=0 // pred_check_branch
    %92 = sbr.rel (0) target = $region47
  $region46: #{dnn_forward.1} parent=0 // pred_region
    %93 = vsyncadd %s36, 1024
  $region47: #{dnn_forward.1} parent=0 // pred_fallthru
    _
  %s94 = scalar_lea.sflag [#allocation7], 3
  %p96 = scmp.lt.u32.totalorder 8, 8
  %p97 = pneg %p96
  // Predicated region
  $region48: #{dnn_forward.1} parent=0 // pred_check
    _
  $region49: #{dnn_forward.1} parent=0 // pred_check_branch
    %99 = sbr.rel (%p96) target = $region51
  $region50: #{dnn_forward.1} parent=0 // pred_region
    %s115 = sand.u32 8, 7
    %p116 = scmp.eq.s32.totalorder %s115, 0
    // Predicated region
    $region63: #{dnn_forward.1} parent=50 // pred_check
      %p117 = pneg %p116
    $region64: #{dnn_forward.1} parent=50 // pred_check_branch
      %119 = sbr.rel (%p117) target = $region66
    $region65: #{dnn_forward.1} parent=50 // pred_region
      loop: start=0, step=1, limit=1
      $region67: #{dnn_forward.1} parent=65 // loop_pre_header
        _
      $region68: #{dnn_forward.1} parent=65 // loop_header
        %s121 = sphi 0, %s125
        %p122 = scmp.ge.s32.totalorder %s121, 1
        %s126 = sphi %s4, %s4
        %s127 = sphi [#allocation5], [#allocation5]
      $region69: #{dnn_forward.1} parent=65 // loop_header_branch
        %124 = sbr.rel (%p122) target = $region73
      $region70: #{dnn_forward.1} parent=65 // loop_body
        %v128 = vld [vmem:[%s126] sm:$0xff]
        %129 = vst [vmem:[%s127] sm:$0xff] %v128
      $region71: #{dnn_forward.1} parent=65 // loop_footer
        %s125 = sadd.s32 1, %s121
      $region72: #{dnn_forward.1} parent=65 // loop_footer_branch
        %120 = sbr.rel target = $region68
      $region73: #{dnn_forward.1} parent=65 // loop_exit
        _
    $region66: #{dnn_forward.1} parent=50 // pred_fallthru
      _
    %p130 = pneg %p116
    // Predicated region
    $region74: #{dnn_forward.1} parent=50 // pred_check
      _
    $region75: #{dnn_forward.1} parent=50 // pred_check_branch
      %132 = sbr.rel (%p116) target = $region77
    $region76: #{dnn_forward.1} parent=50 // pred_region
      %s133 = sand.u32 8, 7
    $region77: #{dnn_forward.1} parent=50 // pred_fallthru
      _
  $region51: #{dnn_forward.1} parent=0 // pred_fallthru
    _
  // Predicated region
  $region52: #{dnn_forward.1} parent=0 // pred_check
    %p100 = pneg %p96
  $region53: #{dnn_forward.1} parent=0 // pred_check_branch
    %102 = sbr.rel (%p100) target = $region55
  $region54: #{dnn_forward.1} parent=0 // pred_region
    %s103 = sshll.u32 1, 8
    %s104 = ssub.s32 %s103, 1
    loop: start=0, step=1, limit=1
    $region56: #{dnn_forward.1} parent=54 // loop_pre_header
      _
    $region57: #{dnn_forward.1} parent=54 // loop_header
      %s106 = sphi 0, %s110
      %p107 = scmp.ge.s32.totalorder %s106, 1
      %s111 = sphi %s4, %s4
      %s112 = sphi [#allocation5], [#allocation5]
    $region58: #{dnn_forward.1} parent=54 // loop_header_branch
      %109 = sbr.rel (%p107) target = $region62
    $region59: #{dnn_forward.1} parent=54 // loop_body
      %v113 = vld [vmem:[%s111] sm:%s104]
      %114 = vst [vmem:[%s112] sm:%s104] %v113
    $region60: #{dnn_forward.1} parent=54 // loop_footer
      %s110 = sadd.s32 1, %s106
    $region61: #{dnn_forward.1} parent=54 // loop_footer_branch
      %105 = sbr.rel target = $region57
    $region62: #{dnn_forward.1} parent=54 // loop_exit
      _
  $region55: #{dnn_forward.1} parent=0 // pred_fallthru
    _
  // Predicated region
  $region78: #{dnn_forward.1} parent=0 // pred_check
    _
  $region79: #{dnn_forward.1} parent=0 // pred_check_branch
    %136 = sbr.rel (0) target = $region81
  $region80: #{dnn_forward.1} parent=0 // pred_region
    %137 = vsyncadd %s94, 128
  $region81: #{dnn_forward.1} parent=0 // pred_fallthru
    _
  %v138 = vld [vmem:[%s0] sm:$0xff]
  %v139 = vld [vmem:[%s0 + $0x8] sm:$0xff]
  %v140 = vld [vmem:[%s0 + $0x10] sm:$0xff]
  %v141 = vld [vmem:[%s0 + $0x18] sm:$0xff]
  %v142 = vld [vmem:[%s0 + $0x20] sm:$0xff]
  %v143 = vld [vmem:[%s0 + $0x28] sm:$0xff]
  %v144 = vld [vmem:[%s0 + $0x30] sm:$0xff]
  %v145 = vld [vmem:[%s0 + $0x38] sm:$0xff]
  %v146 = vld [vmem:[%s0 + $0x40] sm:$0xff]
  %v147 = vld [vmem:[%s0 + $0x48] sm:$0xff]
  %v148 = vld [vmem:[%s0 + $0x50] sm:$0xff]
  %v149 = vld [vmem:[%s0 + $0x58] sm:$0xff]
  %v150 = vld [vmem:[%s0 + $0x60] sm:$0xff]
  %v151 = vld [vmem:[%s0 + $0x68] sm:$0xff]
  %v152 = vld [vmem:[%s0 + $0x70] sm:$0xff]
  %v153 = vld [vmem:[%s0 + $0x78] sm:$0xff]
  %v154 = vlaneseq
  %v155 = vand.u32 %v154, 127
  %v156 = vadd.s32 %v155, 128
  %157 = vset.pattern.permute.xlu0 0
  %158 = vperm.xlu0 %157, %v138
  %v159 = vpop.permute.xlu0 %158
  %160 = vset.pattern.permute.xlu0 0
  %161 = vperm.xlu0 %160, %v139
  %v162 = vpop.permute.xlu0 %161
  %163 = vset.pattern.permute.xlu0 0
  %164 = vperm.xlu0 %163, %v140
  %v165 = vpop.permute.xlu0 %164
  %166 = vset.pattern.permute.xlu0 0
  %167 = vperm.xlu0 %166, %v141
  %v168 = vpop.permute.xlu0 %167
  %169 = vset.pattern.permute.xlu0 0
  %170 = vperm.xlu0 %169, %v142
  %v171 = vpop.permute.xlu0 %170
  %172 = vset.pattern.permute.xlu0 0
  %173 = vperm.xlu0 %172, %v143
  %v174 = vpop.permute.xlu0 %173
  %175 = vset.pattern.permute.xlu0 0
  %176 = vperm.xlu0 %175, %v144
  %v177 = vpop.permute.xlu0 %176
  %178 = vset.pattern.permute.xlu0 0
  %179 = vperm.xlu0 %178, %v145
  %v180 = vpop.permute.xlu0 %179
  %181 = vset.pattern.permute.xlu0 0
  %182 = vperm.xlu0 %181, %v146
  %v183 = vpop.permute.xlu0 %182
  %184 = vset.pattern.permute.xlu0 0
  %185 = vperm.xlu0 %184, %v147
  %v186 = vpop.permute.xlu0 %185
  %187 = vset.pattern.permute.xlu0 0
  %188 = vperm.xlu0 %187, %v148
  %v189 = vpop.permute.xlu0 %188
  %190 = vset.pattern.permute.xlu0 0
  %191 = vperm.xlu0 %190, %v149
  %v192 = vpop.permute.xlu0 %191
  %193 = vset.pattern.permute.xlu0 0
  %194 = vperm.xlu0 %193, %v150
  %v195 = vpop.permute.xlu0 %194
  %196 = vset.pattern.permute.xlu0 0
  %197 = vperm.xlu0 %196, %v151
  %v198 = vpop.permute.xlu0 %197
  %199 = vset.pattern.permute.xlu0 0
  %200 = vperm.xlu0 %199, %v152
  %v201 = vpop.permute.xlu0 %200
  %202 = vset.pattern.permute.xlu0 0
  %203 = vperm.xlu0 %202, %v153
  %v204 = vpop.permute.xlu0 %203
  %vm205 = vcmp.eq.s32.totalorder %v155, %v159
  %vm206 = vcmp.eq.s32.totalorder %v156, %v159
  %vm207 = vcmp.eq.s32.totalorder %v155, %v162
  %vm208 = vcmp.eq.s32.totalorder %v156, %v162
  %vm209 = vcmp.eq.s32.totalorder %v155, %v165
  %vm210 = vcmp.eq.s32.totalorder %v156, %v165
  %vm211 = vcmp.eq.s32.totalorder %v155, %v168
  %vm212 = vcmp.eq.s32.totalorder %v156, %v168
  %vm213 = vcmp.eq.s32.totalorder %v155, %v171
  %vm214 = vcmp.eq.s32.totalorder %v156, %v171
  %vm215 = vcmp.eq.s32.totalorder %v155, %v174
  %vm216 = vcmp.eq.s32.totalorder %v156, %v174
  %vm217 = vcmp.eq.s32.totalorder %v155, %v177
  %vm218 = vcmp.eq.s32.totalorder %v156, %v177
  %vm219 = vcmp.eq.s32.totalorder %v155, %v180
  %vm220 = vcmp.eq.s32.totalorder %v156, %v180
  %vm221 = vcmp.eq.s32.totalorder %v155, %v183
  %vm222 = vcmp.eq.s32.totalorder %v156, %v183
  %vm223 = vcmp.eq.s32.totalorder %v155, %v186
  %vm224 = vcmp.eq.s32.totalorder %v156, %v186
  %vm225 = vcmp.eq.s32.totalorder %v155, %v189
  %vm226 = vcmp.eq.s32.totalorder %v156, %v189
  %vm227 = vcmp.eq.s32.totalorder %v155, %v192
  %vm228 = vcmp.eq.s32.totalorder %v156, %v192
  %vm229 = vcmp.eq.s32.totalorder %v155, %v195
  %vm230 = vcmp.eq.s32.totalorder %v156, %v195
  %vm231 = vcmp.eq.s32.totalorder %v155, %v198
  %vm232 = vcmp.eq.s32.totalorder %v156, %v198
  %vm233 = vcmp.eq.s32.totalorder %v155, %v201
  %vm234 = vcmp.eq.s32.totalorder %v156, %v201
  %vm235 = vcmp.eq.s32.totalorder %v155, %v204
  %vm236 = vcmp.eq.s32.totalorder %v156, %v204
  %v237 = vsel %vm205, 1, 0
  %v238 = vsel %vm206, 1, 0
  %v239 = vsel %vm207, 1, 0
  %v240 = vsel %vm208, 1, 0
  %v241 = vsel %vm209, 1, 0
  %v242 = vsel %vm210, 1, 0
  %v243 = vsel %vm211, 1, 0
  %v244 = vsel %vm212, 1, 0
  %v245 = vsel %vm213, 1, 0
  %v246 = vsel %vm214, 1, 0
  %v247 = vsel %vm215, 1, 0
  %v248 = vsel %vm216, 1, 0
  %v249 = vsel %vm217, 1, 0
  %v250 = vsel %vm218, 1, 0
  %v251 = vsel %vm219, 1, 0
  %v252 = vsel %vm220, 1, 0
  %v253 = vsel %vm221, 1, 0
  %v254 = vsel %vm222, 1, 0
  %v255 = vsel %vm223, 1, 0
  %v256 = vsel %vm224, 1, 0
  %v257 = vsel %vm225, 1, 0
  %v258 = vsel %vm226, 1, 0
  %v259 = vsel %vm227, 1, 0
  %v260 = vsel %vm228, 1, 0
  %v261 = vsel %vm229, 1, 0
  %v262 = vsel %vm230, 1, 0
  %v263 = vsel %vm231, 1, 0
  %v264 = vsel %vm232, 1, 0
  %v265 = vsel %vm233, 1, 0
  %v266 = vsel %vm234, 1, 0
  %v267 = vsel %vm235, 1, 0
  %v268 = vsel %vm236, 1, 0
  %v269 = vcvt.s32.f32 %v237
  %v270 = vcvt.s32.f32 %v238
  %v271 = vcvt.s32.f32 %v239
  %v272 = vcvt.s32.f32 %v240
  %v273 = vcvt.s32.f32 %v241
  %v274 = vcvt.s32.f32 %v242
  %v275 = vcvt.s32.f32 %v243
  %v276 = vcvt.s32.f32 %v244
  %v277 = vcvt.s32.f32 %v245
  %v278 = vcvt.s32.f32 %v246
  %v279 = vcvt.s32.f32 %v247
  %v280 = vcvt.s32.f32 %v248
  %v281 = vcvt.s32.f32 %v249
  %v282 = vcvt.s32.f32 %v250
  %v283 = vcvt.s32.f32 %v251
  %v284 = vcvt.s32.f32 %v252
  %v285 = vcvt.s32.f32 %v253
  %v286 = vcvt.s32.f32 %v254
  %v287 = vcvt.s32.f32 %v255
  %v288 = vcvt.s32.f32 %v256
  %v289 = vcvt.s32.f32 %v257
  %v290 = vcvt.s32.f32 %v258
  %v291 = vcvt.s32.f32 %v259
  %v292 = vcvt.s32.f32 %v260
  %v293 = vcvt.s32.f32 %v261
  %v294 = vcvt.s32.f32 %v262
  %v295 = vcvt.s32.f32 %v263
  %v296 = vcvt.s32.f32 %v264
  %v297 = vcvt.s32.f32 %v265
  %v298 = vcvt.s32.f32 %v266
  %v299 = vcvt.s32.f32 %v267
  %v300 = vcvt.s32.f32 %v268
  %v301 = vpack.c.bf16 %v271, %v269
  %v302 = vpack.c.bf16 %v272, %v270
  %v303 = vpack.c.bf16 %v275, %v273
  %v304 = vpack.c.bf16 %v276, %v274
  %v305 = vpack.c.bf16 %v279, %v277
  %v306 = vpack.c.bf16 %v280, %v278
  %v307 = vpack.c.bf16 %v283, %v281
  %v308 = vpack.c.bf16 %v284, %v282
  %v309 = vpack.c.bf16 %v287, %v285
  %v310 = vpack.c.bf16 %v288, %v286
  %v311 = vpack.c.bf16 %v291, %v289
  %v312 = vpack.c.bf16 %v292, %v290
  %v313 = vpack.c.bf16 %v295, %v293
  %v314 = vpack.c.bf16 %v296, %v294
  %v315 = vpack.c.bf16 %v299, %v297
  %v316 = vpack.c.bf16 %v300, %v298
  %s317 = smul.u32 4, 128
  %s318 = smul.u32 %s317, 1
  %s319 = sshll.u32 %s318, 4
  %320 = dma.done [#allocation7], %s319
  %v321 = vld [vmem:[#allocation2] sm:$0xf]
  %v322 = vld [vmem:[#allocation2 + $0x4] sm:$0xf]
  %v323 = vld [vmem:[#allocation2 + $0x8] sm:$0xf]
  %v324 = vld [vmem:[#allocation2 + $0xc] sm:$0xf]
  %v325 = vld [vmem:[#allocation2 + $0x10] sm:$0xf]
  %v326 = vld [vmem:[#allocation2 + $0x14] sm:$0xf]
  %v327 = vld [vmem:[#allocation2 + $0x18] sm:$0xf]
  %v328 = vld [vmem:[#allocation2 + $0x1c] sm:$0xf]
  %v329 = vld [vmem:[#allocation2 + $0x20] sm:$0xf]
  %v330 = vld [vmem:[#allocation2 + $0x24] sm:$0xf]
  %v331 = vld [vmem:[#allocation2 + $0x28] sm:$0xf]
  %v332 = vld [vmem:[#allocation2 + $0x2c] sm:$0xf]
  %v333 = vld [vmem:[#allocation2 + $0x30] sm:$0xf]
  %v334 = vld [vmem:[#allocation2 + $0x34] sm:$0xf]
  %v335 = vld [vmem:[#allocation2 + $0x38] sm:$0xf]
  %v336 = vld [vmem:[#allocation2 + $0x3c] sm:$0xf]
  %v337 = vld [vmem:[#allocation2 + $0x40] sm:$0xf]
  %v338 = vld [vmem:[#allocation2 + $0x44] sm:$0xf]
  %v339 = vld [vmem:[#allocation2 + $0x48] sm:$0xf]
  %v340 = vld [vmem:[#allocation2 + $0x4c] sm:$0xf]
  %v341 = vld [vmem:[#allocation2 + $0x50] sm:$0xf]
  %v342 = vld [vmem:[#allocation2 + $0x54] sm:$0xf]
  %v343 = vld [vmem:[#allocation2 + $0x58] sm:$0xf]
  %v344 = vld [vmem:[#allocation2 + $0x5c] sm:$0xf]
  %v345 = vld [vmem:[#allocation2 + $0x60] sm:$0xf]
  %v346 = vld [vmem:[#allocation2 + $0x64] sm:$0xf]
  %v347 = vld [vmem:[#allocation2 + $0x68] sm:$0xf]
  %v348 = vld [vmem:[#allocation2 + $0x6c] sm:$0xf]
  %v349 = vld [vmem:[#allocation2 + $0x70] sm:$0xf]
  %v350 = vld [vmem:[#allocation2 + $0x74] sm:$0xf]
  %v351 = vld [vmem:[#allocation2 + $0x78] sm:$0xf]
  %v352 = vld [vmem:[#allocation2 + $0x7c] sm:$0xf]
  %v353 = vadd.s32 %v155, 256
  %v354 = vadd.s32 %v156, 256
  %vm355 = vcmp.eq.s32.totalorder %v353, %v159
  %vm356 = vcmp.eq.s32.totalorder %v354, %v159
  %vm357 = vcmp.eq.s32.totalorder %v353, %v162
  %vm358 = vcmp.eq.s32.totalorder %v354, %v162
  %vm359 = vcmp.eq.s32.totalorder %v353, %v165
  %vm360 = vcmp.eq.s32.totalorder %v354, %v165
  %vm361 = vcmp.eq.s32.totalorder %v353, %v168
  %vm362 = vcmp.eq.s32.totalorder %v354, %v168
  %vm363 = vcmp.eq.s32.totalorder %v353, %v171
  %vm364 = vcmp.eq.s32.totalorder %v354, %v171
  %vm365 = vcmp.eq.s32.totalorder %v353, %v174
  %vm366 = vcmp.eq.s32.totalorder %v354, %v174
  %vm367 = vcmp.eq.s32.totalorder %v353, %v177
  %vm368 = vcmp.eq.s32.totalorder %v354, %v177
  %vm369 = vcmp.eq.s32.totalorder %v353, %v180
  %vm370 = vcmp.eq.s32.totalorder %v354, %v180
  %vm371 = vcmp.eq.s32.totalorder %v353, %v183
  %vm372 = vcmp.eq.s32.totalorder %v354, %v183
  %vm373 = vcmp.eq.s32.totalorder %v353, %v186
  %vm374 = vcmp.eq.s32.totalorder %v354, %v186
  %vm375 = vcmp.eq.s32.totalorder %v353, %v189
  %vm376 = vcmp.eq.s32.totalorder %v354, %v189
  %vm377 = vcmp.eq.s32.totalorder %v353, %v192
  %vm378 = vcmp.eq.s32.totalorder %v354, %v192
  %vm379 = vcmp.eq.s32.totalorder %v353, %v195
  %vm380 = vcmp.eq.s32.totalorder %v354, %v195
  %vm381 = vcmp.eq.s32.totalorder %v353, %v198
  %vm382 = vcmp.eq.s32.totalorder %v354, %v198
  %vm383 = vcmp.eq.s32.totalorder %v353, %v201
  %vm384 = vcmp.eq.s32.totalorder %v354, %v201
  %vm385 = vcmp.eq.s32.totalorder %v353, %v204
  %vm386 = vcmp.eq.s32.totalorder %v354, %v204
  %v387 = vsel %vm355, 1, 0
  %v388 = vsel %vm356, 1, 0
  %v389 = vsel %vm357, 1, 0
  %v390 = vsel %vm358, 1, 0
  %v391 = vsel %vm359, 1, 0
  %v392 = vsel %vm360, 1, 0
  %v393 = vsel %vm361, 1, 0
  %v394 = vsel %vm362, 1, 0
  %v395 = vsel %vm363, 1, 0
  %v396 = vsel %vm364, 1, 0
  %v397 = vsel %vm365, 1, 0
  %v398 = vsel %vm366, 1, 0
  %v399 = vsel %vm367, 1, 0
  %v400 = vsel %vm368, 1, 0
  %v401 = vsel %vm369, 1, 0
  %v402 = vsel %vm370, 1, 0
  %v403 = vsel %vm371, 1, 0
  %v404 = vsel %vm372, 1, 0
  %v405 = vsel %vm373, 1, 0
  %v406 = vsel %vm374, 1, 0
  %v407 = vsel %vm375, 1, 0
  %v408 = vsel %vm376, 1, 0
  %v409 = vsel %vm377, 1, 0
  %v410 = vsel %vm378, 1, 0
  %v411 = vsel %vm379, 1, 0
  %v412 = vsel %vm380, 1, 0
  %v413 = vsel %vm381, 1, 0
  %v414 = vsel %vm382, 1, 0
  %v415 = vsel %vm383, 1, 0
  %v416 = vsel %vm384, 1, 0
  %v417 = vsel %vm385, 1, 0
  %v418 = vsel %vm386, 1, 0
  %v419 = vcvt.s32.f32 %v387
  %v420 = vcvt.s32.f32 %v388
  %v421 = vcvt.s32.f32 %v389
  %v422 = vcvt.s32.f32 %v390
  %v423 = vcvt.s32.f32 %v391
  %v424 = vcvt.s32.f32 %v392
  %v425 = vcvt.s32.f32 %v393
  %v426 = vcvt.s32.f32 %v394
  %v427 = vcvt.s32.f32 %v395
  %v428 = vcvt.s32.f32 %v396
  %v429 = vcvt.s32.f32 %v397
  %v430 = vcvt.s32.f32 %v398
  %v431 = vcvt.s32.f32 %v399
  %v432 = vcvt.s32.f32 %v400
  %v433 = vcvt.s32.f32 %v401
  %v434 = vcvt.s32.f32 %v402
  %v435 = vcvt.s32.f32 %v403
  %v436 = vcvt.s32.f32 %v404
  %v437 = vcvt.s32.f32 %v405
  %v438 = vcvt.s32.f32 %v406
  %v439 = vcvt.s32.f32 %v407
  %v440 = vcvt.s32.f32 %v408
  %v441 = vcvt.s32.f32 %v409
  %v442 = vcvt.s32.f32 %v410
  %v443 = vcvt.s32.f32 %v411
  %v444 = vcvt.s32.f32 %v412
  %v445 = vcvt.s32.f32 %v413
  %v446 = vcvt.s32.f32 %v414
  %v447 = vcvt.s32.f32 %v415
  %v448 = vcvt.s32.f32 %v416
  %v449 = vcvt.s32.f32 %v417
  %v450 = vcvt.s32.f32 %v418
  %v451 = vpack.c.bf16 %v421, %v419
  %v452 = vpack.c.bf16 %v422, %v420
  %v453 = vpack.c.bf16 %v425, %v423
  %v454 = vpack.c.bf16 %v426, %v424
  %v455 = vpack.c.bf16 %v429, %v427
  %v456 = vpack.c.bf16 %v430, %v428
  %v457 = vpack.c.bf16 %v433, %v431
  %v458 = vpack.c.bf16 %v434, %v432
  %v459 = vpack.c.bf16 %v437, %v435
  %v460 = vpack.c.bf16 %v438, %v436
  %v461 = vpack.c.bf16 %v441, %v439
  %v462 = vpack.c.bf16 %v442, %v440
  %v463 = vpack.c.bf16 %v445, %v443
  %v464 = vpack.c.bf16 %v446, %v444
  %v465 = vpack.c.bf16 %v449, %v447
  %v466 = vpack.c.bf16 %v450, %v448
  %v467 = vld [vmem:[#allocation2 + $0x80] sm:$0xf]
  %v468 = vld [vmem:[#allocation2 + $0x84] sm:$0xf]
  %v469 = vld [vmem:[#allocation2 + $0x88] sm:$0xf]
  %v470 = vld [vmem:[#allocation2 + $0x8c] sm:$0xf]
  %v471 = vld [vmem:[#allocation2 + $0x90] sm:$0xf]
  %v472 = vld [vmem:[#allocation2 + $0x94] sm:$0xf]
  %v473 = vld [vmem:[#allocation2 + $0x98] sm:$0xf]
  %v474 = vld [vmem:[#allocation2 + $0x9c] sm:$0xf]
  %v475 = vld [vmem:[#allocation2 + $0xa0] sm:$0xf]
  %v476 = vld [vmem:[#allocation2 + $0xa4] sm:$0xf]
  %v477 = vld [vmem:[#allocation2 + $0xa8] sm:$0xf]
  %v478 = vld [vmem:[#allocation2 + $0xac] sm:$0xf]
  %v479 = vld [vmem:[#allocation2 + $0xb0] sm:$0xf]
  %v480 = vld [vmem:[#allocation2 + $0xb4] sm:$0xf]
  %v481 = vld [vmem:[#allocation2 + $0xb8] sm:$0xf]
  %v482 = vld [vmem:[#allocation2 + $0xbc] sm:$0xf]
  %v483 = vld [vmem:[#allocation2 + $0xc0] sm:$0xf]
  %v484 = vld [vmem:[#allocation2 + $0xc4] sm:$0xf]
  %v485 = vld [vmem:[#allocation2 + $0xc8] sm:$0xf]
  %v486 = vld [vmem:[#allocation2 + $0xcc] sm:$0xf]
  %v487 = vld [vmem:[#allocation2 + $0xd0] sm:$0xf]
  %v488 = vld [vmem:[#allocation2 + $0xd4] sm:$0xf]
  %v489 = vld [vmem:[#allocation2 + $0xd8] sm:$0xf]
  %v490 = vld [vmem:[#allocation2 + $0xdc] sm:$0xf]
  %v491 = vld [vmem:[#allocation2 + $0xe0] sm:$0xf]
  %v492 = vld [vmem:[#allocation2 + $0xe4] sm:$0xf]
  %v493 = vld [vmem:[#allocation2 + $0xe8] sm:$0xf]
  %v494 = vld [vmem:[#allocation2 + $0xec] sm:$0xf]
  %v495 = vld [vmem:[#allocation2 + $0xf0] sm:$0xf]
  %v496 = vld [vmem:[#allocation2 + $0xf4] sm:$0xf]
  %v497 = vld [vmem:[#allocation2 + $0xf8] sm:$0xf]
  %v498 = vld [vmem:[#allocation2 + $0xfc] sm:$0xf]
  %v531 = vunpack.c.l.b16 %v467
  %v532 = vunpack.c.l.b16 %v468
  %v533 = vunpack.c.l.b16 %v469
  %v534 = vunpack.c.l.b16 %v470
  %v535 = vunpack.c.l.b16 %v471
  %v536 = vunpack.c.l.b16 %v472
  %v537 = vunpack.c.l.b16 %v473
  %v538 = vunpack.c.l.b16 %v474
  %v539 = vunpack.c.l.b16 %v475
  %v540 = vunpack.c.l.b16 %v476
  %v541 = vunpack.c.l.b16 %v477
  %v542 = vunpack.c.l.b16 %v478
  %v543 = vunpack.c.l.b16 %v479
  %v544 = vunpack.c.l.b16 %v480
  %v545 = vunpack.c.l.b16 %v481
  %v546 = vunpack.c.l.b16 %v482
  %v547 = vunpack.c.l.b16 %v483
  %v548 = vunpack.c.l.b16 %v484
  %v549 = vunpack.c.l.b16 %v485
  %v550 = vunpack.c.l.b16 %v486
  %v551 = vunpack.c.l.b16 %v487
  %v552 = vunpack.c.l.b16 %v488
  %v553 = vunpack.c.l.b16 %v489
  %v554 = vunpack.c.l.b16 %v490
  %v555 = vunpack.c.l.b16 %v491
  %v556 = vunpack.c.l.b16 %v492
  %v557 = vunpack.c.l.b16 %v493
  %v558 = vunpack.c.l.b16 %v494
  %v559 = vunpack.c.l.b16 %v495
  %v560 = vunpack.c.l.b16 %v496
  %v561 = vunpack.c.l.b16 %v497
  %v562 = vunpack.c.l.b16 %v498
  %v563 = vpack.c.b16 %v532, %v531
  %v564 = vpack.c.b16 %v534, %v533
  %v565 = vpack.c.b16 %v536, %v535
  %v566 = vpack.c.b16 %v538, %v537
  %v567 = vpack.c.b16 %v540, %v539
  %v568 = vpack.c.b16 %v542, %v541
  %v569 = vpack.c.b16 %v544, %v543
  %v570 = vpack.c.b16 %v546, %v545
  %v571 = vpack.c.b16 %v548, %v547
  %v572 = vpack.c.b16 %v550, %v549
  %v573 = vpack.c.b16 %v552, %v551
  %v574 = vpack.c.b16 %v554, %v553
  %v575 = vpack.c.b16 %v556, %v555
  %v576 = vpack.c.b16 %v558, %v557
  %v577 = vpack.c.b16 %v560, %v559
  %v578 = vpack.c.b16 %v562, %v561
  %595 = vmatprep.subr.bf16.mxu0 0
  %596 = vmatpush1.bf16.msra.mxu0 %v570
  %597 = vmatprep.subr.bf16.mxu0 0
  %598 = vmatpush1.bf16.msra.mxu0 %v569
  %599 = vmatprep.subr.bf16.mxu0 0
  %600 = vmatpush1.bf16.msra.mxu0 %v568
  %601 = vmatprep.subr.bf16.mxu0 0
  %602 = vmatpush1.bf16.msra.mxu0 %v567
  %603 = vmatprep.subr.bf16.mxu0 0
  %604 = vmatpush1.bf16.msra.mxu0 %v566
  %605 = vmatprep.subr.bf16.mxu0 0
  %606 = vmatpush1.bf16.msra.mxu0 %v565
  %607 = vmatprep.subr.bf16.mxu0 0
  %608 = vmatpush1.bf16.msra.mxu0 %v564
  %609 = vmatprep.subr.bf16.mxu0 0
  %610 = vmatpush1.bf16.msra.mxu0 %v563
  %611 = vmatprep.subr.bf16.mxu0 0
  %612 = vmatpush2.bf16.msra.mxu0 %v578
  %613 = vmatprep.subr.bf16.mxu0 0
  %614 = vmatpush2.bf16.msra.mxu0 %v577
  %615 = vmatprep.subr.bf16.mxu0 0
  %616 = vmatpush2.bf16.msra.mxu0 %v576
  %617 = vmatprep.subr.bf16.mxu0 0
  %618 = vmatpush2.bf16.msra.mxu0 %v575
  %619 = vmatprep.subr.bf16.mxu0 0
  %620 = vmatpush2.bf16.msra.mxu0 %v574
  %621 = vmatprep.subr.bf16.mxu0 0
  %622 = vmatpush2.bf16.msra.mxu0 %v573
  %623 = vmatprep.subr.bf16.mxu0 0
  %624 = vmatpush2.bf16.msra.mxu0 %v572
  %625 = vmatprep.subr.bf16.mxu0 0
  %626 = vmatpush2.bf16.msra.mxu0 %v571
  %627 = vmatprep.mubr.bf16.mxu0 %v452
  %628 = vmatmul.mubr.bf16.gmra.mxu0 %v451
  %v629 = vpop.f32.mrf.mxu0
  %v630 = vadd.f32 0.0, %v629
  %v631 = vpop.f32.mrf.mxu0
  %v632 = vpop.f32.mrf.mxu0
  %v633 = vadd.f32 0.0, %v632
  %v634 = vpop.f32.mrf.mxu0
  %635 = vmatprep.mubr.bf16.mxu0 %v454
  %636 = vmatmul.mubr.bf16.gmra.mxu0 %v453
  %v637 = vpop.f32.mrf.mxu0
  %v638 = vadd.f32 0.0, %v637
  %v639 = vpop.f32.mrf.mxu0
  %v640 = vpop.f32.mrf.mxu0
  %v641 = vadd.f32 0.0, %v640
  %v642 = vpop.f32.mrf.mxu0
  %643 = vmatprep.mubr.bf16.mxu0 %v456
  %644 = vmatmul.mubr.bf16.gmra.mxu0 %v455
  %v645 = vpop.f32.mrf.mxu0
  %v646 = vadd.f32 0.0, %v645
  %v647 = vpop.f32.mrf.mxu0
  %v648 = vpop.f32.mrf.mxu0
  %v649 = vadd.f32 0.0, %v648
  %v650 = vpop.f32.mrf.mxu0
  %651 = vmatprep.mubr.bf16.mxu0 %v458
  %652 = vmatmul.mubr.bf16.gmra.mxu0 %v457
  %v653 = vpop.f32.mrf.mxu0
  %v654 = vadd.f32 0.0, %v653
  %v655 = vpop.f32.mrf.mxu0
  %v656 = vpop.f32.mrf.mxu0
  %v657 = vadd.f32 0.0, %v656
  %v658 = vpop.f32.mrf.mxu0
  %659 = vmatprep.mubr.bf16.mxu0 %v460
  %660 = vmatmul.mubr.bf16.gmra.mxu0 %v459
  %v661 = vpop.f32.mrf.mxu0
  %v662 = vadd.f32 0.0, %v661
  %v663 = vpop.f32.mrf.mxu0
  %v664 = vpop.f32.mrf.mxu0
  %v665 = vadd.f32 0.0, %v664
  %v666 = vpop.f32.mrf.mxu0
  %667 = vmatprep.mubr.bf16.mxu0 %v462
  %668 = vmatmul.mubr.bf16.gmra.mxu0 %v461
  %v669 = vpop.f32.mrf.mxu0
  %v670 = vadd.f32 0.0, %v669
  %v671 = vpop.f32.mrf.mxu0
  %v672 = vpop.f32.mrf.mxu0
  %v673 = vadd.f32 0.0, %v672
  %v674 = vpop.f32.mrf.mxu0
  %675 = vmatprep.mubr.bf16.mxu0 %v464
  %676 = vmatmul.mubr.bf16.gmra.mxu0 %v463
  %v677 = vpop.f32.mrf.mxu0
  %v678 = vadd.f32 0.0, %v677
  %v679 = vpop.f32.mrf.mxu0
  %v680 = vpop.f32.mrf.mxu0
  %v681 = vadd.f32 0.0, %v680
  %v682 = vpop.f32.mrf.mxu0
  %683 = vmatprep.mubr.bf16.mxu0 %v466
  %684 = vmatmul.mubr.bf16.gmra.mxu0 %v465
  %v685 = vpop.f32.mrf.mxu0
  %v686 = vadd.f32 0.0, %v685
  %v687 = vpop.f32.mrf.mxu0
  %v688 = vpop.f32.mrf.mxu0
  %v689 = vadd.f32 0.0, %v688
  %v690 = vpop.f32.mrf.mxu0
  %691 = vdwg.mxu0
  %v724 = vunpack.c.l.b16 %v321
  %v725 = vunpack.c.l.b16 %v322
  %v726 = vunpack.c.l.b16 %v323
  %v727 = vunpack.c.l.b16 %v324
  %v728 = vunpack.c.l.b16 %v325
  %v729 = vunpack.c.l.b16 %v326
  %v730 = vunpack.c.l.b16 %v327
  %v731 = vunpack.c.l.b16 %v328
  %v732 = vunpack.c.l.b16 %v329
  %v733 = vunpack.c.l.b16 %v330
  %v734 = vunpack.c.l.b16 %v331
  %v735 = vunpack.c.l.b16 %v332
  %v736 = vunpack.c.l.b16 %v333
  %v737 = vunpack.c.l.b16 %v334
  %v738 = vunpack.c.l.b16 %v335
  %v739 = vunpack.c.l.b16 %v336
  %v740 = vunpack.c.l.b16 %v337
  %v741 = vunpack.c.l.b16 %v338
  %v742 = vunpack.c.l.b16 %v339
  %v743 = vunpack.c.l.b16 %v340
  %v744 = vunpack.c.l.b16 %v341
  %v745 = vunpack.c.l.b16 %v342
  %v746 = vunpack.c.l.b16 %v343
  %v747 = vunpack.c.l.b16 %v344
  %v748 = vunpack.c.l.b16 %v345
  %v749 = vunpack.c.l.b16 %v346
  %v750 = vunpack.c.l.b16 %v347
  %v751 = vunpack.c.l.b16 %v348
  %v752 = vunpack.c.l.b16 %v349
  %v753 = vunpack.c.l.b16 %v350
  %v754 = vunpack.c.l.b16 %v351
  %v755 = vunpack.c.l.b16 %v352
  %v756 = vpack.c.b16 %v725, %v724
  %v757 = vpack.c.b16 %v727, %v726
  %v758 = vpack.c.b16 %v729, %v728
  %v759 = vpack.c.b16 %v731, %v730
  %v760 = vpack.c.b16 %v733, %v732
  %v761 = vpack.c.b16 %v735, %v734
  %v762 = vpack.c.b16 %v737, %v736
  %v763 = vpack.c.b16 %v739, %v738
  %v764 = vpack.c.b16 %v741, %v740
  %v765 = vpack.c.b16 %v743, %v742
  %v766 = vpack.c.b16 %v745, %v744
  %v767 = vpack.c.b16 %v747, %v746
  %v768 = vpack.c.b16 %v749, %v748
  %v769 = vpack.c.b16 %v751, %v750
  %v770 = vpack.c.b16 %v753, %v752
  %v771 = vpack.c.b16 %v755, %v754
  %788 = vmatprep.subr.bf16.mxu0 0
  %789 = vmatpush1.bf16.msra.mxu0 %v763
  %790 = vmatprep.subr.bf16.mxu0 0
  %791 = vmatpush1.bf16.msra.mxu0 %v762
  %792 = vmatprep.subr.bf16.mxu0 0
  %793 = vmatpush1.bf16.msra.mxu0 %v761
  %794 = vmatprep.subr.bf16.mxu0 0
  %795 = vmatpush1.bf16.msra.mxu0 %v760
  %796 = vmatprep.subr.bf16.mxu0 0
  %797 = vmatpush1.bf16.msra.mxu0 %v759
  %798 = vmatprep.subr.bf16.mxu0 0
  %799 = vmatpush1.bf16.msra.mxu0 %v758
  %800 = vmatprep.subr.bf16.mxu0 0
  %801 = vmatpush1.bf16.msra.mxu0 %v757
  %802 = vmatprep.subr.bf16.mxu0 0
  %803 = vmatpush1.bf16.msra.mxu0 %v756
  %804 = vmatprep.subr.bf16.mxu0 0
  %805 = vmatpush2.bf16.msra.mxu0 %v771
  %806 = vmatprep.subr.bf16.mxu0 0
  %807 = vmatpush2.bf16.msra.mxu0 %v770
  %808 = vmatprep.subr.bf16.mxu0 0
  %809 = vmatpush2.bf16.msra.mxu0 %v769
  %810 = vmatprep.subr.bf16.mxu0 0
  %811 = vmatpush2.bf16.msra.mxu0 %v768
  %812 = vmatprep.subr.bf16.mxu0 0
  %813 = vmatpush2.bf16.msra.mxu0 %v767
  %814 = vmatprep.subr.bf16.mxu0 0
  %815 = vmatpush2.bf16.msra.mxu0 %v766
  %816 = vmatprep.subr.bf16.mxu0 0
  %817 = vmatpush2.bf16.msra.mxu0 %v765
  %818 = vmatprep.subr.bf16.mxu0 0
  %819 = vmatpush2.bf16.msra.mxu0 %v764
  %820 = vmatprep.mubr.bf16.mxu0 %v302
  %821 = vmatmul.mubr.bf16.gmra.mxu0 %v301
  %v822 = vpop.f32.mrf.mxu0
  %v823 = vadd.f32 %v630, %v822
  %v824 = vpop.f32.mrf.mxu0
  %v825 = vpop.f32.mrf.mxu0
  %v826 = vadd.f32 %v633, %v825
  %v827 = vpop.f32.mrf.mxu0
  %828 = vmatprep.mubr.bf16.mxu0 %v304
  %829 = vmatmul.mubr.bf16.gmra.mxu0 %v303
  %v830 = vpop.f32.mrf.mxu0
  %v831 = vadd.f32 %v638, %v830
  %v832 = vpop.f32.mrf.mxu0
  %v833 = vpop.f32.mrf.mxu0
  %v834 = vadd.f32 %v641, %v833
  %v835 = vpop.f32.mrf.mxu0
  %836 = vmatprep.mubr.bf16.mxu0 %v306
  %837 = vmatmul.mubr.bf16.gmra.mxu0 %v305
  %v838 = vpop.f32.mrf.mxu0
  %v839 = vadd.f32 %v646, %v838
  %v840 = vpop.f32.mrf.mxu0
  %v841 = vpop.f32.mrf.mxu0
  %v842 = vadd.f32 %v649, %v841
  %v843 = vpop.f32.mrf.mxu0
  %844 = vmatprep.mubr.bf16.mxu0 %v308
  %845 = vmatmul.mubr.bf16.gmra.mxu0 %v307
  %v846 = vpop.f32.mrf.mxu0
  %v847 = vadd.f32 %v654, %v846
  %v848 = vpop.f32.mrf.mxu0
  %v849 = vpop.f32.mrf.mxu0
  %v850 = vadd.f32 %v657, %v849
  %v851 = vpop.f32.mrf.mxu0
  %852 = vmatprep.mubr.bf16.mxu0 %v310
  %853 = vmatmul.mubr.bf16.gmra.mxu0 %v309
  %v854 = vpop.f32.mrf.mxu0
  %v855 = vadd.f32 %v662, %v854
  %v856 = vpop.f32.mrf.mxu0
  %v857 = vpop.f32.mrf.mxu0
  %v858 = vadd.f32 %v665, %v857
  %v859 = vpop.f32.mrf.mxu0
  %860 = vmatprep.mubr.bf16.mxu0 %v312
  %861 = vmatmul.mubr.bf16.gmra.mxu0 %v311
  %v862 = vpop.f32.mrf.mxu0
  %v863 = vadd.f32 %v670, %v862
  %v864 = vpop.f32.mrf.mxu0
  %v865 = vpop.f32.mrf.mxu0
  %v866 = vadd.f32 %v673, %v865
  %v867 = vpop.f32.mrf.mxu0
  %868 = vmatprep.mubr.bf16.mxu0 %v314
  %869 = vmatmul.mubr.bf16.gmra.mxu0 %v313
  %v870 = vpop.f32.mrf.mxu0
  %v871 = vadd.f32 %v678, %v870
  %v872 = vpop.f32.mrf.mxu0
  %v873 = vpop.f32.mrf.mxu0
  %v874 = vadd.f32 %v681, %v873
  %v875 = vpop.f32.mrf.mxu0
  %876 = vmatprep.mubr.bf16.mxu0 %v316
  %877 = vmatmul.mubr.bf16.gmra.mxu0 %v315
  %v878 = vpop.f32.mrf.mxu0
  %v879 = vadd.f32 %v686, %v878
  %v880 = vpop.f32.mrf.mxu0
  %v881 = vpop.f32.mrf.mxu0
  %v882 = vadd.f32 %v689, %v881
  %v883 = vpop.f32.mrf.mxu0
  %884 = vdwg.mxu0
  %v885 = vadd.s32 %v155, 512
  %v886 = vadd.s32 %v156, 512
  %vm887 = vcmp.eq.s32.totalorder %v885, %v159
  %vm888 = vcmp.eq.s32.totalorder %v886, %v159
  %vm889 = vcmp.eq.s32.totalorder %v885, %v162
  %vm890 = vcmp.eq.s32.totalorder %v886, %v162
  %vm891 = vcmp.eq.s32.totalorder %v885, %v165
  %vm892 = vcmp.eq.s32.totalorder %v886, %v165
  %vm893 = vcmp.eq.s32.totalorder %v885, %v168
  %vm894 = vcmp.eq.s32.totalorder %v886, %v168
  %vm895 = vcmp.eq.s32.totalorder %v885, %v171
  %vm896 = vcmp.eq.s32.totalorder %v886, %v171
  %vm897 = vcmp.eq.s32.totalorder %v885, %v174
  %vm898 = vcmp.eq.s32.totalorder %v886, %v174
  %vm899 = vcmp.eq.s32.totalorder %v885, %v177
  %vm900 = vcmp.eq.s32.totalorder %v886, %v177
  %vm901 = vcmp.eq.s32.totalorder %v885, %v180
  %vm902 = vcmp.eq.s32.totalorder %v886, %v180
  %vm903 = vcmp.eq.s32.totalorder %v885, %v183
  %vm904 = vcmp.eq.s32.totalorder %v886, %v183
  %vm905 = vcmp.eq.s32.totalorder %v885, %v186
  %vm906 = vcmp.eq.s32.totalorder %v886, %v186
  %vm907 = vcmp.eq.s32.totalorder %v885, %v189
  %vm908 = vcmp.eq.s32.totalorder %v886, %v189
  %vm909 = vcmp.eq.s32.totalorder %v885, %v192
  %vm910 = vcmp.eq.s32.totalorder %v886, %v192
  %vm911 = vcmp.eq.s32.totalorder %v885, %v195
  %vm912 = vcmp.eq.s32.totalorder %v886, %v195
  %vm913 = vcmp.eq.s32.totalorder %v885, %v198
  %vm914 = vcmp.eq.s32.totalorder %v886, %v198
  %vm915 = vcmp.eq.s32.totalorder %v885, %v201
  %vm916 = vcmp.eq.s32.totalorder %v886, %v201
  %vm917 = vcmp.eq.s32.totalorder %v885, %v204
  %vm918 = vcmp.eq.s32.totalorder %v886, %v204
  %v919 = vsel %vm887, 1, 0
  %v920 = vsel %vm888, 1, 0
  %v921 = vsel %vm889, 1, 0
  %v922 = vsel %vm890, 1, 0
  %v923 = vsel %vm891, 1, 0
  %v924 = vsel %vm892, 1, 0
  %v925 = vsel %vm893, 1, 0
  %v926 = vsel %vm894, 1, 0
  %v927 = vsel %vm895, 1, 0
  %v928 = vsel %vm896, 1, 0
  %v929 = vsel %vm897, 1, 0
  %v930 = vsel %vm898, 1, 0
  %v931 = vsel %vm899, 1, 0
  %v932 = vsel %vm900, 1, 0
  %v933 = vsel %vm901, 1, 0
  %v934 = vsel %vm902, 1, 0
  %v935 = vsel %vm903, 1, 0
  %v936 = vsel %vm904, 1, 0
  %v937 = vsel %vm905, 1, 0
  %v938 = vsel %vm906, 1, 0
  %v939 = vsel %vm907, 1, 0
  %v940 = vsel %vm908, 1, 0
  %v941 = vsel %vm909, 1, 0
  %v942 = vsel %vm910, 1, 0
  %v943 = vsel %vm911, 1, 0
  %v944 = vsel %vm912, 1, 0
  %v945 = vsel %vm913, 1, 0
  %v946 = vsel %vm914, 1, 0
  %v947 = vsel %vm915, 1, 0
  %v948 = vsel %vm916, 1, 0
  %v949 = vsel %vm917, 1, 0
  %v950 = vsel %vm918, 1, 0
  %v951 = vcvt.s32.f32 %v919
  %v952 = vcvt.s32.f32 %v920
  %v953 = vcvt.s32.f32 %v921
  %v954 = vcvt.s32.f32 %v922
  %v955 = vcvt.s32.f32 %v923
  %v956 = vcvt.s32.f32 %v924
  %v957 = vcvt.s32.f32 %v925
  %v958 = vcvt.s32.f32 %v926
  %v959 = vcvt.s32.f32 %v927
  %v960 = vcvt.s32.f32 %v928
  %v961 = vcvt.s32.f32 %v929
  %v962 = vcvt.s32.f32 %v930
  %v963 = vcvt.s32.f32 %v931
  %v964 = vcvt.s32.f32 %v932
  %v965 = vcvt.s32.f32 %v933
  %v966 = vcvt.s32.f32 %v934
  %v967 = vcvt.s32.f32 %v935
  %v968 = vcvt.s32.f32 %v936
  %v969 = vcvt.s32.f32 %v937
  %v970 = vcvt.s32.f32 %v938
  %v971 = vcvt.s32.f32 %v939
  %v972 = vcvt.s32.f32 %v940
  %v973 = vcvt.s32.f32 %v941
  %v974 = vcvt.s32.f32 %v942
  %v975 = vcvt.s32.f32 %v943
  %v976 = vcvt.s32.f32 %v944
  %v977 = vcvt.s32.f32 %v945
  %v978 = vcvt.s32.f32 %v946
  %v979 = vcvt.s32.f32 %v947
  %v980 = vcvt.s32.f32 %v948
  %v981 = vcvt.s32.f32 %v949
  %v982 = vcvt.s32.f32 %v950
  %v983 = vpack.c.bf16 %v953, %v951
  %v984 = vpack.c.bf16 %v954, %v952
  %v985 = vpack.c.bf16 %v957, %v955
  %v986 = vpack.c.bf16 %v958, %v956
  %v987 = vpack.c.bf16 %v961, %v959
  %v988 = vpack.c.bf16 %v962, %v960
  %v989 = vpack.c.bf16 %v965, %v963
  %v990 = vpack.c.bf16 %v966, %v964
  %v991 = vpack.c.bf16 %v969, %v967
  %v992 = vpack.c.bf16 %v970, %v968
  %v993 = vpack.c.bf16 %v973, %v971
  %v994 = vpack.c.bf16 %v974, %v972
  %v995 = vpack.c.bf16 %v977, %v975
  %v996 = vpack.c.bf16 %v978, %v976
  %v997 = vpack.c.bf16 %v981, %v979
  %v998 = vpack.c.bf16 %v982, %v980
  %v999 = vld [vmem:[#allocation2 + $0x100] sm:$0xf]
  %v1000 = vld [vmem:[#allocation2 + $0x104] sm:$0xf]
  %v1001 = vld [vmem:[#allocation2 + $0x108] sm:$0xf]
  %v1002 = vld [vmem:[#allocation2 + $0x10c] sm:$0xf]
  %v1003 = vld [vmem:[#allocation2 + $0x110] sm:$0xf]
  %v1004 = vld [vmem:[#allocation2 + $0x114] sm:$0xf]
  %v1005 = vld [vmem:[#allocation2 + $0x118] sm:$0xf]
  %v1006 = vld [vmem:[#allocation2 + $0x11c] sm:$0xf]
  %v1007 = vld [vmem:[#allocation2 + $0x120] sm:$0xf]
  %v1008 = vld [vmem:[#allocation2 + $0x124] sm:$0xf]
  %v1009 = vld [vmem:[#allocation2 + $0x128] sm:$0xf]
  %v1010 = vld [vmem:[#allocation2 + $0x12c] sm:$0xf]
  %v1011 = vld [vmem:[#allocation2 + $0x130] sm:$0xf]
  %v1012 = vld [vmem:[#allocation2 + $0x134] sm:$0xf]
  %v1013 = vld [vmem:[#allocation2 + $0x138] sm:$0xf]
  %v1014 = vld [vmem:[#allocation2 + $0x13c] sm:$0xf]
  %v1015 = vld [vmem:[#allocation2 + $0x140] sm:$0xf]
  %v1016 = vld [vmem:[#allocation2 + $0x144] sm:$0xf]
  %v1017 = vld [vmem:[#allocation2 + $0x148] sm:$0xf]
  %v1018 = vld [vmem:[#allocation2 + $0x14c] sm:$0xf]
  %v1019 = vld [vmem:[#allocation2 + $0x150] sm:$0xf]
  %v1020 = vld [vmem:[#allocation2 + $0x154] sm:$0xf]
  %v1021 = vld [vmem:[#allocation2 + $0x158] sm:$0xf]
  %v1022 = vld [vmem:[#allocation2 + $0x15c] sm:$0xf]
  %v1023 = vld [vmem:[#allocation2 + $0x160] sm:$0xf]
  %v1024 = vld [vmem:[#allocation2 + $0x164] sm:$0xf]
  %v1025 = vld [vmem:[#allocation2 + $0x168] sm:$0xf]
  %v1026 = vld [vmem:[#allocation2 + $0x16c] sm:$0xf]
  %v1027 = vld [vmem:[#allocation2 + $0x170] sm:$0xf]
  %v1028 = vld [vmem:[#allocation2 + $0x174] sm:$0xf]
  %v1029 = vld [vmem:[#allocation2 + $0x178] sm:$0xf]
  %v1030 = vld [vmem:[#allocation2 + $0x17c] sm:$0xf]
  %v1063 = vunpack.c.l.b16 %v999
  %v1064 = vunpack.c.l.b16 %v1000
  %v1065 = vunpack.c.l.b16 %v1001
  %v1066 = vunpack.c.l.b16 %v1002
  %v1067 = vunpack.c.l.b16 %v1003
  %v1068 = vunpack.c.l.b16 %v1004
  %v1069 = vunpack.c.l.b16 %v1005
  %v1070 = vunpack.c.l.b16 %v1006
  %v1071 = vunpack.c.l.b16 %v1007
  %v1072 = vunpack.c.l.b16 %v1008
  %v1073 = vunpack.c.l.b16 %v1009
  %v1074 = vunpack.c.l.b16 %v1010
  %v1075 = vunpack.c.l.b16 %v1011
  %v1076 = vunpack.c.l.b16 %v1012
  %v1077 = vunpack.c.l.b16 %v1013
  %v1078 = vunpack.c.l.b16 %v1014
  %v1079 = vunpack.c.l.b16 %v1015
  %v1080 = vunpack.c.l.b16 %v1016
  %v1081 = vunpack.c.l.b16 %v1017
  %v1082 = vunpack.c.l.b16 %v1018
  %v1083 = vunpack.c.l.b16 %v1019
  %v1084 = vunpack.c.l.b16 %v1020
  %v1085 = vunpack.c.l.b16 %v1021
  %v1086 = vunpack.c.l.b16 %v1022
  %v1087 = vunpack.c.l.b16 %v1023
  %v1088 = vunpack.c.l.b16 %v1024
  %v1089 = vunpack.c.l.b16 %v1025
  %v1090 = vunpack.c.l.b16 %v1026
  %v1091 = vunpack.c.l.b16 %v1027
  %v1092 = vunpack.c.l.b16 %v1028
  %v1093 = vunpack.c.l.b16 %v1029
  %v1094 = vunpack.c.l.b16 %v1030
  %v1095 = vpack.c.b16 %v1064, %v1063
  %v1096 = vpack.c.b16 %v1066, %v1065
  %v1097 = vpack.c.b16 %v1068, %v1067
  %v1098 = vpack.c.b16 %v1070, %v1069
  %v1099 = vpack.c.b16 %v1072, %v1071
  %v1100 = vpack.c.b16 %v1074, %v1073
  %v1101 = vpack.c.b16 %v1076, %v1075
  %v1102 = vpack.c.b16 %v1078, %v1077
  %v1103 = vpack.c.b16 %v1080, %v1079
  %v1104 = vpack.c.b16 %v1082, %v1081
  %v1105 = vpack.c.b16 %v1084, %v1083
  %v1106 = vpack.c.b16 %v1086, %v1085
  %v1107 = vpack.c.b16 %v1088, %v1087
  %v1108 = vpack.c.b16 %v1090, %v1089
  %v1109 = vpack.c.b16 %v1092, %v1091
  %v1110 = vpack.c.b16 %v1094, %v1093
  %1127 = vmatprep.subr.bf16.mxu0 0
  %1128 = vmatpush1.bf16.msra.mxu0 %v1102
  %1129 = vmatprep.subr.bf16.mxu0 0
  %1130 = vmatpush1.bf16.msra.mxu0 %v1101
  %1131 = vmatprep.subr.bf16.mxu0 0
  %1132 = vmatpush1.bf16.msra.mxu0 %v1100
  %1133 = vmatprep.subr.bf16.mxu0 0
  %1134 = vmatpush1.bf16.msra.mxu0 %v1099
  %1135 = vmatprep.subr.bf16.mxu0 0
  %1136 = vmatpush1.bf16.msra.mxu0 %v1098
  %1137 = vmatprep.subr.bf16.mxu0 0
  %1138 = vmatpush1.bf16.msra.mxu0 %v1097
  %1139 = vmatprep.subr.bf16.mxu0 0
  %1140 = vmatpush1.bf16.msra.mxu0 %v1096
  %1141 = vmatprep.subr.bf16.mxu0 0
  %1142 = vmatpush1.bf16.msra.mxu0 %v1095
  %1143 = vmatprep.subr.bf16.mxu0 0
  %1144 = vmatpush2.bf16.msra.mxu0 %v1110
  %1145 = vmatprep.subr.bf16.mxu0 0
  %1146 = vmatpush2.bf16.msra.mxu0 %v1109
  %1147 = vmatprep.subr.bf16.mxu0 0
  %1148 = vmatpush2.bf16.msra.mxu0 %v1108
  %1149 = vmatprep.subr.bf16.mxu0 0
  %1150 = vmatpush2.bf16.msra.mxu0 %v1107
  %1151 = vmatprep.subr.bf16.mxu0 0
  %1152 = vmatpush2.bf16.msra.mxu0 %v1106
  %1153 = vmatprep.subr.bf16.mxu0 0
  %1154 = vmatpush2.bf16.msra.mxu0 %v1105
  %1155 = vmatprep.subr.bf16.mxu0 0
  %1156 = vmatpush2.bf16.msra.mxu0 %v1104
  %1157 = vmatprep.subr.bf16.mxu0 0
  %1158 = vmatpush2.bf16.msra.mxu0 %v1103
  %1159 = vmatprep.mubr.bf16.mxu0 %v984
  %1160 = vmatmul.mubr.bf16.gmra.mxu0 %v983
  %v1161 = vpop.f32.mrf.mxu0
  %v1162 = vadd.f32 0.0, %v1161
  %v1163 = vpop.f32.mrf.mxu0
  %v1164 = vpop.f32.mrf.mxu0
  %v1165 = vadd.f32 0.0, %v1164
  %v1166 = vpop.f32.mrf.mxu0
  %1167 = vmatprep.mubr.bf16.mxu0 %v986
  %1168 = vmatmul.mubr.bf16.gmra.mxu0 %v985
  %v1169 = vpop.f32.mrf.mxu0
  %v1170 = vadd.f32 0.0, %v1169
  %v1171 = vpop.f32.mrf.mxu0
  %v1172 = vpop.f32.mrf.mxu0
  %v1173 = vadd.f32 0.0, %v1172
  %v1174 = vpop.f32.mrf.mxu0
  %1175 = vmatprep.mubr.bf16.mxu0 %v988
  %1176 = vmatmul.mubr.bf16.gmra.mxu0 %v987
  %v1177 = vpop.f32.mrf.mxu0
  %v1178 = vadd.f32 0.0, %v1177
  %v1179 = vpop.f32.mrf.mxu0
  %v1180 = vpop.f32.mrf.mxu0
  %v1181 = vadd.f32 0.0, %v1180
  %v1182 = vpop.f32.mrf.mxu0
  %1183 = vmatprep.mubr.bf16.mxu0 %v990
  %1184 = vmatmul.mubr.bf16.gmra.mxu0 %v989
  %v1185 = vpop.f32.mrf.mxu0
  %v1186 = vadd.f32 0.0, %v1185
  %v1187 = vpop.f32.mrf.mxu0
  %v1188 = vpop.f32.mrf.mxu0
  %v1189 = vadd.f32 0.0, %v1188
  %v1190 = vpop.f32.mrf.mxu0
  %1191 = vmatprep.mubr.bf16.mxu0 %v992
  %1192 = vmatmul.mubr.bf16.gmra.mxu0 %v991
  %v1193 = vpop.f32.mrf.mxu0
  %v1194 = vadd.f32 0.0, %v1193
  %v1195 = vpop.f32.mrf.mxu0
  %v1196 = vpop.f32.mrf.mxu0
  %v1197 = vadd.f32 0.0, %v1196
  %v1198 = vpop.f32.mrf.mxu0
  %1199 = vmatprep.mubr.bf16.mxu0 %v994
  %1200 = vmatmul.mubr.bf16.gmra.mxu0 %v993
  %v1201 = vpop.f32.mrf.mxu0
  %v1202 = vadd.f32 0.0, %v1201
  %v1203 = vpop.f32.mrf.mxu0
  %v1204 = vpop.f32.mrf.mxu0
  %v1205 = vadd.f32 0.0, %v1204
  %v1206 = vpop.f32.mrf.mxu0
  %1207 = vmatprep.mubr.bf16.mxu0 %v996
  %1208 = vmatmul.mubr.bf16.gmra.mxu0 %v995
  %v1209 = vpop.f32.mrf.mxu0
  %v1210 = vadd.f32 0.0, %v1209
  %v1211 = vpop.f32.mrf.mxu0
  %v1212 = vpop.f32.mrf.mxu0
  %v1213 = vadd.f32 0.0, %v1212
  %v1214 = vpop.f32.mrf.mxu0
  %1215 = vmatprep.mubr.bf16.mxu0 %v998
  %1216 = vmatmul.mubr.bf16.gmra.mxu0 %v997
  %v1217 = vpop.f32.mrf.mxu0
  %v1218 = vadd.f32 0.0, %v1217
  %v1219 = vpop.f32.mrf.mxu0
  %v1220 = vpop.f32.mrf.mxu0
  %v1221 = vadd.f32 0.0, %v1220
  %v1222 = vpop.f32.mrf.mxu0
  %1223 = vdwg.mxu0
  %v1224 = vadd.f32 %v823, %v1162
  %v1225 = vadd.f32 %v826, %v1165
  %v1226 = vadd.f32 %v831, %v1170
  %v1227 = vadd.f32 %v834, %v1173
  %v1228 = vadd.f32 %v839, %v1178
  %v1229 = vadd.f32 %v842, %v1181
  %v1230 = vadd.f32 %v847, %v1186
  %v1231 = vadd.f32 %v850, %v1189
  %v1232 = vadd.f32 %v855, %v1194
  %v1233 = vadd.f32 %v858, %v1197
  %v1234 = vadd.f32 %v863, %v1202
  %v1235 = vadd.f32 %v866, %v1205
  %v1236 = vadd.f32 %v871, %v1210
  %v1237 = vadd.f32 %v874, %v1213
  %v1238 = vadd.f32 %v879, %v1218
  %v1239 = vadd.f32 %v882, %v1221
  %v1240 = vadd.s32 %v155, 768
  %v1241 = vadd.s32 %v156, 768
  %vm1242 = vcmp.eq.s32.totalorder %v1240, %v159
  %vm1243 = vcmp.eq.s32.totalorder %v1241, %v159
  %vm1244 = vcmp.eq.s32.totalorder %v1240, %v162
  %vm1245 = vcmp.eq.s32.totalorder %v1241, %v162
  %vm1246 = vcmp.eq.s32.totalorder %v1240, %v165
  %vm1247 = vcmp.eq.s32.totalorder %v1241, %v165
  %vm1248 = vcmp.eq.s32.totalorder %v1240, %v168
  %vm1249 = vcmp.eq.s32.totalorder %v1241, %v168
  %vm1250 = vcmp.eq.s32.totalorder %v1240, %v171
  %vm1251 = vcmp.eq.s32.totalorder %v1241, %v171
  %vm1252 = vcmp.eq.s32.totalorder %v1240, %v174
  %vm1253 = vcmp.eq.s32.totalorder %v1241, %v174
  %vm1254 = vcmp.eq.s32.totalorder %v1240, %v177
  %vm1255 = vcmp.eq.s32.totalorder %v1241, %v177
  %vm1256 = vcmp.eq.s32.totalorder %v1240, %v180
  %vm1257 = vcmp.eq.s32.totalorder %v1241, %v180
  %vm1258 = vcmp.eq.s32.totalorder %v1240, %v183
  %vm1259 = vcmp.eq.s32.totalorder %v1241, %v183
  %vm1260 = vcmp.eq.s32.totalorder %v1240, %v186
  %vm1261 = vcmp.eq.s32.totalorder %v1241, %v186
  %vm1262 = vcmp.eq.s32.totalorder %v1240, %v189
  %vm1263 = vcmp.eq.s32.totalorder %v1241, %v189
  %vm1264 = vcmp.eq.s32.totalorder %v1240, %v192
  %vm1265 = vcmp.eq.s32.totalorder %v1241, %v192
  %vm1266 = vcmp.eq.s32.totalorder %v1240, %v195
  %vm1267 = vcmp.eq.s32.totalorder %v1241, %v195
  %vm1268 = vcmp.eq.s32.totalorder %v1240, %v198
  %vm1269 = vcmp.eq.s32.totalorder %v1241, %v198
  %vm1270 = vcmp.eq.s32.totalorder %v1240, %v201
  %vm1271 = vcmp.eq.s32.totalorder %v1241, %v201
  %vm1272 = vcmp.eq.s32.totalorder %v1240, %v204
  %vm1273 = vcmp.eq.s32.totalorder %v1241, %v204
  %v1274 = vsel %vm1242, 1, 0
  %v1275 = vsel %vm1243, 1, 0
  %v1276 = vsel %vm1244, 1, 0
  %v1277 = vsel %vm1245, 1, 0
  %v1278 = vsel %vm1246, 1, 0
  %v1279 = vsel %vm1247, 1, 0
  %v1280 = vsel %vm1248, 1, 0
  %v1281 = vsel %vm1249, 1, 0
  %v1282 = vsel %vm1250, 1, 0
  %v1283 = vsel %vm1251, 1, 0
  %v1284 = vsel %vm1252, 1, 0
  %v1285 = vsel %vm1253, 1, 0
  %v1286 = vsel %vm1254, 1, 0
  %v1287 = vsel %vm1255, 1, 0
  %v1288 = vsel %vm1256, 1, 0
  %v1289 = vsel %vm1257, 1, 0
  %v1290 = vsel %vm1258, 1, 0
  %v1291 = vsel %vm1259, 1, 0
  %v1292 = vsel %vm1260, 1, 0
  %v1293 = vsel %vm1261, 1, 0
  %v1294 = vsel %vm1262, 1, 0
  %v1295 = vsel %vm1263, 1, 0
  %v1296 = vsel %vm1264, 1, 0
  %v1297 = vsel %vm1265, 1, 0
  %v1298 = vsel %vm1266, 1, 0
  %v1299 = vsel %vm1267, 1, 0
  %v1300 = vsel %vm1268, 1, 0
  %v1301 = vsel %vm1269, 1, 0
  %v1302 = vsel %vm1270, 1, 0
  %v1303 = vsel %vm1271, 1, 0
  %v1304 = vsel %vm1272, 1, 0
  %v1305 = vsel %vm1273, 1, 0
  %v1306 = vcvt.s32.f32 %v1274
  %v1307 = vcvt.s32.f32 %v1275
  %v1308 = vcvt.s32.f32 %v1276
  %v1309 = vcvt.s32.f32 %v1277
  %v1310 = vcvt.s32.f32 %v1278
  %v1311 = vcvt.s32.f32 %v1279
  %v1312 = vcvt.s32.f32 %v1280
  %v1313 = vcvt.s32.f32 %v1281
  %v1314 = vcvt.s32.f32 %v1282
  %v1315 = vcvt.s32.f32 %v1283
  %v1316 = vcvt.s32.f32 %v1284
  %v1317 = vcvt.s32.f32 %v1285
  %v1318 = vcvt.s32.f32 %v1286
  %v1319 = vcvt.s32.f32 %v1287
  %v1320 = vcvt.s32.f32 %v1288
  %v1321 = vcvt.s32.f32 %v1289
  %v1322 = vcvt.s32.f32 %v1290
  %v1323 = vcvt.s32.f32 %v1291
  %v1324 = vcvt.s32.f32 %v1292
  %v1325 = vcvt.s32.f32 %v1293
  %v1326 = vcvt.s32.f32 %v1294
  %v1327 = vcvt.s32.f32 %v1295
  %v1328 = vcvt.s32.f32 %v1296
  %v1329 = vcvt.s32.f32 %v1297
  %v1330 = vcvt.s32.f32 %v1298
  %v1331 = vcvt.s32.f32 %v1299
  %v1332 = vcvt.s32.f32 %v1300
  %v1333 = vcvt.s32.f32 %v1301
  %v1334 = vcvt.s32.f32 %v1302
  %v1335 = vcvt.s32.f32 %v1303
  %v1336 = vcvt.s32.f32 %v1304
  %v1337 = vcvt.s32.f32 %v1305
  %v1338 = vpack.c.bf16 %v1308, %v1306
  %v1339 = vpack.c.bf16 %v1309, %v1307
  %v1340 = vpack.c.bf16 %v1312, %v1310
  %v1341 = vpack.c.bf16 %v1313, %v1311
  %v1342 = vpack.c.bf16 %v1316, %v1314
  %v1343 = vpack.c.bf16 %v1317, %v1315
  %v1344 = vpack.c.bf16 %v1320, %v1318
  %v1345 = vpack.c.bf16 %v1321, %v1319
  %v1346 = vpack.c.bf16 %v1324, %v1322
  %v1347 = vpack.c.bf16 %v1325, %v1323
  %v1348 = vpack.c.bf16 %v1328, %v1326
  %v1349 = vpack.c.bf16 %v1329, %v1327
  %v1350 = vpack.c.bf16 %v1332, %v1330
  %v1351 = vpack.c.bf16 %v1333, %v1331
  %v1352 = vpack.c.bf16 %v1336, %v1334
  %v1353 = vpack.c.bf16 %v1337, %v1335
  %v1354 = vld [vmem:[#allocation2 + $0x180] sm:$0xf]
  %v1355 = vld [vmem:[#allocation2 + $0x184] sm:$0xf]
  %v1356 = vld [vmem:[#allocation2 + $0x188] sm:$0xf]
  %v1357 = vld [vmem:[#allocation2 + $0x18c] sm:$0xf]
  %v1358 = vld [vmem:[#allocation2 + $0x190] sm:$0xf]
  %v1359 = vld [vmem:[#allocation2 + $0x194] sm:$0xf]
  %v1360 = vld [vmem:[#allocation2 + $0x198] sm:$0xf]
  %v1361 = vld [vmem:[#allocation2 + $0x19c] sm:$0xf]
  %v1362 = vld [vmem:[#allocation2 + $0x1a0] sm:$0xf]
  %v1363 = vld [vmem:[#allocation2 + $0x1a4] sm:$0xf]
  %v1364 = vld [vmem:[#allocation2 + $0x1a8] sm:$0xf]
  %v1365 = vld [vmem:[#allocation2 + $0x1ac] sm:$0xf]
  %v1366 = vld [vmem:[#allocation2 + $0x1b0] sm:$0xf]
  %v1367 = vld [vmem:[#allocation2 + $0x1b4] sm:$0xf]
  %v1368 = vld [vmem:[#allocation2 + $0x1b8] sm:$0xf]
  %v1369 = vld [vmem:[#allocation2 + $0x1bc] sm:$0xf]
  %v1370 = vld [vmem:[#allocation2 + $0x1c0] sm:$0xf]
  %v1371 = vld [vmem:[#allocation2 + $0x1c4] sm:$0xf]
  %v1372 = vld [vmem:[#allocation2 + $0x1c8] sm:$0xf]
  %v1373 = vld [vmem:[#allocation2 + $0x1cc] sm:$0xf]
  %v1374 = vld [vmem:[#allocation2 + $0x1d0] sm:$0xf]
  %v1375 = vld [vmem:[#allocation2 + $0x1d4] sm:$0xf]
  %v1376 = vld [vmem:[#allocation2 + $0x1d8] sm:$0xf]
  %v1377 = vld [vmem:[#allocation2 + $0x1dc] sm:$0xf]
  %v1378 = vld [vmem:[#allocation2 + $0x1e0] sm:$0xf]
  %v1379 = vld [vmem:[#allocation2 + $0x1e4] sm:$0xf]
  %v1380 = vld [vmem:[#allocation2 + $0x1e8] sm:$0xf]
  %v1381 = vld [vmem:[#allocation2 + $0x1ec] sm:$0xf]
  %v1382 = vld [vmem:[#allocation2 + $0x1f0] sm:$0xf]
  %v1383 = vld [vmem:[#allocation2 + $0x1f4] sm:$0xf]
  %v1384 = vld [vmem:[#allocation2 + $0x1f8] sm:$0xf]
  %v1385 = vld [vmem:[#allocation2 + $0x1fc] sm:$0xf]
  %v1418 = vunpack.c.l.b16 %v1354
  %v1419 = vunpack.c.l.b16 %v1355
  %v1420 = vunpack.c.l.b16 %v1356
  %v1421 = vunpack.c.l.b16 %v1357
  %v1422 = vunpack.c.l.b16 %v1358
  %v1423 = vunpack.c.l.b16 %v1359
  %v1424 = vunpack.c.l.b16 %v1360
  %v1425 = vunpack.c.l.b16 %v1361
  %v1426 = vunpack.c.l.b16 %v1362
  %v1427 = vunpack.c.l.b16 %v1363
  %v1428 = vunpack.c.l.b16 %v1364
  %v1429 = vunpack.c.l.b16 %v1365
  %v1430 = vunpack.c.l.b16 %v1366
  %v1431 = vunpack.c.l.b16 %v1367
  %v1432 = vunpack.c.l.b16 %v1368
  %v1433 = vunpack.c.l.b16 %v1369
  %v1434 = vunpack.c.l.b16 %v1370
  %v1435 = vunpack.c.l.b16 %v1371
  %v1436 = vunpack.c.l.b16 %v1372
  %v1437 = vunpack.c.l.b16 %v1373
  %v1438 = vunpack.c.l.b16 %v1374
  %v1439 = vunpack.c.l.b16 %v1375
  %v1440 = vunpack.c.l.b16 %v1376
  %v1441 = vunpack.c.l.b16 %v1377
  %v1442 = vunpack.c.l.b16 %v1378
  %v1443 = vunpack.c.l.b16 %v1379
  %v1444 = vunpack.c.l.b16 %v1380
  %v1445 = vunpack.c.l.b16 %v1381
  %v1446 = vunpack.c.l.b16 %v1382
  %v1447 = vunpack.c.l.b16 %v1383
  %v1448 = vunpack.c.l.b16 %v1384
  %v1449 = vunpack.c.l.b16 %v1385
  %v1450 = vpack.c.b16 %v1419, %v1418
  %v1451 = vpack.c.b16 %v1421, %v1420
  %v1452 = vpack.c.b16 %v1423, %v1422
  %v1453 = vpack.c.b16 %v1425, %v1424
  %v1454 = vpack.c.b16 %v1427, %v1426
  %v1455 = vpack.c.b16 %v1429, %v1428
  %v1456 = vpack.c.b16 %v1431, %v1430
  %v1457 = vpack.c.b16 %v1433, %v1432
  %v1458 = vpack.c.b16 %v1435, %v1434
  %v1459 = vpack.c.b16 %v1437, %v1436
  %v1460 = vpack.c.b16 %v1439, %v1438
  %v1461 = vpack.c.b16 %v1441, %v1440
  %v1462 = vpack.c.b16 %v1443, %v1442
  %v1463 = vpack.c.b16 %v1445, %v1444
  %v1464 = vpack.c.b16 %v1447, %v1446
  %v1465 = vpack.c.b16 %v1449, %v1448
  %1482 = vmatprep.subr.bf16.mxu0 0
  %1483 = vmatpush1.bf16.msra.mxu0 %v1457
  %1484 = vmatprep.subr.bf16.mxu0 0
  %1485 = vmatpush1.bf16.msra.mxu0 %v1456
  %1486 = vmatprep.subr.bf16.mxu0 0
  %1487 = vmatpush1.bf16.msra.mxu0 %v1455
  %1488 = vmatprep.subr.bf16.mxu0 0
  %1489 = vmatpush1.bf16.msra.mxu0 %v1454
  %1490 = vmatprep.subr.bf16.mxu0 0
  %1491 = vmatpush1.bf16.msra.mxu0 %v1453
  %1492 = vmatprep.subr.bf16.mxu0 0
  %1493 = vmatpush1.bf16.msra.mxu0 %v1452
  %1494 = vmatprep.subr.bf16.mxu0 0
  %1495 = vmatpush1.bf16.msra.mxu0 %v1451
  %1496 = vmatprep.subr.bf16.mxu0 0
  %1497 = vmatpush1.bf16.msra.mxu0 %v1450
  %1498 = vmatprep.subr.bf16.mxu0 0
  %1499 = vmatpush2.bf16.msra.mxu0 %v1465
  %1500 = vmatprep.subr.bf16.mxu0 0
  %1501 = vmatpush2.bf16.msra.mxu0 %v1464
  %1502 = vmatprep.subr.bf16.mxu0 0
  %1503 = vmatpush2.bf16.msra.mxu0 %v1463
  %1504 = vmatprep.subr.bf16.mxu0 0
  %1505 = vmatpush2.bf16.msra.mxu0 %v1462
  %1506 = vmatprep.subr.bf16.mxu0 0
  %1507 = vmatpush2.bf16.msra.mxu0 %v1461
  %1508 = vmatprep.subr.bf16.mxu0 0
  %1509 = vmatpush2.bf16.msra.mxu0 %v1460
  %1510 = vmatprep.subr.bf16.mxu0 0
  %1511 = vmatpush2.bf16.msra.mxu0 %v1459
  %1512 = vmatprep.subr.bf16.mxu0 0
  %1513 = vmatpush2.bf16.msra.mxu0 %v1458
  %1514 = vmatprep.mubr.bf16.mxu0 %v1339
  %1515 = vmatmul.mubr.bf16.gmra.mxu0 %v1338
  %v1516 = vpop.f32.mrf.mxu0
  %v1517 = vadd.f32 0.0, %v1516
  %v1518 = vpop.f32.mrf.mxu0
  %v1519 = vpop.f32.mrf.mxu0
  %v1520 = vadd.f32 0.0, %v1519
  %v1521 = vpop.f32.mrf.mxu0
  %1522 = vmatprep.mubr.bf16.mxu0 %v1341
  %1523 = vmatmul.mubr.bf16.gmra.mxu0 %v1340
  %v1524 = vpop.f32.mrf.mxu0
  %v1525 = vadd.f32 0.0, %v1524
  %v1526 = vpop.f32.mrf.mxu0
  %v1527 = vpop.f32.mrf.mxu0
  %v1528 = vadd.f32 0.0, %v1527
  %v1529 = vpop.f32.mrf.mxu0
  %1530 = vmatprep.mubr.bf16.mxu0 %v1343
  %1531 = vmatmul.mubr.bf16.gmra.mxu0 %v1342
  %v1532 = vpop.f32.mrf.mxu0
  %v1533 = vadd.f32 0.0, %v1532
  %v1534 = vpop.f32.mrf.mxu0
  %v1535 = vpop.f32.mrf.mxu0
  %v1536 = vadd.f32 0.0, %v1535
  %v1537 = vpop.f32.mrf.mxu0
  %1538 = vmatprep.mubr.bf16.mxu0 %v1345
  %1539 = vmatmul.mubr.bf16.gmra.mxu0 %v1344
  %v1540 = vpop.f32.mrf.mxu0
  %v1541 = vadd.f32 0.0, %v1540
  %v1542 = vpop.f32.mrf.mxu0
  %v1543 = vpop.f32.mrf.mxu0
  %v1544 = vadd.f32 0.0, %v1543
  %v1545 = vpop.f32.mrf.mxu0
  %1546 = vmatprep.mubr.bf16.mxu0 %v1347
  %1547 = vmatmul.mubr.bf16.gmra.mxu0 %v1346
  %v1548 = vpop.f32.mrf.mxu0
  %v1549 = vadd.f32 0.0, %v1548
  %v1550 = vpop.f32.mrf.mxu0
  %v1551 = vpop.f32.mrf.mxu0
  %v1552 = vadd.f32 0.0, %v1551
  %v1553 = vpop.f32.mrf.mxu0
  %1554 = vmatprep.mubr.bf16.mxu0 %v1349
  %1555 = vmatmul.mubr.bf16.gmra.mxu0 %v1348
  %v1556 = vpop.f32.mrf.mxu0
  %v1557 = vadd.f32 0.0, %v1556
  %v1558 = vpop.f32.mrf.mxu0
  %v1559 = vpop.f32.mrf.mxu0
  %v1560 = vadd.f32 0.0, %v1559
  %v1561 = vpop.f32.mrf.mxu0
  %1562 = vmatprep.mubr.bf16.mxu0 %v1351
  %1563 = vmatmul.mubr.bf16.gmra.mxu0 %v1350
  %v1564 = vpop.f32.mrf.mxu0
  %v1565 = vadd.f32 0.0, %v1564
  %v1566 = vpop.f32.mrf.mxu0
  %v1567 = vpop.f32.mrf.mxu0
  %v1568 = vadd.f32 0.0, %v1567
  %v1569 = vpop.f32.mrf.mxu0
  %1570 = vmatprep.mubr.bf16.mxu0 %v1353
  %1571 = vmatmul.mubr.bf16.gmra.mxu0 %v1352
  %v1572 = vpop.f32.mrf.mxu0
  %v1573 = vadd.f32 0.0, %v1572
  %v1574 = vpop.f32.mrf.mxu0
  %v1575 = vpop.f32.mrf.mxu0
  %v1576 = vadd.f32 0.0, %v1575
  %v1577 = vpop.f32.mrf.mxu0
  %1578 = vdwg.mxu0
  %v1579 = vadd.f32 %v1224, %v1517
  %v1580 = vadd.f32 %v1225, %v1520
  %v1581 = vadd.f32 %v1226, %v1525
  %v1582 = vadd.f32 %v1227, %v1528
  %v1583 = vadd.f32 %v1228, %v1533
  %v1584 = vadd.f32 %v1229, %v1536
  %v1585 = vadd.f32 %v1230, %v1541
  %v1586 = vadd.f32 %v1231, %v1544
  %v1587 = vadd.f32 %v1232, %v1549
  %v1588 = vadd.f32 %v1233, %v1552
  %v1589 = vadd.f32 %v1234, %v1557
  %v1590 = vadd.f32 %v1235, %v1560
  %v1591 = vadd.f32 %v1236, %v1565
  %v1592 = vadd.f32 %v1237, %v1568
  %v1593 = vadd.f32 %v1238, %v1573
  %v1594 = vadd.f32 %v1239, %v1576
  %1595 = vst [vmem:[#allocation6] sm:$0xff] %v1579
  %1596 = vst [vmem:[#allocation6 + $0x8] sm:$0xff] %v1580
  %1597 = vst [vmem:[#allocation6 + $0x10] sm:$0xff] %v1581
  %1598 = vst [vmem:[#allocation6 + $0x18] sm:$0xff] %v1582
  %1599 = vst [vmem:[#allocation6 + $0x20] sm:$0xff] %v1583
  %1600 = vst [vmem:[#allocation6 + $0x28] sm:$0xff] %v1584
  %1601 = vst [vmem:[#allocation6 + $0x30] sm:$0xff] %v1585
  %1602 = vst [vmem:[#allocation6 + $0x38] sm:$0xff] %v1586
  %1603 = vst [vmem:[#allocation6 + $0x40] sm:$0xff] %v1587
  %1604 = vst [vmem:[#allocation6 + $0x48] sm:$0xff] %v1588
  %1605 = vst [vmem:[#allocation6 + $0x50] sm:$0xff] %v1589
  %1606 = vst [vmem:[#allocation6 + $0x58] sm:$0xff] %v1590
  %1607 = vst [vmem:[#allocation6 + $0x60] sm:$0xff] %v1591
  %1608 = vst [vmem:[#allocation6 + $0x68] sm:$0xff] %v1592
  %1609 = vst [vmem:[#allocation6 + $0x70] sm:$0xff] %v1593
  %1610 = vst [vmem:[#allocation6 + $0x78] sm:$0xff] %v1594
  %s1611 = smul.u32 4, 256
  %s1612 = smul.u32 %s1611, 1
  %s1613 = sshll.u32 %s1612, 4
  %1614 = dma.done %s24, %s1613
  %v1615 = vld [vmem:[#allocation6] sm:$0xff]
  %v1616 = vld [vmem:[#allocation6 + $0x8] sm:$0xff]
  %v1617 = vld [vmem:[#allocation6 + $0x10] sm:$0xff]
  %v1618 = vld [vmem:[#allocation6 + $0x18] sm:$0xff]
  %v1619 = vld [vmem:[#allocation6 + $0x20] sm:$0xff]
  %v1620 = vld [vmem:[#allocation6 + $0x28] sm:$0xff]
  %v1621 = vld [vmem:[#allocation6 + $0x30] sm:$0xff]
  %v1622 = vld [vmem:[#allocation6 + $0x38] sm:$0xff]
  %v1623 = vld [vmem:[#allocation6 + $0x40] sm:$0xff]
  %v1624 = vld [vmem:[#allocation6 + $0x48] sm:$0xff]
  %v1625 = vld [vmem:[#allocation6 + $0x50] sm:$0xff]
  %v1626 = vld [vmem:[#allocation6 + $0x58] sm:$0xff]
  %v1627 = vld [vmem:[#allocation6 + $0x60] sm:$0xff]
  %v1628 = vld [vmem:[#allocation6 + $0x68] sm:$0xff]
  %v1629 = vld [vmem:[#allocation6 + $0x70] sm:$0xff]
  %v1630 = vld [vmem:[#allocation6 + $0x78] sm:$0xff]
  %v1631 = vpack.c.bf16 %v1615, %v1615
  %v1632 = vpack.c.bf16 %v1616, %v1616
  %v1633 = vpack.c.bf16 %v1617, %v1617
  %v1634 = vpack.c.bf16 %v1618, %v1618
  %v1635 = vpack.c.bf16 %v1619, %v1619
  %v1636 = vpack.c.bf16 %v1620, %v1620
  %v1637 = vpack.c.bf16 %v1621, %v1621
  %v1638 = vpack.c.bf16 %v1622, %v1622
  %v1639 = vpack.c.bf16 %v1623, %v1623
  %v1640 = vpack.c.bf16 %v1624, %v1624
  %v1641 = vpack.c.bf16 %v1625, %v1625
  %v1642 = vpack.c.bf16 %v1626, %v1626
  %v1643 = vpack.c.bf16 %v1627, %v1627
  %v1644 = vpack.c.bf16 %v1628, %v1628
  %v1645 = vpack.c.bf16 %v1629, %v1629
  %v1646 = vpack.c.bf16 %v1630, %v1630
  %v1647 = vld [vmem:[#allocation3] sm:$0xf]
  %v1648 = vld [vmem:[#allocation3 + $0x4] sm:$0xf]
  %v1649 = vld [vmem:[#allocation3 + $0x8] sm:$0xf]
  %v1650 = vld [vmem:[#allocation3 + $0xc] sm:$0xf]
  %v1651 = vld [vmem:[#allocation3 + $0x10] sm:$0xf]
  %v1652 = vld [vmem:[#allocation3 + $0x14] sm:$0xf]
  %v1653 = vld [vmem:[#allocation3 + $0x18] sm:$0xf]
  %v1654 = vld [vmem:[#allocation3 + $0x1c] sm:$0xf]
  %v1655 = vld [vmem:[#allocation3 + $0x20] sm:$0xf]
  %v1656 = vld [vmem:[#allocation3 + $0x24] sm:$0xf]
  %v1657 = vld [vmem:[#allocation3 + $0x28] sm:$0xf]
  %v1658 = vld [vmem:[#allocation3 + $0x2c] sm:$0xf]
  %v1659 = vld [vmem:[#allocation3 + $0x30] sm:$0xf]
  %v1660 = vld [vmem:[#allocation3 + $0x34] sm:$0xf]
  %v1661 = vld [vmem:[#allocation3 + $0x38] sm:$0xf]
  %v1662 = vld [vmem:[#allocation3 + $0x3c] sm:$0xf]
  %v1663 = vld [vmem:[#allocation3 + $0x40] sm:$0xf]
  %v1664 = vld [vmem:[#allocation3 + $0x44] sm:$0xf]
  %v1665 = vld [vmem:[#allocation3 + $0x48] sm:$0xf]
  %v1666 = vld [vmem:[#allocation3 + $0x4c] sm:$0xf]
  %v1667 = vld [vmem:[#allocation3 + $0x50] sm:$0xf]
  %v1668 = vld [vmem:[#allocation3 + $0x54] sm:$0xf]
  %v1669 = vld [vmem:[#allocation3 + $0x58] sm:$0xf]
  %v1670 = vld [vmem:[#allocation3 + $0x5c] sm:$0xf]
  %v1671 = vld [vmem:[#allocation3 + $0x60] sm:$0xf]
  %v1672 = vld [vmem:[#allocation3 + $0x64] sm:$0xf]
  %v1673 = vld [vmem:[#allocation3 + $0x68] sm:$0xf]
  %v1674 = vld [vmem:[#allocation3 + $0x6c] sm:$0xf]
  %v1675 = vld [vmem:[#allocation3 + $0x70] sm:$0xf]
  %v1676 = vld [vmem:[#allocation3 + $0x74] sm:$0xf]
  %v1677 = vld [vmem:[#allocation3 + $0x78] sm:$0xf]
  %v1678 = vld [vmem:[#allocation3 + $0x7c] sm:$0xf]
  %v1679 = vld [vmem:[#allocation3 + $0x80] sm:$0xf]
  %v1680 = vld [vmem:[#allocation3 + $0x84] sm:$0xf]
  %v1681 = vld [vmem:[#allocation3 + $0x88] sm:$0xf]
  %v1682 = vld [vmem:[#allocation3 + $0x8c] sm:$0xf]
  %v1683 = vld [vmem:[#allocation3 + $0x90] sm:$0xf]
  %v1684 = vld [vmem:[#allocation3 + $0x94] sm:$0xf]
  %v1685 = vld [vmem:[#allocation3 + $0x98] sm:$0xf]
  %v1686 = vld [vmem:[#allocation3 + $0x9c] sm:$0xf]
  %v1687 = vld [vmem:[#allocation3 + $0xa0] sm:$0xf]
  %v1688 = vld [vmem:[#allocation3 + $0xa4] sm:$0xf]
  %v1689 = vld [vmem:[#allocation3 + $0xa8] sm:$0xf]
  %v1690 = vld [vmem:[#allocation3 + $0xac] sm:$0xf]
  %v1691 = vld [vmem:[#allocation3 + $0xb0] sm:$0xf]
  %v1692 = vld [vmem:[#allocation3 + $0xb4] sm:$0xf]
  %v1693 = vld [vmem:[#allocation3 + $0xb8] sm:$0xf]
  %v1694 = vld [vmem:[#allocation3 + $0xbc] sm:$0xf]
  %v1695 = vld [vmem:[#allocation3 + $0xc0] sm:$0xf]
  %v1696 = vld [vmem:[#allocation3 + $0xc4] sm:$0xf]
  %v1697 = vld [vmem:[#allocation3 + $0xc8] sm:$0xf]
  %v1698 = vld [vmem:[#allocation3 + $0xcc] sm:$0xf]
  %v1699 = vld [vmem:[#allocation3 + $0xd0] sm:$0xf]
  %v1700 = vld [vmem:[#allocation3 + $0xd4] sm:$0xf]
  %v1701 = vld [vmem:[#allocation3 + $0xd8] sm:$0xf]
  %v1702 = vld [vmem:[#allocation3 + $0xdc] sm:$0xf]
  %v1703 = vld [vmem:[#allocation3 + $0xe0] sm:$0xf]
  %v1704 = vld [vmem:[#allocation3 + $0xe4] sm:$0xf]
  %v1705 = vld [vmem:[#allocation3 + $0xe8] sm:$0xf]
  %v1706 = vld [vmem:[#allocation3 + $0xec] sm:$0xf]
  %v1707 = vld [vmem:[#allocation3 + $0xf0] sm:$0xf]
  %v1708 = vld [vmem:[#allocation3 + $0xf4] sm:$0xf]
  %v1709 = vld [vmem:[#allocation3 + $0xf8] sm:$0xf]
  %v1710 = vld [vmem:[#allocation3 + $0xfc] sm:$0xf]
  %v1711 = vld [vmem:[#allocation3 + $0x100] sm:$0xf]
  %v1712 = vld [vmem:[#allocation3 + $0x104] sm:$0xf]
  %v1713 = vld [vmem:[#allocation3 + $0x108] sm:$0xf]
  %v1714 = vld [vmem:[#allocation3 + $0x10c] sm:$0xf]
  %v1715 = vld [vmem:[#allocation3 + $0x110] sm:$0xf]
  %v1716 = vld [vmem:[#allocation3 + $0x114] sm:$0xf]
  %v1717 = vld [vmem:[#allocation3 + $0x118] sm:$0xf]
  %v1718 = vld [vmem:[#allocation3 + $0x11c] sm:$0xf]
  %v1719 = vld [vmem:[#allocation3 + $0x120] sm:$0xf]
  %v1720 = vld [vmem:[#allocation3 + $0x124] sm:$0xf]
  %v1721 = vld [vmem:[#allocation3 + $0x128] sm:$0xf]
  %v1722 = vld [vmem:[#allocation3 + $0x12c] sm:$0xf]
  %v1723 = vld [vmem:[#allocation3 + $0x130] sm:$0xf]
  %v1724 = vld [vmem:[#allocation3 + $0x134] sm:$0xf]
  %v1725 = vld [vmem:[#allocation3 + $0x138] sm:$0xf]
  %v1726 = vld [vmem:[#allocation3 + $0x13c] sm:$0xf]
  %v1727 = vld [vmem:[#allocation3 + $0x140] sm:$0xf]
  %v1728 = vld [vmem:[#allocation3 + $0x144] sm:$0xf]
  %v1729 = vld [vmem:[#allocation3 + $0x148] sm:$0xf]
  %v1730 = vld [vmem:[#allocation3 + $0x14c] sm:$0xf]
  %v1731 = vld [vmem:[#allocation3 + $0x150] sm:$0xf]
  %v1732 = vld [vmem:[#allocation3 + $0x154] sm:$0xf]
  %v1733 = vld [vmem:[#allocation3 + $0x158] sm:$0xf]
  %v1734 = vld [vmem:[#allocation3 + $0x15c] sm:$0xf]
  %v1735 = vld [vmem:[#allocation3 + $0x160] sm:$0xf]
  %v1736 = vld [vmem:[#allocation3 + $0x164] sm:$0xf]
  %v1737 = vld [vmem:[#allocation3 + $0x168] sm:$0xf]
  %v1738 = vld [vmem:[#allocation3 + $0x16c] sm:$0xf]
  %v1739 = vld [vmem:[#allocation3 + $0x170] sm:$0xf]
  %v1740 = vld [vmem:[#allocation3 + $0x174] sm:$0xf]
  %v1741 = vld [vmem:[#allocation3 + $0x178] sm:$0xf]
  %v1742 = vld [vmem:[#allocation3 + $0x17c] sm:$0xf]
  %v1743 = vld [vmem:[#allocation3 + $0x180] sm:$0xf]
  %v1744 = vld [vmem:[#allocation3 + $0x184] sm:$0xf]
  %v1745 = vld [vmem:[#allocation3 + $0x188] sm:$0xf]
  %v1746 = vld [vmem:[#allocation3 + $0x18c] sm:$0xf]
  %v1747 = vld [vmem:[#allocation3 + $0x190] sm:$0xf]
  %v1748 = vld [vmem:[#allocation3 + $0x194] sm:$0xf]
  %v1749 = vld [vmem:[#allocation3 + $0x198] sm:$0xf]
  %v1750 = vld [vmem:[#allocation3 + $0x19c] sm:$0xf]
  %v1751 = vld [vmem:[#allocation3 + $0x1a0] sm:$0xf]
  %v1752 = vld [vmem:[#allocation3 + $0x1a4] sm:$0xf]
  %v1753 = vld [vmem:[#allocation3 + $0x1a8] sm:$0xf]
  %v1754 = vld [vmem:[#allocation3 + $0x1ac] sm:$0xf]
  %v1755 = vld [vmem:[#allocation3 + $0x1b0] sm:$0xf]
  %v1756 = vld [vmem:[#allocation3 + $0x1b4] sm:$0xf]
  %v1757 = vld [vmem:[#allocation3 + $0x1b8] sm:$0xf]
  %v1758 = vld [vmem:[#allocation3 + $0x1bc] sm:$0xf]
  %v1759 = vld [vmem:[#allocation3 + $0x1c0] sm:$0xf]
  %v1760 = vld [vmem:[#allocation3 + $0x1c4] sm:$0xf]
  %v1761 = vld [vmem:[#allocation3 + $0x1c8] sm:$0xf]
  %v1762 = vld [vmem:[#allocation3 + $0x1cc] sm:$0xf]
  %v1763 = vld [vmem:[#allocation3 + $0x1d0] sm:$0xf]
  %v1764 = vld [vmem:[#allocation3 + $0x1d4] sm:$0xf]
  %v1765 = vld [vmem:[#allocation3 + $0x1d8] sm:$0xf]
  %v1766 = vld [vmem:[#allocation3 + $0x1dc] sm:$0xf]
  %v1767 = vld [vmem:[#allocation3 + $0x1e0] sm:$0xf]
  %v1768 = vld [vmem:[#allocation3 + $0x1e4] sm:$0xf]
  %v1769 = vld [vmem:[#allocation3 + $0x1e8] sm:$0xf]
  %v1770 = vld [vmem:[#allocation3 + $0x1ec] sm:$0xf]
  %v1771 = vld [vmem:[#allocation3 + $0x1f0] sm:$0xf]
  %v1772 = vld [vmem:[#allocation3 + $0x1f4] sm:$0xf]
  %v1773 = vld [vmem:[#allocation3 + $0x1f8] sm:$0xf]
  %v1774 = vld [vmem:[#allocation3 + $0x1fc] sm:$0xf]
  %v1775 = vld [vmem:[#allocation3 + $0x200] sm:$0xf]
  %v1776 = vld [vmem:[#allocation3 + $0x204] sm:$0xf]
  %v1777 = vld [vmem:[#allocation3 + $0x208] sm:$0xf]
  %v1778 = vld [vmem:[#allocation3 + $0x20c] sm:$0xf]
  %v1779 = vld [vmem:[#allocation3 + $0x210] sm:$0xf]
  %v1780 = vld [vmem:[#allocation3 + $0x214] sm:$0xf]
  %v1781 = vld [vmem:[#allocation3 + $0x218] sm:$0xf]
  %v1782 = vld [vmem:[#allocation3 + $0x21c] sm:$0xf]
  %v1783 = vld [vmem:[#allocation3 + $0x220] sm:$0xf]
  %v1784 = vld [vmem:[#allocation3 + $0x224] sm:$0xf]
  %v1785 = vld [vmem:[#allocation3 + $0x228] sm:$0xf]
  %v1786 = vld [vmem:[#allocation3 + $0x22c] sm:$0xf]
  %v1787 = vld [vmem:[#allocation3 + $0x230] sm:$0xf]
  %v1788 = vld [vmem:[#allocation3 + $0x234] sm:$0xf]
  %v1789 = vld [vmem:[#allocation3 + $0x238] sm:$0xf]
  %v1790 = vld [vmem:[#allocation3 + $0x23c] sm:$0xf]
  %v1791 = vld [vmem:[#allocation3 + $0x240] sm:$0xf]
  %v1792 = vld [vmem:[#allocation3 + $0x244] sm:$0xf]
  %v1793 = vld [vmem:[#allocation3 + $0x248] sm:$0xf]
  %v1794 = vld [vmem:[#allocation3 + $0x24c] sm:$0xf]
  %v1795 = vld [vmem:[#allocation3 + $0x250] sm:$0xf]
  %v1796 = vld [vmem:[#allocation3 + $0x254] sm:$0xf]
  %v1797 = vld [vmem:[#allocation3 + $0x258] sm:$0xf]
  %v1798 = vld [vmem:[#allocation3 + $0x25c] sm:$0xf]
  %v1799 = vld [vmem:[#allocation3 + $0x260] sm:$0xf]
  %v1800 = vld [vmem:[#allocation3 + $0x264] sm:$0xf]
  %v1801 = vld [vmem:[#allocation3 + $0x268] sm:$0xf]
  %v1802 = vld [vmem:[#allocation3 + $0x26c] sm:$0xf]
  %v1803 = vld [vmem:[#allocation3 + $0x270] sm:$0xf]
  %v1804 = vld [vmem:[#allocation3 + $0x274] sm:$0xf]
  %v1805 = vld [vmem:[#allocation3 + $0x278] sm:$0xf]
  %v1806 = vld [vmem:[#allocation3 + $0x27c] sm:$0xf]
  %v1807 = vld [vmem:[#allocation3 + $0x280] sm:$0xf]
  %v1808 = vld [vmem:[#allocation3 + $0x284] sm:$0xf]
  %v1809 = vld [vmem:[#allocation3 + $0x288] sm:$0xf]
  %v1810 = vld [vmem:[#allocation3 + $0x28c] sm:$0xf]
  %v1811 = vld [vmem:[#allocation3 + $0x290] sm:$0xf]
  %v1812 = vld [vmem:[#allocation3 + $0x294] sm:$0xf]
  %v1813 = vld [vmem:[#allocation3 + $0x298] sm:$0xf]
  %v1814 = vld [vmem:[#allocation3 + $0x29c] sm:$0xf]
  %v1815 = vld [vmem:[#allocation3 + $0x2a0] sm:$0xf]
  %v1816 = vld [vmem:[#allocation3 + $0x2a4] sm:$0xf]
  %v1817 = vld [vmem:[#allocation3 + $0x2a8] sm:$0xf]
  %v1818 = vld [vmem:[#allocation3 + $0x2ac] sm:$0xf]
  %v1819 = vld [vmem:[#allocation3 + $0x2b0] sm:$0xf]
  %v1820 = vld [vmem:[#allocation3 + $0x2b4] sm:$0xf]
  %v1821 = vld [vmem:[#allocation3 + $0x2b8] sm:$0xf]
  %v1822 = vld [vmem:[#allocation3 + $0x2bc] sm:$0xf]
  %v1823 = vld [vmem:[#allocation3 + $0x2c0] sm:$0xf]
  %v1824 = vld [vmem:[#allocation3 + $0x2c4] sm:$0xf]
  %v1825 = vld [vmem:[#allocation3 + $0x2c8] sm:$0xf]
  %v1826 = vld [vmem:[#allocation3 + $0x2cc] sm:$0xf]
  %v1827 = vld [vmem:[#allocation3 + $0x2d0] sm:$0xf]
  %v1828 = vld [vmem:[#allocation3 + $0x2d4] sm:$0xf]
  %v1829 = vld [vmem:[#allocation3 + $0x2d8] sm:$0xf]
  %v1830 = vld [vmem:[#allocation3 + $0x2dc] sm:$0xf]
  %v1831 = vld [vmem:[#allocation3 + $0x2e0] sm:$0xf]
  %v1832 = vld [vmem:[#allocation3 + $0x2e4] sm:$0xf]
  %v1833 = vld [vmem:[#allocation3 + $0x2e8] sm:$0xf]
  %v1834 = vld [vmem:[#allocation3 + $0x2ec] sm:$0xf]
  %v1835 = vld [vmem:[#allocation3 + $0x2f0] sm:$0xf]
  %v1836 = vld [vmem:[#allocation3 + $0x2f4] sm:$0xf]
  %v1837 = vld [vmem:[#allocation3 + $0x2f8] sm:$0xf]
  %v1838 = vld [vmem:[#allocation3 + $0x2fc] sm:$0xf]
  %v1839 = vld [vmem:[#allocation3 + $0x300] sm:$0xf]
  %v1840 = vld [vmem:[#allocation3 + $0x304] sm:$0xf]
  %v1841 = vld [vmem:[#allocation3 + $0x308] sm:$0xf]
  %v1842 = vld [vmem:[#allocation3 + $0x30c] sm:$0xf]
  %v1843 = vld [vmem:[#allocation3 + $0x310] sm:$0xf]
  %v1844 = vld [vmem:[#allocation3 + $0x314] sm:$0xf]
  %v1845 = vld [vmem:[#allocation3 + $0x318] sm:$0xf]
  %v1846 = vld [vmem:[#allocation3 + $0x31c] sm:$0xf]
  %v1847 = vld [vmem:[#allocation3 + $0x320] sm:$0xf]
  %v1848 = vld [vmem:[#allocation3 + $0x324] sm:$0xf]
  %v1849 = vld [vmem:[#allocation3 + $0x328] sm:$0xf]
  %v1850 = vld [vmem:[#allocation3 + $0x32c] sm:$0xf]
  %v1851 = vld [vmem:[#allocation3 + $0x330] sm:$0xf]
  %v1852 = vld [vmem:[#allocation3 + $0x334] sm:$0xf]
  %v1853 = vld [vmem:[#allocation3 + $0x338] sm:$0xf]
  %v1854 = vld [vmem:[#allocation3 + $0x33c] sm:$0xf]
  %v1855 = vld [vmem:[#allocation3 + $0x340] sm:$0xf]
  %v1856 = vld [vmem:[#allocation3 + $0x344] sm:$0xf]
  %v1857 = vld [vmem:[#allocation3 + $0x348] sm:$0xf]
  %v1858 = vld [vmem:[#allocation3 + $0x34c] sm:$0xf]
  %v1859 = vld [vmem:[#allocation3 + $0x350] sm:$0xf]
  %v1860 = vld [vmem:[#allocation3 + $0x354] sm:$0xf]
  %v1861 = vld [vmem:[#allocation3 + $0x358] sm:$0xf]
  %v1862 = vld [vmem:[#allocation3 + $0x35c] sm:$0xf]
  %v1863 = vld [vmem:[#allocation3 + $0x360] sm:$0xf]
  %v1864 = vld [vmem:[#allocation3 + $0x364] sm:$0xf]
  %v1865 = vld [vmem:[#allocation3 + $0x368] sm:$0xf]
  %v1866 = vld [vmem:[#allocation3 + $0x36c] sm:$0xf]
  %v1867 = vld [vmem:[#allocation3 + $0x370] sm:$0xf]
  %v1868 = vld [vmem:[#allocation3 + $0x374] sm:$0xf]
  %v1869 = vld [vmem:[#allocation3 + $0x378] sm:$0xf]
  %v1870 = vld [vmem:[#allocation3 + $0x37c] sm:$0xf]
  %v1871 = vld [vmem:[#allocation3 + $0x380] sm:$0xf]
  %v1872 = vld [vmem:[#allocation3 + $0x384] sm:$0xf]
  %v1873 = vld [vmem:[#allocation3 + $0x388] sm:$0xf]
  %v1874 = vld [vmem:[#allocation3 + $0x38c] sm:$0xf]
  %v1875 = vld [vmem:[#allocation3 + $0x390] sm:$0xf]
  %v1876 = vld [vmem:[#allocation3 + $0x394] sm:$0xf]
  %v1877 = vld [vmem:[#allocation3 + $0x398] sm:$0xf]
  %v1878 = vld [vmem:[#allocation3 + $0x39c] sm:$0xf]
  %v1879 = vld [vmem:[#allocation3 + $0x3a0] sm:$0xf]
  %v1880 = vld [vmem:[#allocation3 + $0x3a4] sm:$0xf]
  %v1881 = vld [vmem:[#allocation3 + $0x3a8] sm:$0xf]
  %v1882 = vld [vmem:[#allocation3 + $0x3ac] sm:$0xf]
  %v1883 = vld [vmem:[#allocation3 + $0x3b0] sm:$0xf]
  %v1884 = vld [vmem:[#allocation3 + $0x3b4] sm:$0xf]
  %v1885 = vld [vmem:[#allocation3 + $0x3b8] sm:$0xf]
  %v1886 = vld [vmem:[#allocation3 + $0x3bc] sm:$0xf]
  %v1887 = vld [vmem:[#allocation3 + $0x3c0] sm:$0xf]
  %v1888 = vld [vmem:[#allocation3 + $0x3c4] sm:$0xf]
  %v1889 = vld [vmem:[#allocation3 + $0x3c8] sm:$0xf]
  %v1890 = vld [vmem:[#allocation3 + $0x3cc] sm:$0xf]
  %v1891 = vld [vmem:[#allocation3 + $0x3d0] sm:$0xf]
  %v1892 = vld [vmem:[#allocation3 + $0x3d4] sm:$0xf]
  %v1893 = vld [vmem:[#allocation3 + $0x3d8] sm:$0xf]
  %v1894 = vld [vmem:[#allocation3 + $0x3dc] sm:$0xf]
  %v1895 = vld [vmem:[#allocation3 + $0x3e0] sm:$0xf]
  %v1896 = vld [vmem:[#allocation3 + $0x3e4] sm:$0xf]
  %v1897 = vld [vmem:[#allocation3 + $0x3e8] sm:$0xf]
  %v1898 = vld [vmem:[#allocation3 + $0x3ec] sm:$0xf]
  %v1899 = vld [vmem:[#allocation3 + $0x3f0] sm:$0xf]
  %v1900 = vld [vmem:[#allocation3 + $0x3f4] sm:$0xf]
  %v1901 = vld [vmem:[#allocation3 + $0x3f8] sm:$0xf]
  %v1902 = vld [vmem:[#allocation3 + $0x3fc] sm:$0xf]
  %v2159 = vunpack.c.l.b16 %v1647
  %v2160 = vunpack.c.l.b16 %v1648
  %v2161 = vunpack.c.l.b16 %v1649
  %v2162 = vunpack.c.l.b16 %v1650
  %v2163 = vunpack.c.l.b16 %v1651
  %v2164 = vunpack.c.l.b16 %v1652
  %v2165 = vunpack.c.l.b16 %v1653
  %v2166 = vunpack.c.l.b16 %v1654
  %v2167 = vunpack.c.l.b16 %v1655
  %v2168 = vunpack.c.l.b16 %v1656
  %v2169 = vunpack.c.l.b16 %v1657
  %v2170 = vunpack.c.l.b16 %v1658
  %v2171 = vunpack.c.l.b16 %v1659
  %v2172 = vunpack.c.l.b16 %v1660
  %v2173 = vunpack.c.l.b16 %v1661
  %v2174 = vunpack.c.l.b16 %v1662
  %v2175 = vunpack.c.l.b16 %v1663
  %v2176 = vunpack.c.l.b16 %v1664
  %v2177 = vunpack.c.l.b16 %v1665
  %v2178 = vunpack.c.l.b16 %v1666
  %v2179 = vunpack.c.l.b16 %v1667
  %v2180 = vunpack.c.l.b16 %v1668
  %v2181 = vunpack.c.l.b16 %v1669
  %v2182 = vunpack.c.l.b16 %v1670
  %v2183 = vunpack.c.l.b16 %v1671
  %v2184 = vunpack.c.l.b16 %v1672
  %v2185 = vunpack.c.l.b16 %v1673
  %v2186 = vunpack.c.l.b16 %v1674
  %v2187 = vunpack.c.l.b16 %v1675
  %v2188 = vunpack.c.l.b16 %v1676
  %v2189 = vunpack.c.l.b16 %v1677
  %v2190 = vunpack.c.l.b16 %v1678
  %v2191 = vunpack.c.l.b16 %v1679
  %v2192 = vunpack.c.l.b16 %v1680
  %v2193 = vunpack.c.l.b16 %v1681
  %v2194 = vunpack.c.l.b16 %v1682
  %v2195 = vunpack.c.l.b16 %v1683
  %v2196 = vunpack.c.l.b16 %v1684
  %v2197 = vunpack.c.l.b16 %v1685
  %v2198 = vunpack.c.l.b16 %v1686
  %v2199 = vunpack.c.l.b16 %v1687
  %v2200 = vunpack.c.l.b16 %v1688
  %v2201 = vunpack.c.l.b16 %v1689
  %v2202 = vunpack.c.l.b16 %v1690
  %v2203 = vunpack.c.l.b16 %v1691
  %v2204 = vunpack.c.l.b16 %v1692
  %v2205 = vunpack.c.l.b16 %v1693
  %v2206 = vunpack.c.l.b16 %v1694
  %v2207 = vunpack.c.l.b16 %v1695
  %v2208 = vunpack.c.l.b16 %v1696
  %v2209 = vunpack.c.l.b16 %v1697
  %v2210 = vunpack.c.l.b16 %v1698
  %v2211 = vunpack.c.l.b16 %v1699
  %v2212 = vunpack.c.l.b16 %v1700
  %v2213 = vunpack.c.l.b16 %v1701
  %v2214 = vunpack.c.l.b16 %v1702
  %v2215 = vunpack.c.l.b16 %v1703
  %v2216 = vunpack.c.l.b16 %v1704
  %v2217 = vunpack.c.l.b16 %v1705
  %v2218 = vunpack.c.l.b16 %v1706
  %v2219 = vunpack.c.l.b16 %v1707
  %v2220 = vunpack.c.l.b16 %v1708
  %v2221 = vunpack.c.l.b16 %v1709
  %v2222 = vunpack.c.l.b16 %v1710
  %v2223 = vunpack.c.l.b16 %v1711
  %v2224 = vunpack.c.l.b16 %v1712
  %v2225 = vunpack.c.l.b16 %v1713
  %v2226 = vunpack.c.l.b16 %v1714
  %v2227 = vunpack.c.l.b16 %v1715
  %v2228 = vunpack.c.l.b16 %v1716
  %v2229 = vunpack.c.l.b16 %v1717
  %v2230 = vunpack.c.l.b16 %v1718
  %v2231 = vunpack.c.l.b16 %v1719
  %v2232 = vunpack.c.l.b16 %v1720
  %v2233 = vunpack.c.l.b16 %v1721
  %v2234 = vunpack.c.l.b16 %v1722
  %v2235 = vunpack.c.l.b16 %v1723
  %v2236 = vunpack.c.l.b16 %v1724
  %v2237 = vunpack.c.l.b16 %v1725
  %v2238 = vunpack.c.l.b16 %v1726
  %v2239 = vunpack.c.l.b16 %v1727
  %v2240 = vunpack.c.l.b16 %v1728
  %v2241 = vunpack.c.l.b16 %v1729
  %v2242 = vunpack.c.l.b16 %v1730
  %v2243 = vunpack.c.l.b16 %v1731
  %v2244 = vunpack.c.l.b16 %v1732
  %v2245 = vunpack.c.l.b16 %v1733
  %v2246 = vunpack.c.l.b16 %v1734
  %v2247 = vunpack.c.l.b16 %v1735
  %v2248 = vunpack.c.l.b16 %v1736
  %v2249 = vunpack.c.l.b16 %v1737
  %v2250 = vunpack.c.l.b16 %v1738
  %v2251 = vunpack.c.l.b16 %v1739
  %v2252 = vunpack.c.l.b16 %v1740
  %v2253 = vunpack.c.l.b16 %v1741
  %v2254 = vunpack.c.l.b16 %v1742
  %v2255 = vunpack.c.l.b16 %v1743
  %v2256 = vunpack.c.l.b16 %v1744
  %v2257 = vunpack.c.l.b16 %v1745
  %v2258 = vunpack.c.l.b16 %v1746
  %v2259 = vunpack.c.l.b16 %v1747
  %v2260 = vunpack.c.l.b16 %v1748
  %v2261 = vunpack.c.l.b16 %v1749
  %v2262 = vunpack.c.l.b16 %v1750
  %v2263 = vunpack.c.l.b16 %v1751
  %v2264 = vunpack.c.l.b16 %v1752
  %v2265 = vunpack.c.l.b16 %v1753
  %v2266 = vunpack.c.l.b16 %v1754
  %v2267 = vunpack.c.l.b16 %v1755
  %v2268 = vunpack.c.l.b16 %v1756
  %v2269 = vunpack.c.l.b16 %v1757
  %v2270 = vunpack.c.l.b16 %v1758
  %v2271 = vunpack.c.l.b16 %v1759
  %v2272 = vunpack.c.l.b16 %v1760
  %v2273 = vunpack.c.l.b16 %v1761
  %v2274 = vunpack.c.l.b16 %v1762
  %v2275 = vunpack.c.l.b16 %v1763
  %v2276 = vunpack.c.l.b16 %v1764
  %v2277 = vunpack.c.l.b16 %v1765
  %v2278 = vunpack.c.l.b16 %v1766
  %v2279 = vunpack.c.l.b16 %v1767
  %v2280 = vunpack.c.l.b16 %v1768
  %v2281 = vunpack.c.l.b16 %v1769
  %v2282 = vunpack.c.l.b16 %v1770
  %v2283 = vunpack.c.l.b16 %v1771
  %v2284 = vunpack.c.l.b16 %v1772
  %v2285 = vunpack.c.l.b16 %v1773
  %v2286 = vunpack.c.l.b16 %v1774
  %v2287 = vunpack.c.l.b16 %v1775
  %v2288 = vunpack.c.l.b16 %v1776
  %v2289 = vunpack.c.l.b16 %v1777
  %v2290 = vunpack.c.l.b16 %v1778
  %v2291 = vunpack.c.l.b16 %v1779
  %v2292 = vunpack.c.l.b16 %v1780
  %v2293 = vunpack.c.l.b16 %v1781
  %v2294 = vunpack.c.l.b16 %v1782
  %v2295 = vunpack.c.l.b16 %v1783
  %v2296 = vunpack.c.l.b16 %v1784
  %v2297 = vunpack.c.l.b16 %v1785
  %v2298 = vunpack.c.l.b16 %v1786
  %v2299 = vunpack.c.l.b16 %v1787
  %v2300 = vunpack.c.l.b16 %v1788
  %v2301 = vunpack.c.l.b16 %v1789
  %v2302 = vunpack.c.l.b16 %v1790
  %v2303 = vunpack.c.l.b16 %v1791
  %v2304 = vunpack.c.l.b16 %v1792
  %v2305 = vunpack.c.l.b16 %v1793
  %v2306 = vunpack.c.l.b16 %v1794
  %v2307 = vunpack.c.l.b16 %v1795
  %v2308 = vunpack.c.l.b16 %v1796
  %v2309 = vunpack.c.l.b16 %v1797
  %v2310 = vunpack.c.l.b16 %v1798
  %v2311 = vunpack.c.l.b16 %v1799
  %v2312 = vunpack.c.l.b16 %v1800
  %v2313 = vunpack.c.l.b16 %v1801
  %v2314 = vunpack.c.l.b16 %v1802
  %v2315 = vunpack.c.l.b16 %v1803
  %v2316 = vunpack.c.l.b16 %v1804
  %v2317 = vunpack.c.l.b16 %v1805
  %v2318 = vunpack.c.l.b16 %v1806
  %v2319 = vunpack.c.l.b16 %v1807
  %v2320 = vunpack.c.l.b16 %v1808
  %v2321 = vunpack.c.l.b16 %v1809
  %v2322 = vunpack.c.l.b16 %v1810
  %v2323 = vunpack.c.l.b16 %v1811
  %v2324 = vunpack.c.l.b16 %v1812
  %v2325 = vunpack.c.l.b16 %v1813
  %v2326 = vunpack.c.l.b16 %v1814
  %v2327 = vunpack.c.l.b16 %v1815
  %v2328 = vunpack.c.l.b16 %v1816
  %v2329 = vunpack.c.l.b16 %v1817
  %v2330 = vunpack.c.l.b16 %v1818
  %v2331 = vunpack.c.l.b16 %v1819
  %v2332 = vunpack.c.l.b16 %v1820
  %v2333 = vunpack.c.l.b16 %v1821
  %v2334 = vunpack.c.l.b16 %v1822
  %v2335 = vunpack.c.l.b16 %v1823
  %v2336 = vunpack.c.l.b16 %v1824
  %v2337 = vunpack.c.l.b16 %v1825
  %v2338 = vunpack.c.l.b16 %v1826
  %v2339 = vunpack.c.l.b16 %v1827
  %v2340 = vunpack.c.l.b16 %v1828
  %v2341 = vunpack.c.l.b16 %v1829
  %v2342 = vunpack.c.l.b16 %v1830
  %v2343 = vunpack.c.l.b16 %v1831
  %v2344 = vunpack.c.l.b16 %v1832
  %v2345 = vunpack.c.l.b16 %v1833
  %v2346 = vunpack.c.l.b16 %v1834
  %v2347 = vunpack.c.l.b16 %v1835
  %v2348 = vunpack.c.l.b16 %v1836
  %v2349 = vunpack.c.l.b16 %v1837
  %v2350 = vunpack.c.l.b16 %v1838
  %v2351 = vunpack.c.l.b16 %v1839
  %v2352 = vunpack.c.l.b16 %v1840
  %v2353 = vunpack.c.l.b16 %v1841
  %v2354 = vunpack.c.l.b16 %v1842
  %v2355 = vunpack.c.l.b16 %v1843
  %v2356 = vunpack.c.l.b16 %v1844
  %v2357 = vunpack.c.l.b16 %v1845
  %v2358 = vunpack.c.l.b16 %v1846
  %v2359 = vunpack.c.l.b16 %v1847
  %v2360 = vunpack.c.l.b16 %v1848
  %v2361 = vunpack.c.l.b16 %v1849
  %v2362 = vunpack.c.l.b16 %v1850
  %v2363 = vunpack.c.l.b16 %v1851
  %v2364 = vunpack.c.l.b16 %v1852
  %v2365 = vunpack.c.l.b16 %v1853
  %v2366 = vunpack.c.l.b16 %v1854
  %v2367 = vunpack.c.l.b16 %v1855
  %v2368 = vunpack.c.l.b16 %v1856
  %v2369 = vunpack.c.l.b16 %v1857
  %v2370 = vunpack.c.l.b16 %v1858
  %v2371 = vunpack.c.l.b16 %v1859
  %v2372 = vunpack.c.l.b16 %v1860
  %v2373 = vunpack.c.l.b16 %v1861
  %v2374 = vunpack.c.l.b16 %v1862
  %v2375 = vunpack.c.l.b16 %v1863
  %v2376 = vunpack.c.l.b16 %v1864
  %v2377 = vunpack.c.l.b16 %v1865
  %v2378 = vunpack.c.l.b16 %v1866
  %v2379 = vunpack.c.l.b16 %v1867
  %v2380 = vunpack.c.l.b16 %v1868
  %v2381 = vunpack.c.l.b16 %v1869
  %v2382 = vunpack.c.l.b16 %v1870
  %v2383 = vunpack.c.l.b16 %v1871
  %v2384 = vunpack.c.l.b16 %v1872
  %v2385 = vunpack.c.l.b16 %v1873
  %v2386 = vunpack.c.l.b16 %v1874
  %v2387 = vunpack.c.l.b16 %v1875
  %v2388 = vunpack.c.l.b16 %v1876
  %v2389 = vunpack.c.l.b16 %v1877
  %v2390 = vunpack.c.l.b16 %v1878
  %v2391 = vunpack.c.l.b16 %v1879
  %v2392 = vunpack.c.l.b16 %v1880
  %v2393 = vunpack.c.l.b16 %v1881
  %v2394 = vunpack.c.l.b16 %v1882
  %v2395 = vunpack.c.l.b16 %v1883
  %v2396 = vunpack.c.l.b16 %v1884
  %v2397 = vunpack.c.l.b16 %v1885
  %v2398 = vunpack.c.l.b16 %v1886
  %v2399 = vunpack.c.l.b16 %v1887
  %v2400 = vunpack.c.l.b16 %v1888
  %v2401 = vunpack.c.l.b16 %v1889
  %v2402 = vunpack.c.l.b16 %v1890
  %v2403 = vunpack.c.l.b16 %v1891
  %v2404 = vunpack.c.l.b16 %v1892
  %v2405 = vunpack.c.l.b16 %v1893
  %v2406 = vunpack.c.l.b16 %v1894
  %v2407 = vunpack.c.l.b16 %v1895
  %v2408 = vunpack.c.l.b16 %v1896
  %v2409 = vunpack.c.l.b16 %v1897
  %v2410 = vunpack.c.l.b16 %v1898
  %v2411 = vunpack.c.l.b16 %v1899
  %v2412 = vunpack.c.l.b16 %v1900
  %v2413 = vunpack.c.l.b16 %v1901
  %v2414 = vunpack.c.l.b16 %v1902
  %v2415 = vpack.c.b16 %v2160, %v2159
  %v2416 = vpack.c.b16 %v2162, %v2161
  %v2417 = vpack.c.b16 %v2164, %v2163
  %v2418 = vpack.c.b16 %v2166, %v2165
  %v2419 = vpack.c.b16 %v2168, %v2167
  %v2420 = vpack.c.b16 %v2170, %v2169
  %v2421 = vpack.c.b16 %v2172, %v2171
  %v2422 = vpack.c.b16 %v2174, %v2173
  %v2423 = vpack.c.b16 %v2176, %v2175
  %v2424 = vpack.c.b16 %v2178, %v2177
  %v2425 = vpack.c.b16 %v2180, %v2179
  %v2426 = vpack.c.b16 %v2182, %v2181
  %v2427 = vpack.c.b16 %v2184, %v2183
  %v2428 = vpack.c.b16 %v2186, %v2185
  %v2429 = vpack.c.b16 %v2188, %v2187
  %v2430 = vpack.c.b16 %v2190, %v2189
  %v2431 = vpack.c.b16 %v2192, %v2191
  %v2432 = vpack.c.b16 %v2194, %v2193
  %v2433 = vpack.c.b16 %v2196, %v2195
  %v2434 = vpack.c.b16 %v2198, %v2197
  %v2435 = vpack.c.b16 %v2200, %v2199
  %v2436 = vpack.c.b16 %v2202, %v2201
  %v2437 = vpack.c.b16 %v2204, %v2203
  %v2438 = vpack.c.b16 %v2206, %v2205
  %v2439 = vpack.c.b16 %v2208, %v2207
  %v2440 = vpack.c.b16 %v2210, %v2209
  %v2441 = vpack.c.b16 %v2212, %v2211
  %v2442 = vpack.c.b16 %v2214, %v2213
  %v2443 = vpack.c.b16 %v2216, %v2215
  %v2444 = vpack.c.b16 %v2218, %v2217
  %v2445 = vpack.c.b16 %v2220, %v2219
  %v2446 = vpack.c.b16 %v2222, %v2221
  %v2447 = vpack.c.b16 %v2224, %v2223
  %v2448 = vpack.c.b16 %v2226, %v2225
  %v2449 = vpack.c.b16 %v2228, %v2227
  %v2450 = vpack.c.b16 %v2230, %v2229
  %v2451 = vpack.c.b16 %v2232, %v2231
  %v2452 = vpack.c.b16 %v2234, %v2233
  %v2453 = vpack.c.b16 %v2236, %v2235
  %v2454 = vpack.c.b16 %v2238, %v2237
  %v2455 = vpack.c.b16 %v2240, %v2239
  %v2456 = vpack.c.b16 %v2242, %v2241
  %v2457 = vpack.c.b16 %v2244, %v2243
  %v2458 = vpack.c.b16 %v2246, %v2245
  %v2459 = vpack.c.b16 %v2248, %v2247
  %v2460 = vpack.c.b16 %v2250, %v2249
  %v2461 = vpack.c.b16 %v2252, %v2251
  %v2462 = vpack.c.b16 %v2254, %v2253
  %v2463 = vpack.c.b16 %v2256, %v2255
  %v2464 = vpack.c.b16 %v2258, %v2257
  %v2465 = vpack.c.b16 %v2260, %v2259
  %v2466 = vpack.c.b16 %v2262, %v2261
  %v2467 = vpack.c.b16 %v2264, %v2263
  %v2468 = vpack.c.b16 %v2266, %v2265
  %v2469 = vpack.c.b16 %v2268, %v2267
  %v2470 = vpack.c.b16 %v2270, %v2269
  %v2471 = vpack.c.b16 %v2272, %v2271
  %v2472 = vpack.c.b16 %v2274, %v2273
  %v2473 = vpack.c.b16 %v2276, %v2275
  %v2474 = vpack.c.b16 %v2278, %v2277
  %v2475 = vpack.c.b16 %v2280, %v2279
  %v2476 = vpack.c.b16 %v2282, %v2281
  %v2477 = vpack.c.b16 %v2284, %v2283
  %v2478 = vpack.c.b16 %v2286, %v2285
  %v2479 = vpack.c.b16 %v2288, %v2287
  %v2480 = vpack.c.b16 %v2290, %v2289
  %v2481 = vpack.c.b16 %v2292, %v2291
  %v2482 = vpack.c.b16 %v2294, %v2293
  %v2483 = vpack.c.b16 %v2296, %v2295
  %v2484 = vpack.c.b16 %v2298, %v2297
  %v2485 = vpack.c.b16 %v2300, %v2299
  %v2486 = vpack.c.b16 %v2302, %v2301
  %v2487 = vpack.c.b16 %v2304, %v2303
  %v2488 = vpack.c.b16 %v2306, %v2305
  %v2489 = vpack.c.b16 %v2308, %v2307
  %v2490 = vpack.c.b16 %v2310, %v2309
  %v2491 = vpack.c.b16 %v2312, %v2311
  %v2492 = vpack.c.b16 %v2314, %v2313
  %v2493 = vpack.c.b16 %v2316, %v2315
  %v2494 = vpack.c.b16 %v2318, %v2317
  %v2495 = vpack.c.b16 %v2320, %v2319
  %v2496 = vpack.c.b16 %v2322, %v2321
  %v2497 = vpack.c.b16 %v2324, %v2323
  %v2498 = vpack.c.b16 %v2326, %v2325
  %v2499 = vpack.c.b16 %v2328, %v2327
  %v2500 = vpack.c.b16 %v2330, %v2329
  %v2501 = vpack.c.b16 %v2332, %v2331
  %v2502 = vpack.c.b16 %v2334, %v2333
  %v2503 = vpack.c.b16 %v2336, %v2335
  %v2504 = vpack.c.b16 %v2338, %v2337
  %v2505 = vpack.c.b16 %v2340, %v2339
  %v2506 = vpack.c.b16 %v2342, %v2341
  %v2507 = vpack.c.b16 %v2344, %v2343
  %v2508 = vpack.c.b16 %v2346, %v2345
  %v2509 = vpack.c.b16 %v2348, %v2347
  %v2510 = vpack.c.b16 %v2350, %v2349
  %v2511 = vpack.c.b16 %v2352, %v2351
  %v2512 = vpack.c.b16 %v2354, %v2353
  %v2513 = vpack.c.b16 %v2356, %v2355
  %v2514 = vpack.c.b16 %v2358, %v2357
  %v2515 = vpack.c.b16 %v2360, %v2359
  %v2516 = vpack.c.b16 %v2362, %v2361
  %v2517 = vpack.c.b16 %v2364, %v2363
  %v2518 = vpack.c.b16 %v2366, %v2365
  %v2519 = vpack.c.b16 %v2368, %v2367
  %v2520 = vpack.c.b16 %v2370, %v2369
  %v2521 = vpack.c.b16 %v2372, %v2371
  %v2522 = vpack.c.b16 %v2374, %v2373
  %v2523 = vpack.c.b16 %v2376, %v2375
  %v2524 = vpack.c.b16 %v2378, %v2377
  %v2525 = vpack.c.b16 %v2380, %v2379
  %v2526 = vpack.c.b16 %v2382, %v2381
  %v2527 = vpack.c.b16 %v2384, %v2383
  %v2528 = vpack.c.b16 %v2386, %v2385
  %v2529 = vpack.c.b16 %v2388, %v2387
  %v2530 = vpack.c.b16 %v2390, %v2389
  %v2531 = vpack.c.b16 %v2392, %v2391
  %v2532 = vpack.c.b16 %v2394, %v2393
  %v2533 = vpack.c.b16 %v2396, %v2395
  %v2534 = vpack.c.b16 %v2398, %v2397
  %v2535 = vpack.c.b16 %v2400, %v2399
  %v2536 = vpack.c.b16 %v2402, %v2401
  %v2537 = vpack.c.b16 %v2404, %v2403
  %v2538 = vpack.c.b16 %v2406, %v2405
  %v2539 = vpack.c.b16 %v2408, %v2407
  %v2540 = vpack.c.b16 %v2410, %v2409
  %v2541 = vpack.c.b16 %v2412, %v2411
  %v2542 = vpack.c.b16 %v2414, %v2413
  %2671 = vmatprep.subr.bf16.mxu0 0
  %2672 = vmatpush1.bf16.msra.mxu0 %v2422
  %2673 = vmatprep.subr.bf16.mxu0 0
  %2674 = vmatpush1.bf16.msra.mxu0 %v2421
  %2675 = vmatprep.subr.bf16.mxu0 0
  %2676 = vmatpush1.bf16.msra.mxu0 %v2420
  %2677 = vmatprep.subr.bf16.mxu0 0
  %2678 = vmatpush1.bf16.msra.mxu0 %v2419
  %2679 = vmatprep.subr.bf16.mxu0 0
  %2680 = vmatpush1.bf16.msra.mxu0 %v2418
  %2681 = vmatprep.subr.bf16.mxu0 0
  %2682 = vmatpush1.bf16.msra.mxu0 %v2417
  %2683 = vmatprep.subr.bf16.mxu0 0
  %2684 = vmatpush1.bf16.msra.mxu0 %v2416
  %2685 = vmatprep.subr.bf16.mxu0 0
  %2686 = vmatpush1.bf16.msra.mxu0 %v2415
  %2687 = vmatprep.subr.bf16.mxu0 0
  %2688 = vmatpush2.bf16.msra.mxu0 %v2430
  %2689 = vmatprep.subr.bf16.mxu0 0
  %2690 = vmatpush2.bf16.msra.mxu0 %v2429
  %2691 = vmatprep.subr.bf16.mxu0 0
  %2692 = vmatpush2.bf16.msra.mxu0 %v2428
  %2693 = vmatprep.subr.bf16.mxu0 0
  %2694 = vmatpush2.bf16.msra.mxu0 %v2427
  %2695 = vmatprep.subr.bf16.mxu0 0
  %2696 = vmatpush2.bf16.msra.mxu0 %v2426
  %2697 = vmatprep.subr.bf16.mxu0 0
  %2698 = vmatpush2.bf16.msra.mxu0 %v2425
  %2699 = vmatprep.subr.bf16.mxu0 0
  %2700 = vmatpush2.bf16.msra.mxu0 %v2424
  %2701 = vmatprep.subr.bf16.mxu0 0
  %2702 = vmatpush2.bf16.msra.mxu0 %v2423
  %2703 = vmatprep.mubr.bf16.mxu0 %v1632
  %2704 = vmatmul.mubr.bf16.gmra.mxu0 %v1631
  %v2705 = vpop.f32.mrf.mxu0
  %v2706 = vadd.f32 0.0, %v2705
  %v2707 = vpop.f32.mrf.mxu0
  %v2708 = vpop.f32.mrf.mxu0
  %v2709 = vpop.f32.mrf.mxu0
  %2710 = vdwg.mxu0
  %2711 = vmatprep.subr.bf16.mxu0 0
  %2712 = vmatpush1.bf16.msra.mxu0 %v2438
  %2713 = vmatprep.subr.bf16.mxu0 0
  %2714 = vmatpush1.bf16.msra.mxu0 %v2437
  %2715 = vmatprep.subr.bf16.mxu0 0
  %2716 = vmatpush1.bf16.msra.mxu0 %v2436
  %2717 = vmatprep.subr.bf16.mxu0 0
  %2718 = vmatpush1.bf16.msra.mxu0 %v2435
  %2719 = vmatprep.subr.bf16.mxu0 0
  %2720 = vmatpush1.bf16.msra.mxu0 %v2434
  %2721 = vmatprep.subr.bf16.mxu0 0
  %2722 = vmatpush1.bf16.msra.mxu0 %v2433
  %2723 = vmatprep.subr.bf16.mxu0 0
  %2724 = vmatpush1.bf16.msra.mxu0 %v2432
  %2725 = vmatprep.subr.bf16.mxu0 0
  %2726 = vmatpush1.bf16.msra.mxu0 %v2431
  %2727 = vmatprep.subr.bf16.mxu0 0
  %2728 = vmatpush2.bf16.msra.mxu0 %v2446
  %2729 = vmatprep.subr.bf16.mxu0 0
  %2730 = vmatpush2.bf16.msra.mxu0 %v2445
  %2731 = vmatprep.subr.bf16.mxu0 0
  %2732 = vmatpush2.bf16.msra.mxu0 %v2444
  %2733 = vmatprep.subr.bf16.mxu0 0
  %2734 = vmatpush2.bf16.msra.mxu0 %v2443
  %2735 = vmatprep.subr.bf16.mxu0 0
  %2736 = vmatpush2.bf16.msra.mxu0 %v2442
  %2737 = vmatprep.subr.bf16.mxu0 0
  %2738 = vmatpush2.bf16.msra.mxu0 %v2441
  %2739 = vmatprep.subr.bf16.mxu0 0
  %2740 = vmatpush2.bf16.msra.mxu0 %v2440
  %2741 = vmatprep.subr.bf16.mxu0 0
  %2742 = vmatpush2.bf16.msra.mxu0 %v2439
  %2743 = vmatprep.mubr.bf16.mxu0 %v1634
  %2744 = vmatmul.mubr.bf16.gmra.mxu0 %v1633
  %v2745 = vpop.f32.mrf.mxu0
  %v2746 = vadd.f32 %v2706, %v2745
  %v2747 = vpop.f32.mrf.mxu0
  %v2748 = vpop.f32.mrf.mxu0
  %v2749 = vpop.f32.mrf.mxu0
  %2750 = vdwg.mxu0
  %2751 = vmatprep.subr.bf16.mxu0 0
  %2752 = vmatpush1.bf16.msra.mxu0 %v2454
  %2753 = vmatprep.subr.bf16.mxu0 0
  %2754 = vmatpush1.bf16.msra.mxu0 %v2453
  %2755 = vmatprep.subr.bf16.mxu0 0
  %2756 = vmatpush1.bf16.msra.mxu0 %v2452
  %2757 = vmatprep.subr.bf16.mxu0 0
  %2758 = vmatpush1.bf16.msra.mxu0 %v2451
  %2759 = vmatprep.subr.bf16.mxu0 0
  %2760 = vmatpush1.bf16.msra.mxu0 %v2450
  %2761 = vmatprep.subr.bf16.mxu0 0
  %2762 = vmatpush1.bf16.msra.mxu0 %v2449
  %2763 = vmatprep.subr.bf16.mxu0 0
  %2764 = vmatpush1.bf16.msra.mxu0 %v2448
  %2765 = vmatprep.subr.bf16.mxu0 0
  %2766 = vmatpush1.bf16.msra.mxu0 %v2447
  %2767 = vmatprep.subr.bf16.mxu0 0
  %2768 = vmatpush2.bf16.msra.mxu0 %v2462
  %2769 = vmatprep.subr.bf16.mxu0 0
  %2770 = vmatpush2.bf16.msra.mxu0 %v2461
  %2771 = vmatprep.subr.bf16.mxu0 0
  %2772 = vmatpush2.bf16.msra.mxu0 %v2460
  %2773 = vmatprep.subr.bf16.mxu0 0
  %2774 = vmatpush2.bf16.msra.mxu0 %v2459
  %2775 = vmatprep.subr.bf16.mxu0 0
  %2776 = vmatpush2.bf16.msra.mxu0 %v2458
  %2777 = vmatprep.subr.bf16.mxu0 0
  %2778 = vmatpush2.bf16.msra.mxu0 %v2457
  %2779 = vmatprep.subr.bf16.mxu0 0
  %2780 = vmatpush2.bf16.msra.mxu0 %v2456
  %2781 = vmatprep.subr.bf16.mxu0 0
  %2782 = vmatpush2.bf16.msra.mxu0 %v2455
  %2783 = vmatprep.mubr.bf16.mxu0 %v1636
  %2784 = vmatmul.mubr.bf16.gmra.mxu0 %v1635
  %v2785 = vpop.f32.mrf.mxu0
  %v2786 = vadd.f32 %v2746, %v2785
  %v2787 = vpop.f32.mrf.mxu0
  %v2788 = vpop.f32.mrf.mxu0
  %v2789 = vpop.f32.mrf.mxu0
  %2790 = vdwg.mxu0
  %2791 = vmatprep.subr.bf16.mxu0 0
  %2792 = vmatpush1.bf16.msra.mxu0 %v2470
  %2793 = vmatprep.subr.bf16.mxu0 0
  %2794 = vmatpush1.bf16.msra.mxu0 %v2469
  %2795 = vmatprep.subr.bf16.mxu0 0
  %2796 = vmatpush1.bf16.msra.mxu0 %v2468
  %2797 = vmatprep.subr.bf16.mxu0 0
  %2798 = vmatpush1.bf16.msra.mxu0 %v2467
  %2799 = vmatprep.subr.bf16.mxu0 0
  %2800 = vmatpush1.bf16.msra.mxu0 %v2466
  %2801 = vmatprep.subr.bf16.mxu0 0
  %2802 = vmatpush1.bf16.msra.mxu0 %v2465
  %2803 = vmatprep.subr.bf16.mxu0 0
  %2804 = vmatpush1.bf16.msra.mxu0 %v2464
  %2805 = vmatprep.subr.bf16.mxu0 0
  %2806 = vmatpush1.bf16.msra.mxu0 %v2463
  %2807 = vmatprep.subr.bf16.mxu0 0
  %2808 = vmatpush2.bf16.msra.mxu0 %v2478
  %2809 = vmatprep.subr.bf16.mxu0 0
  %2810 = vmatpush2.bf16.msra.mxu0 %v2477
  %2811 = vmatprep.subr.bf16.mxu0 0
  %2812 = vmatpush2.bf16.msra.mxu0 %v2476
  %2813 = vmatprep.subr.bf16.mxu0 0
  %2814 = vmatpush2.bf16.msra.mxu0 %v2475
  %2815 = vmatprep.subr.bf16.mxu0 0
  %2816 = vmatpush2.bf16.msra.mxu0 %v2474
  %2817 = vmatprep.subr.bf16.mxu0 0
  %2818 = vmatpush2.bf16.msra.mxu0 %v2473
  %2819 = vmatprep.subr.bf16.mxu0 0
  %2820 = vmatpush2.bf16.msra.mxu0 %v2472
  %2821 = vmatprep.subr.bf16.mxu0 0
  %2822 = vmatpush2.bf16.msra.mxu0 %v2471
  %2823 = vmatprep.mubr.bf16.mxu0 %v1638
  %2824 = vmatmul.mubr.bf16.gmra.mxu0 %v1637
  %v2825 = vpop.f32.mrf.mxu0
  %v2826 = vadd.f32 %v2786, %v2825
  %v2827 = vpop.f32.mrf.mxu0
  %v2828 = vpop.f32.mrf.mxu0
  %v2829 = vpop.f32.mrf.mxu0
  %2830 = vdwg.mxu0
  %2831 = vmatprep.subr.bf16.mxu0 0
  %2832 = vmatpush1.bf16.msra.mxu0 %v2486
  %2833 = vmatprep.subr.bf16.mxu0 0
  %2834 = vmatpush1.bf16.msra.mxu0 %v2485
  %2835 = vmatprep.subr.bf16.mxu0 0
  %2836 = vmatpush1.bf16.msra.mxu0 %v2484
  %2837 = vmatprep.subr.bf16.mxu0 0
  %2838 = vmatpush1.bf16.msra.mxu0 %v2483
  %2839 = vmatprep.subr.bf16.mxu0 0
  %2840 = vmatpush1.bf16.msra.mxu0 %v2482
  %2841 = vmatprep.subr.bf16.mxu0 0
  %2842 = vmatpush1.bf16.msra.mxu0 %v2481
  %2843 = vmatprep.subr.bf16.mxu0 0
  %2844 = vmatpush1.bf16.msra.mxu0 %v2480
  %2845 = vmatprep.subr.bf16.mxu0 0
  %2846 = vmatpush1.bf16.msra.mxu0 %v2479
  %2847 = vmatprep.subr.bf16.mxu0 0
  %2848 = vmatpush2.bf16.msra.mxu0 %v2494
  %2849 = vmatprep.subr.bf16.mxu0 0
  %2850 = vmatpush2.bf16.msra.mxu0 %v2493
  %2851 = vmatprep.subr.bf16.mxu0 0
  %2852 = vmatpush2.bf16.msra.mxu0 %v2492
  %2853 = vmatprep.subr.bf16.mxu0 0
  %2854 = vmatpush2.bf16.msra.mxu0 %v2491
  %2855 = vmatprep.subr.bf16.mxu0 0
  %2856 = vmatpush2.bf16.msra.mxu0 %v2490
  %2857 = vmatprep.subr.bf16.mxu0 0
  %2858 = vmatpush2.bf16.msra.mxu0 %v2489
  %2859 = vmatprep.subr.bf16.mxu0 0
  %2860 = vmatpush2.bf16.msra.mxu0 %v2488
  %2861 = vmatprep.subr.bf16.mxu0 0
  %2862 = vmatpush2.bf16.msra.mxu0 %v2487
  %2863 = vmatprep.mubr.bf16.mxu0 %v1640
  %2864 = vmatmul.mubr.bf16.gmra.mxu0 %v1639
  %v2865 = vpop.f32.mrf.mxu0
  %v2866 = vadd.f32 %v2826, %v2865
  %v2867 = vpop.f32.mrf.mxu0
  %v2868 = vpop.f32.mrf.mxu0
  %v2869 = vpop.f32.mrf.mxu0
  %2870 = vdwg.mxu0
  %2871 = vmatprep.subr.bf16.mxu0 0
  %2872 = vmatpush1.bf16.msra.mxu0 %v2502
  %2873 = vmatprep.subr.bf16.mxu0 0
  %2874 = vmatpush1.bf16.msra.mxu0 %v2501
  %2875 = vmatprep.subr.bf16.mxu0 0
  %2876 = vmatpush1.bf16.msra.mxu0 %v2500
  %2877 = vmatprep.subr.bf16.mxu0 0
  %2878 = vmatpush1.bf16.msra.mxu0 %v2499
  %2879 = vmatprep.subr.bf16.mxu0 0
  %2880 = vmatpush1.bf16.msra.mxu0 %v2498
  %2881 = vmatprep.subr.bf16.mxu0 0
  %2882 = vmatpush1.bf16.msra.mxu0 %v2497
  %2883 = vmatprep.subr.bf16.mxu0 0
  %2884 = vmatpush1.bf16.msra.mxu0 %v2496
  %2885 = vmatprep.subr.bf16.mxu0 0
  %2886 = vmatpush1.bf16.msra.mxu0 %v2495
  %2887 = vmatprep.subr.bf16.mxu0 0
  %2888 = vmatpush2.bf16.msra.mxu0 %v2510
  %2889 = vmatprep.subr.bf16.mxu0 0
  %2890 = vmatpush2.bf16.msra.mxu0 %v2509
  %2891 = vmatprep.subr.bf16.mxu0 0
  %2892 = vmatpush2.bf16.msra.mxu0 %v2508
  %2893 = vmatprep.subr.bf16.mxu0 0
  %2894 = vmatpush2.bf16.msra.mxu0 %v2507
  %2895 = vmatprep.subr.bf16.mxu0 0
  %2896 = vmatpush2.bf16.msra.mxu0 %v2506
  %2897 = vmatprep.subr.bf16.mxu0 0
  %2898 = vmatpush2.bf16.msra.mxu0 %v2505
  %2899 = vmatprep.subr.bf16.mxu0 0
  %2900 = vmatpush2.bf16.msra.mxu0 %v2504
  %2901 = vmatprep.subr.bf16.mxu0 0
  %2902 = vmatpush2.bf16.msra.mxu0 %v2503
  %2903 = vmatprep.mubr.bf16.mxu0 %v1642
  %2904 = vmatmul.mubr.bf16.gmra.mxu0 %v1641
  %v2905 = vpop.f32.mrf.mxu0
  %v2906 = vadd.f32 %v2866, %v2905
  %v2907 = vpop.f32.mrf.mxu0
  %v2908 = vpop.f32.mrf.mxu0
  %v2909 = vpop.f32.mrf.mxu0
  %2910 = vdwg.mxu0
  %2911 = vmatprep.subr.bf16.mxu0 0
  %2912 = vmatpush1.bf16.msra.mxu0 %v2518
  %2913 = vmatprep.subr.bf16.mxu0 0
  %2914 = vmatpush1.bf16.msra.mxu0 %v2517
  %2915 = vmatprep.subr.bf16.mxu0 0
  %2916 = vmatpush1.bf16.msra.mxu0 %v2516
  %2917 = vmatprep.subr.bf16.mxu0 0
  %2918 = vmatpush1.bf16.msra.mxu0 %v2515
  %2919 = vmatprep.subr.bf16.mxu0 0
  %2920 = vmatpush1.bf16.msra.mxu0 %v2514
  %2921 = vmatprep.subr.bf16.mxu0 0
  %2922 = vmatpush1.bf16.msra.mxu0 %v2513
  %2923 = vmatprep.subr.bf16.mxu0 0
  %2924 = vmatpush1.bf16.msra.mxu0 %v2512
  %2925 = vmatprep.subr.bf16.mxu0 0
  %2926 = vmatpush1.bf16.msra.mxu0 %v2511
  %2927 = vmatprep.subr.bf16.mxu0 0
  %2928 = vmatpush2.bf16.msra.mxu0 %v2526
  %2929 = vmatprep.subr.bf16.mxu0 0
  %2930 = vmatpush2.bf16.msra.mxu0 %v2525
  %2931 = vmatprep.subr.bf16.mxu0 0
  %2932 = vmatpush2.bf16.msra.mxu0 %v2524
  %2933 = vmatprep.subr.bf16.mxu0 0
  %2934 = vmatpush2.bf16.msra.mxu0 %v2523
  %2935 = vmatprep.subr.bf16.mxu0 0
  %2936 = vmatpush2.bf16.msra.mxu0 %v2522
  %2937 = vmatprep.subr.bf16.mxu0 0
  %2938 = vmatpush2.bf16.msra.mxu0 %v2521
  %2939 = vmatprep.subr.bf16.mxu0 0
  %2940 = vmatpush2.bf16.msra.mxu0 %v2520
  %2941 = vmatprep.subr.bf16.mxu0 0
  %2942 = vmatpush2.bf16.msra.mxu0 %v2519
  %2943 = vmatprep.mubr.bf16.mxu0 %v1644
  %2944 = vmatmul.mubr.bf16.gmra.mxu0 %v1643
  %v2945 = vpop.f32.mrf.mxu0
  %v2946 = vadd.f32 %v2906, %v2945
  %v2947 = vpop.f32.mrf.mxu0
  %v2948 = vpop.f32.mrf.mxu0
  %v2949 = vpop.f32.mrf.mxu0
  %2950 = vdwg.mxu0
  %2951 = vmatprep.subr.bf16.mxu0 0
  %2952 = vmatpush1.bf16.msra.mxu0 %v2534
  %2953 = vmatprep.subr.bf16.mxu0 0
  %2954 = vmatpush1.bf16.msra.mxu0 %v2533
  %2955 = vmatprep.subr.bf16.mxu0 0
  %2956 = vmatpush1.bf16.msra.mxu0 %v2532
  %2957 = vmatprep.subr.bf16.mxu0 0
  %2958 = vmatpush1.bf16.msra.mxu0 %v2531
  %2959 = vmatprep.subr.bf16.mxu0 0
  %2960 = vmatpush1.bf16.msra.mxu0 %v2530
  %2961 = vmatprep.subr.bf16.mxu0 0
  %2962 = vmatpush1.bf16.msra.mxu0 %v2529
  %2963 = vmatprep.subr.bf16.mxu0 0
  %2964 = vmatpush1.bf16.msra.mxu0 %v2528
  %2965 = vmatprep.subr.bf16.mxu0 0
  %2966 = vmatpush1.bf16.msra.mxu0 %v2527
  %2967 = vmatprep.subr.bf16.mxu0 0
  %2968 = vmatpush2.bf16.msra.mxu0 %v2542
  %2969 = vmatprep.subr.bf16.mxu0 0
  %2970 = vmatpush2.bf16.msra.mxu0 %v2541
  %2971 = vmatprep.subr.bf16.mxu0 0
  %2972 = vmatpush2.bf16.msra.mxu0 %v2540
  %2973 = vmatprep.subr.bf16.mxu0 0
  %2974 = vmatpush2.bf16.msra.mxu0 %v2539
  %2975 = vmatprep.subr.bf16.mxu0 0
  %2976 = vmatpush2.bf16.msra.mxu0 %v2538
  %2977 = vmatprep.subr.bf16.mxu0 0
  %2978 = vmatpush2.bf16.msra.mxu0 %v2537
  %2979 = vmatprep.subr.bf16.mxu0 0
  %2980 = vmatpush2.bf16.msra.mxu0 %v2536
  %2981 = vmatprep.subr.bf16.mxu0 0
  %2982 = vmatpush2.bf16.msra.mxu0 %v2535
  %2983 = vmatprep.mubr.bf16.mxu0 %v1646
  %2984 = vmatmul.mubr.bf16.gmra.mxu0 %v1645
  %v2985 = vpop.f32.mrf.mxu0
  %v2986 = vadd.f32 %v2946, %v2985
  %v2987 = vpop.f32.mrf.mxu0
  %v2988 = vpop.f32.mrf.mxu0
  %v2989 = vpop.f32.mrf.mxu0
  %2990 = vdwg.mxu0
  %s2991 = smul.u32 8, 1
  %s2992 = sshll.u32 %s2991, 4
  %2993 = dma.done %s94, %s2992
  %v2994 = vld [vmem:[#allocation5] sm:$0x1]
  %v2995 = vld [vmem:[#allocation5 + $0x1] sm:$0x1]
  %v2996 = vrot.slane %v2986, 4
  %v2997 = vadd.f32 %v2986, %v2996
  %v2998 = vrot.slane %v2997, 2
  %v2999 = vadd.f32 %v2997, %v2998
  %v3000 = vrot.slane %v2999, 1
  %v3001 = vadd.f32 %v2999, %v3000
  %v3002 = vrcp.pop 8.0
  %v3003 = vmul.f32 %v3001, %v3002
  %v3004 = vmul.f32 %v2986, %v2986
  %v3005 = vrot.slane %v3004, 4
  %v3006 = vadd.f32 %v3004, %v3005
  %v3007 = vrot.slane %v3006, 2
  %v3008 = vadd.f32 %v3006, %v3007
  %v3009 = vrot.slane %v3008, 1
  %v3010 = vadd.f32 %v3008, %v3009
  %v3011 = vmul.f32 %v3010, %v3002
  %v3012 = vmul.f32 %v3003, %v3003
  %v3013 = vsub.f32 %v3011, %v3012
  %v3014 = vmax.f32 %v3013, 0.0
  %v3015 = vadd.f32 %v3014, 1e-05
  %v3016 = vrsqrt.pop %v3015
  %v3017 = vmul.f32 %v2994, %v3016
  %v3018 = vmul.f32 %v3003, %v3017
  %v3019 = vsub.f32 %v2995, %v3018
  %v3020 = vlaneseq
  %v3021 = vshrl.u32 %v3020, 7
  %v3022 = vsub.s32 0, %v3021
  %v3023 = vrot.slane %v3017, %v3022
  %v3024 = vmul.f32 %v2986, %v3023
  %v3025 = vlaneseq
  %v3026 = vshrl.u32 %v3025, 7
  %v3027 = vsub.s32 0, %v3026
  %v3028 = vrot.slane %v3019, %v3027
  %v3029 = vadd.f32 %v3024, %v3028
  %v3030 = vmax.f32 %v3029, 0.0
  %s3031 = smul.u32 4, 16
  %s3032 = smul.u32 %s3031, 1
  %s3033 = sshll.u32 %s3032, 4
  %3034 = dma.done %s36, %s3033
  %v3035 = vpack.c.bf16 %v3030, %v3030
  %v3036 = vld [vmem:[#allocation4] sm:$0xf]
  %v3037 = vld [vmem:[#allocation4 + $0x4] sm:$0xf]
  %v3038 = vld [vmem:[#allocation4 + $0x8] sm:$0xf]
  %v3039 = vld [vmem:[#allocation4 + $0xc] sm:$0xf]
  %v3040 = vld [vmem:[#allocation4 + $0x10] sm:$0xf]
  %v3041 = vld [vmem:[#allocation4 + $0x14] sm:$0xf]
  %v3042 = vld [vmem:[#allocation4 + $0x18] sm:$0xf]
  %v3043 = vld [vmem:[#allocation4 + $0x1c] sm:$0xf]
  %v3044 = vld [vmem:[#allocation4 + $0x20] sm:$0xf]
  %v3045 = vld [vmem:[#allocation4 + $0x24] sm:$0xf]
  %v3046 = vld [vmem:[#allocation4 + $0x28] sm:$0xf]
  %v3047 = vld [vmem:[#allocation4 + $0x2c] sm:$0xf]
  %v3048 = vld [vmem:[#allocation4 + $0x30] sm:$0xf]
  %v3049 = vld [vmem:[#allocation4 + $0x34] sm:$0xf]
  %v3050 = vld [vmem:[#allocation4 + $0x38] sm:$0xf]
  %v3051 = vld [vmem:[#allocation4 + $0x3c] sm:$0xf]
  %v3068 = vunpack.c.l.b16 %v3036
  %v3069 = vunpack.c.l.b16 %v3037
  %v3070 = vunpack.c.l.b16 %v3038
  %v3071 = vunpack.c.l.b16 %v3039
  %v3072 = vunpack.c.l.b16 %v3040
  %v3073 = vunpack.c.l.b16 %v3041
  %v3074 = vunpack.c.l.b16 %v3042
  %v3075 = vunpack.c.l.b16 %v3043
  %v3076 = vunpack.c.l.b16 %v3044
  %v3077 = vunpack.c.l.b16 %v3045
  %v3078 = vunpack.c.l.b16 %v3046
  %v3079 = vunpack.c.l.b16 %v3047
  %v3080 = vunpack.c.l.b16 %v3048
  %v3081 = vunpack.c.l.b16 %v3049
  %v3082 = vunpack.c.l.b16 %v3050
  %v3083 = vunpack.c.l.b16 %v3051
  %v3084 = vpack.c.b16 %v3069, %v3068
  %v3085 = vpack.c.b16 %v3071, %v3070
  %v3086 = vpack.c.b16 %v3073, %v3072
  %v3087 = vpack.c.b16 %v3075, %v3074
  %v3088 = vpack.c.b16 %v3077, %v3076
  %v3089 = vpack.c.b16 %v3079, %v3078
  %v3090 = vpack.c.b16 %v3081, %v3080
  %v3091 = vpack.c.b16 %v3083, %v3082
  %3100 = vmatprep.subr.bf16.mxu0 0
  %3101 = vmatpush1.bf16.msra.mxu0 %v3091
  %3102 = vmatprep.subr.bf16.mxu0 0
  %3103 = vmatpush1.bf16.msra.mxu0 %v3090
  %3104 = vmatprep.subr.bf16.mxu0 0
  %3105 = vmatpush1.bf16.msra.mxu0 %v3089
  %3106 = vmatprep.subr.bf16.mxu0 0
  %3107 = vmatpush1.bf16.msra.mxu0 %v3088
  %3108 = vmatprep.subr.bf16.mxu0 0
  %3109 = vmatpush1.bf16.msra.mxu0 %v3087
  %3110 = vmatprep.subr.bf16.mxu0 0
  %3111 = vmatpush1.bf16.msra.mxu0 %v3086
  %3112 = vmatprep.subr.bf16.mxu0 0
  %3113 = vmatpush1.bf16.msra.mxu0 %v3085
  %3114 = vmatprep.subr.bf16.mxu0 0
  %3115 = vmatpush1.bf16.msra.mxu0 %v3084
  %3116 = vmatprep.subr.bf16.mxu0 0
  %3117 = vmatpush2.bf16.msra.mxu0 0
  %3118 = vmatprep.subr.bf16.mxu0 0
  %3119 = vmatpush2.bf16.msra.mxu0 0
  %3120 = vmatprep.subr.bf16.mxu0 0
  %3121 = vmatpush2.bf16.msra.mxu0 0
  %3122 = vmatprep.subr.bf16.mxu0 0
  %3123 = vmatpush2.bf16.msra.mxu0 0
  %3124 = vmatprep.subr.bf16.mxu0 0
  %3125 = vmatpush2.bf16.msra.mxu0 0
  %3126 = vmatprep.subr.bf16.mxu0 0
  %3127 = vmatpush2.bf16.msra.mxu0 0
  %3128 = vmatprep.subr.bf16.mxu0 0
  %3129 = vmatpush2.bf16.msra.mxu0 0
  %3130 = vmatprep.subr.bf16.mxu0 0
  %3131 = vmatpush2.bf16.msra.mxu0 0
  %3132 = vmatprep.mubr.bf16.mxu0 0
  %3133 = vmatmul.mubr.bf16.gmra.mxu0 %v3035
  %v3134 = vpop.f32.mrf.mxu0
  %v3135 = vadd.f32 0.0, %v3134
  %v3136 = vpop.f32.mrf.mxu0
  %v3137 = vpop.f32.mrf.mxu0
  %v3138 = vpop.f32.mrf.mxu0
  %3139 = vdwg.mxu0
  %v3140 = vld [vmem:[#allocation5 + $0x2] sm:$0x1]
  %v3141 = vld [vmem:[#allocation5 + $0x3] sm:$0x1]
  %v3142 = vrot.slane %v3135, 4
  %v3143 = vadd.f32 %v3135, %v3142
  %v3144 = vrot.slane %v3143, 2
  %v3145 = vadd.f32 %v3143, %v3144
  %v3146 = vrot.slane %v3145, 1
  %v3147 = vadd.f32 %v3145, %v3146
  %v3148 = vmul.f32 %v3147, %v3002
  %v3149 = vmul.f32 %v3135, %v3135
  %v3150 = vrot.slane %v3149, 4
  %v3151 = vadd.f32 %v3149, %v3150
  %v3152 = vrot.slane %v3151, 2
  %v3153 = vadd.f32 %v3151, %v3152
  %v3154 = vrot.slane %v3153, 1
  %v3155 = vadd.f32 %v3153, %v3154
  %v3156 = vmul.f32 %v3155, %v3002
  %v3157 = vmul.f32 %v3148, %v3148
  %v3158 = vsub.f32 %v3156, %v3157
  %v3159 = vmax.f32 %v3158, 0.0
  %v3160 = vadd.f32 %v3159, 1e-05
  %v3161 = vrsqrt.pop %v3160
  %v3162 = vmul.f32 %v3140, %v3161
  %v3163 = vmul.f32 %v3148, %v3162
  %v3164 = vsub.f32 %v3141, %v3163
  %v3165 = vlaneseq
  %v3166 = vshrl.u32 %v3165, 7
  %v3167 = vsub.s32 0, %v3166
  %v3168 = vrot.slane %v3162, %v3167
  %v3169 = vmul.f32 %v3135, %v3168
  %v3170 = vlaneseq
  %v3171 = vshrl.u32 %v3170, 7
  %v3172 = vsub.s32 0, %v3171
  %v3173 = vrot.slane %v3164, %v3172
  %v3174 = vadd.f32 %v3169, %v3173
  %v3175 = vmax.f32 %v3174, 0.0
  %v3176 = vld [vmem:[#allocation5 + $0x4] sm:$0x1]
  %v3177 = vlaneseq
  %v3178 = vshrl.u32 %v3177, 7
  %v3179 = vsub.s32 0, %v3178
  %v3180 = vrot.slane %v3176, %v3179
  %v3181 = vmul.f32 %v3175, %v3180
  %3182 = vadd.xlane.f32.xlu0 %v3181
  %v3183 = vpop.xlane.xlu0 %3182
  %v3184 = vld [vmem:[#allocation5 + $0x5] sm:$0x1]
  %v3185 = vlaneseq
  %v3186 = vshrl.u32 %v3185, 7
  %v3187 = vsub.s32 0, %v3186
  %v3188 = vrot.slane %v3184, %v3187
  %v3189 = vadd.f32 %v3183, %v3188
  %v3190 = vxor.u32 %v3189, 2147483648
  %v3191 = vmul.f32 %v3190, 1.442695
  %v3192 = vpow.pop %v3191
  %v3193 = vadd.f32 %v3192, 1.0
  %v3194 = vrcp.pop %v3193
  %v3195 = vmul.f32 1.0, %v3194
  %vm3196 = vcmask 7168
  %3197 = vst.msk [vmem:[%s5] sm:$0xff] %vm3196, %v3195
  // Predicated region
  $region82: #{dnn_forward.1} parent=0 // pred_check
    _
  $region83: #{dnn_forward.1} parent=0 // pred_check_branch
    %3199 = sbr.rel (0) target = $region85
  $region84: #{dnn_forward.1} parent=0 // pred_region
    _
  $region85: #{dnn_forward.1} parent=0 // pred_fallthru
    _
  // Predicated region
  $region86: #{dnn_forward.1} parent=0 // pred_check
    _
  $region87: #{dnn_forward.1} parent=0 // pred_check_branch
    %3201 = sbr.rel (0) target = $region89
  $region88: #{dnn_forward.1} parent=0 // pred_region
    _
  $region89: #{dnn_forward.1} parent=0 // pred_fallthru
    _
  %3202 = vsyncmov [#allocation7]
  %s3203 = vpop.sfrf %3202
  %p3204 = scmp.eq.s32.totalorder %s3203, 0
  %p3205 = pneg %p3204
  %3207 = shalt.err (%p3205)
  %s3208 = scalar_lea.sflag [#allocation7], 1
  %3209 = vsyncmov %s3208
  %s3210 = vpop.sfrf %3209
  %p3211 = scmp.eq.s32.totalorder %s3210, 0
  %p3212 = pneg %p3211
  %3214 = shalt.err (%p3212)
  %s3215 = scalar_lea.sflag [#allocation7], 2
  %3216 = vsyncmov %s3215
  %s3217 = vpop.sfrf %3216
  %p3218 = scmp.eq.s32.totalorder %s3217, 0
  %p3219 = pneg %p3218
  %3221 = shalt.err (%p3219)
  %s3222 = scalar_lea.sflag [#allocation7], 3
  %3223 = vsyncmov %s3222
  %s3224 = vpop.sfrf %3223
  %p3225 = scmp.eq.s32.totalorder %s3224, 0
  %p3226 = pneg %p3225
  %3228 = shalt.err (%p3226)

</llo_original>
